<compile_context>
chip_gen: v5e
topology: v5e:2x2
jax: 0.10.0
libtpu: 0.0.40
codegen_flags: <defaults>
</compile_context>

<pallas_src>
import jax
import jax.numpy as jnp
import numpy as np
from jax import lax
from jax.experimental import pallas as pl
from jax.experimental.pallas import tpu as pltpu

# ----- model hyper-parameters (conv1_size = 64, n_Hb = 1) --------------------
K1 = 64                                   # conv1 temporal kernel
N_BATCH = 2
H_EEG = 20                                # EEG rows (conv2 kernel height)
W_TIME = 320                              # time samples
F1 = 8                                    # conv1 out channels
D_MULT = 2
F2C2 = D_MULT * F1                        # 16 (conv2 out channels)
F2 = 16                                   # Conv3 pointwise out channels
PAD1 = K1 // 2                            # 32
WSLAB = W_TIME + 2 * PAD1                 # 384 (padded time axis, 3*128 lanes)
T1 = WSLAB - K1 + 1                       # 321 (width after conv1)
T2A = T1 // 4                             # 80  (width after AvgPool(1,4))
K3 = 16                                   # depthwise conv3 temporal kernel
PAD3 = K3 // 2                            # 8
CSLAB = 128                               # conv3 slab: 8 pad | 80 data | 40 zeros
T3 = T2A + 2 * PAD3 - K3 + 1              # 81  (width after depthwise conv3)
T3P = T3 // 8                             # 10  (width after AvgPool(1,8))
N_CLASS = 3
FEAT = F2 * T3P                           # 160 (classifier input)
BN_EPS = 1e-5


# ----------------------------- Pallas kernel --------------------------------
def _eegnet_kernel(x_ref, w2m_ref, wk_ref, shift2_ref, pool1_ref,
                   w3dk_ref, w3pt_ref, shift3_ref,
                   wcls_ref, mask_ref, gcol_ref, bcls_ref, out_ref):
    def elu(z):
        return jnp.where(z > 0, z, jnp.exp(jnp.minimum(z, 0.0)) - 1.0)

    # (a) conv2's H-contraction applied first (channel-on-sublane result):
    #     y[o, tau] = sum_h w2[o, h] * xpad[h, tau]      -> (16, 384)
    y = jnp.dot(w2m_ref[...], x_ref[...], preferred_element_type=jnp.float32)

    # (b) conv1's 64-tap temporal filter with BN1/BN2 scales folded into the
    #     per-channel taps:  a2[o, t] = sum_k wk[o,k] * y[o, t+k] + shift2[o].
    #     pltpu.roll(y, WSLAB-k)[:, t] == y[:, t+k]; columns [0, 321) valid,
    #     wrapped columns are bounded garbage never read by the pool matrix.
    wk = wk_ref[...]                                        # (16, 64)
    a2 = y * wk[:, 0:1]
    for k in range(1, K1):
        a2 = a2 + pltpu.roll(y, WSLAB - k, axis=1) * wk[:, k:k + 1]
    e2 = elu(a2 + shift2_ref[...])                          # (16, 384)

    # AvgPool(1,4) + the zero padding Conv3 needs, as ONE matmul:
    # pool1[tau, 8 + tau//4] = 0.25 for tau < 320, 0 otherwise, so the result
    # is (16, 128) = [8 zero cols | 80 pooled cols | 40 zero cols].
    padded = jnp.dot(e2, pool1_ref[...], preferred_element_type=jnp.float32)

    # Conv3 depthwise (1x16, pad 8): 16 lane-rolled MACs on the (16,128) slab.
    w3dk = w3dk_ref[...]                                    # (16, 16)
    c3 = padded * w3dk[:, 0:1]
    for k in range(1, K3):
        c3 = c3 + pltpu.roll(padded, CSLAB - k, axis=1) * w3dk[:, k:k + 1]

    # pointwise 1x1 conv + BN3 (folded) + ELU: (16,16) @ (16,128).
    e3 = elu(jnp.dot(w3pt_ref[...], c3, preferred_element_type=jnp.float32)
             + shift3_ref[...])                             # (16,128); [0,81) valid

    # AvgPool(1,8) folded into the classifier weight (zero rows for t >= 80):
    #   g[c', c*3+cls] = sum_{t<80} e3[c', t] * wlin[cls, c*10 + t//8] / 8
    g = jnp.dot(e3, wcls_ref[...], preferred_element_type=jnp.float32)   # (16,48)
    col = jnp.sum(g * mask_ref[...], axis=0, keepdims=True)              # (1,48)
    out_ref[...] = jnp.dot(col, gcol_ref[...],
                           preferred_element_type=jnp.float32) + bcls_ref[...]


# --------------------- small static matrices (per-sample) --------------------
def _static_matrices():
    pool1 = np.zeros((WSLAB, CSLAB), np.float32)            # pool(1,4) + pad
    for t in range(T2A * 4):
        pool1[t, PAD3 + t // 4] = 0.25
    mask = np.zeros((F2, F2 * N_CLASS), np.float32)         # keep c' == c
    for c in range(F2):
        mask[c, c * N_CLASS:(c + 1) * N_CLASS] = 1.0
    gcol = np.tile(np.eye(N_CLASS, dtype=np.float32), (F2, 1))   # (48, 3)
    return jnp.asarray(pool1), jnp.asarray(mask), jnp.asarray(gcol)


# ------------------------------ JAX wrapper ----------------------------------
def eegnet_25s_forward(x, params):
    """x: (N, 1, 20, 320) float32 NCHW.  Returns (N, 3) float32 logits."""
    (w1, g1, b1, m1, v1,
     w2, g2, b2, m2, v2,
     w3d, w3p, g3, b3, m3, v3,
     wlin, blin) = params
    n = x.shape[0]

    # conv1 zero padding done once in the wrapper: (n, 20, 384) ~ 61 KB total.
    xpad = jnp.pad(x[:, 0], ((0, 0), (0, 0), (PAD1, PAD1)))

    # fold conv1 * BN1 * BN2 scale into per-channel temporal taps + shift.
    s1 = g1 / jnp.sqrt(v1 + BN_EPS)
    d1 = b1 - s1 * m1
    s2 = g2 / jnp.sqrt(v2 + BN_EPS)
    w1m = w1[:, 0, 0, :]                                    # (8, 64)
    w2m = w2[:, 0, :, 0]                                    # (16, 20)
    grp = jnp.arange(F2C2) // D_MULT                        # out ch -> group
    wk = (s2 * s1[grp])[:, None] * w1m[grp]                 # (16, 64)
    shift2 = (s2 * (d1[grp] * jnp.sum(w2m, axis=1) - m2) + b2)[:, None]

    # Conv3 parameters (depthwise taps; pointwise * BN3 scale; BN3 shift).
    s3 = g3 / jnp.sqrt(v3 + BN_EPS)
    w3dk = w3d[:, 0, 0, :]                                  # (16, 16)
    w3pt = w3p[:, :, 0, 0] * s3[:, None]                    # (16, 16) [out, in]
    shift3 = (b3 - s3 * m3)[:, None]                        # (16, 1)

    # classifier weight with AvgPool(1,8) folded in:
    #   wcls[t, c*3+cls] = wlin[cls, c*10 + t//8] / 8 for t < 80, else 0.
    wlin3 = wlin.reshape(N_CLASS, F2, T3P)                  # [cls, c, p]
    wl_cp = jnp.transpose(wlin3, (1, 2, 0))                 # (16, 10, 3)
    wcls80 = jnp.transpose(jnp.repeat(wl_cp, 8, axis=1) / 8.0, (1, 0, 2))
    wcls80 = wcls80.reshape(T3P * 8, F2 * N_CLASS)          # (80, 48)
    wcls = jnp.concatenate(
        [wcls80, jnp.zeros((CSLAB - T3P * 8, F2 * N_CLASS), jnp.float32)],
        axis=0)                                             # (128, 48)

    pool1, maskm, gcol = _static_matrices()
    bcls = blin.reshape(1, N_CLASS)

    consts = (w2m, wk, shift2, pool1, w3dk, w3pt, shift3,
              wcls, maskm, gcol, bcls)
    const_specs = [pl.BlockSpec(c.shape, lambda i, nd=c.ndim: (0,) * nd)
                   for c in consts]

    flops = 2 * n * (F2C2 * H_EEG * WSLAB            # H-contraction matmul
                     + F2C2 * K1 * WSLAB             # temporal taps (VPU)
                     + F2C2 * WSLAB * CSLAB          # pool(1,4)+pad matmul
                     + F2C2 * K3 * CSLAB             # depthwise conv3 (VPU)
                     + F2 * F2C2 * CSLAB             # pointwise conv3
                     + F2 * CSLAB * F2 * N_CLASS)    # classifier
    cost = pl.CostEstimate(
        flops=int(flops),
        transcendentals=int(n * (F2C2 * WSLAB + F2 * CSLAB)),
        bytes_accessed=int(4 * (int(xpad.size)
                                + sum(int(c.size) for c in consts)
                                + n * N_CLASS)))

    out = pl.pallas_call(
        _eegnet_kernel,
        out_shape=jax.ShapeDtypeStruct((n, 1, N_CLASS), jnp.float32),
        grid_spec=pltpu.PrefetchScalarGridSpec(
            num_scalar_prefetch=0,
            grid=(n,),                                     # one sample / step
            in_specs=[pl.BlockSpec((None, H_EEG, WSLAB),
                                   lambda i: (i, 0, 0))] + const_specs,
            out_specs=pl.BlockSpec((None, 1, N_CLASS), lambda i: (i, 0, 0)),
        ),
        compiler_params=pltpu.CompilerParams(
            dimension_semantics=("parallel",),
            vmem_limit_bytes=16 * 1024 * 1024),
        cost_estimate=cost,
    )(xpad, *consts)
    return out.reshape(n, N_CLASS)


# --------------------------- pure-JAX reference ------------------------------
def _reference(x, params):
    (w1, g1, b1, m1, v1,
     w2, g2, b2, m2, v2,
     w3d, w3p, g3, b3, m3, v3,
     wlin, blin) = params
    dn = ('NCHW', 'OIHW', 'NCHW')

    def bn(z, g, b, m, v):
        s = g / jnp.sqrt(v + BN_EPS)
        return z * s[None, :, None, None] + (b - m * s)[None, :, None, None]

    def elu(z):
        return jnp.where(z > 0, z, jnp.expm1(z))

    nb = x.shape[0]
    c1 = lax.conv_general_dilated(x, w1, (1, 1), ((0, 0), (PAD1, PAD1)),
                                  dimension_numbers=dn)
    h1 = bn(c1, g1, b1, m1, v1)                                   # (N,8,20,321)
    c2 = lax.conv_general_dilated(h1, w2, (1, 1), ((0, 0), (0, 0)),
                                  dimension_numbers=dn, feature_group_count=F1)
    h2 = elu(bn(c2, g2, b2, m2, v2))                              # (N,16,1,321)
    p2 = h2[..., :T2A * 4].reshape(nb, F2C2, 1, T2A, 4).mean(-1)  # (N,16,1,80)
    c3d = lax.conv_general_dilated(p2, w3d, (1, 1), ((0, 0), (PAD3, PAD3)),
                                   dimension_numbers=dn,
                                   feature_group_count=F2C2)
    c3 = lax.conv_general_dilated(c3d, w3p, (1, 1), ((0, 0), (0, 0)),
                                  dimension_numbers=dn)
    h3 = elu(bn(c3, g3, b3, m3, v3))                              # (N,16,1,81)
    p3 = h3[..., :T3P * 8].reshape(nb, F2, 1, T3P, 8).mean(-1)    # (N,16,1,10)
    flat = p3.reshape(nb, FEAT)
    return flat @ wlin.T + blin[None, :]


# --------------------------------- main --------------------------------------
if __name__ == "__main__":
    key = jax.random.PRNGKey(0)
    ks = jax.random.split(key, 19)

    x = jax.random.normal(ks[0], (N_BATCH, 1, H_EEG, W_TIME), jnp.float32)

    # deterministic synthetic parameters (shapes match the nn.Module)
    w1 = jax.random.normal(ks[1], (F1, 1, 1, K1), jnp.float32) / np.sqrt(K1)
    g1 = 0.5 + jax.random.uniform(ks[2], (F1,), jnp.float32)
    b1 = 0.1 * jax.random.normal(ks[3], (F1,), jnp.float32)
    m1 = 0.1 * jax.random.normal(ks[4], (F1,), jnp.float32)
    v1 = 0.5 + jax.random.uniform(ks[5], (F1,), jnp.float32)

    w2 = jax.random.normal(ks[6], (F2C2, 1, H_EEG, 1), jnp.float32) \
        / np.sqrt(H_EEG)
    g2 = 0.5 + jax.random.uniform(ks[7], (F2C2,), jnp.float32)
    b2 = 0.1 * jax.random.normal(ks[8], (F2C2,), jnp.float32)
    m2 = 0.1 * jax.random.normal(ks[9], (F2C2,), jnp.float32)
    v2 = 0.5 + jax.random.uniform(ks[10], (F2C2,), jnp.float32)

    w3d = jax.random.normal(ks[11], (F2C2, 1, 1, K3), jnp.float32) / np.sqrt(K3)
    w3p = jax.random.normal(ks[12], (F2, F2C2, 1, 1), jnp.float32) \
        / np.sqrt(F2C2)
    g3 = 0.5 + jax.random.uniform(ks[13], (F2,), jnp.float32)
    b3 = 0.1 * jax.random.normal(ks[14], (F2,), jnp.float32)
    m3 = 0.1 * jax.random.normal(ks[15], (F2,), jnp.float32)
    v3 = 0.5 + jax.random.uniform(ks[16], (F2,), jnp.float32)

    wlin = jax.random.normal(ks[17], (N_CLASS, FEAT), jnp.float32) \
        / np.sqrt(FEAT)
    blin = 0.1 * jax.random.normal(ks[18], (N_CLASS,), jnp.float32)

    params = (w1, g1, b1, m1, v1,
              w2, g2, b2, m2, v2,
              w3d, w3p, g3, b3, m3, v3,
              wlin, blin)

    out = jax.block_until_ready(jax.jit(eegnet_25s_forward)(x, params))
    ref = jax.block_until_ready(_reference(x, params))

    assert out.shape == (N_BATCH, N_CLASS)
    np.testing.assert_allclose(np.asarray(out), np.asarray(ref),
                               rtol=2e-2, atol=2e-2)
    print("KERNEL_OK")
</pallas_src>

<mosaic_0001>
module attributes {stable_mosaic.version = 11 : i64} {
  func.func @_eegnet_kernel(%arg0: i32, %arg1: memref<1x20x384xf32, #tpu.memory_space<vmem>>, %arg2: memref<16x20xf32, #tpu.memory_space<vmem>>, %arg3: memref<16x64xf32, #tpu.memory_space<vmem>>, %arg4: memref<16x1xf32, #tpu.memory_space<vmem>>, %arg5: memref<384x128xf32, #tpu.memory_space<vmem>>, %arg6: memref<16x16xf32, #tpu.memory_space<vmem>>, %arg7: memref<16x16xf32, #tpu.memory_space<vmem>>, %arg8: memref<16x1xf32, #tpu.memory_space<vmem>>, %arg9: memref<128x48xf32, #tpu.memory_space<vmem>>, %arg10: memref<16x48xf32, #tpu.memory_space<vmem>>, %arg11: memref<48x3xf32, #tpu.memory_space<vmem>>, %arg12: memref<1x3xf32, #tpu.memory_space<vmem>>, %arg13: memref<1x1x3xf32, #tpu.memory_space<vmem>>) attributes {dimension_semantics = [#tpu.dimension_semantics<parallel>], iteration_bounds = array<i64: 2>, scalar_prefetch = 0 : i64, scratch_operands = 0 : i64, tpu.core_type = #tpu.core_type<tc>, window_params = [{transform_indices = @transform_0, window_bounds = array<i64: 1, 20, 384>}, {pipeline_mode = #tpu.pipeline_mode<synchronous>, transform_indices = @transform_1, window_bounds = array<i64: 16, 20>}, {pipeline_mode = #tpu.pipeline_mode<synchronous>, transform_indices = @transform_2, window_bounds = array<i64: 16, 64>}, {pipeline_mode = #tpu.pipeline_mode<synchronous>, transform_indices = @transform_3, window_bounds = array<i64: 16, 1>}, {pipeline_mode = #tpu.pipeline_mode<synchronous>, transform_indices = @transform_4, window_bounds = array<i64: 384, 128>}, {pipeline_mode = #tpu.pipeline_mode<synchronous>, transform_indices = @transform_5, window_bounds = array<i64: 16, 16>}, {pipeline_mode = #tpu.pipeline_mode<synchronous>, transform_indices = @transform_6, window_bounds = array<i64: 16, 16>}, {pipeline_mode = #tpu.pipeline_mode<synchronous>, transform_indices = @transform_7, window_bounds = array<i64: 16, 1>}, {pipeline_mode = #tpu.pipeline_mode<synchronous>, transform_indices = @transform_8, window_bounds = array<i64: 128, 48>}, {pipeline_mode = #tpu.pipeline_mode<synchronous>, transform_indices = @transform_9, window_bounds = array<i64: 16, 48>}, {pipeline_mode = #tpu.pipeline_mode<synchronous>, transform_indices = @transform_10, window_bounds = array<i64: 48, 3>}, {pipeline_mode = #tpu.pipeline_mode<synchronous>, transform_indices = @transform_11, window_bounds = array<i64: 1, 3>}, {transform_indices = @transform_12, window_bounds = array<i64: 1, 1, 3>}]} {
    %c0 = arith.constant 0 : index
    %c0_0 = arith.constant 0 : index
    %0 = vector.load %arg2[%c0, %c0_0] : memref<16x20xf32, #tpu.memory_space<vmem>>, vector<16x20xf32>
    %c0_1 = arith.constant 0 : index
    %c0_2 = arith.constant 0 : index
    %c0_3 = arith.constant 0 : index
    %1 = vector.load %arg1[%c0_1, %c0_2, %c0_3] : memref<1x20x384xf32, #tpu.memory_space<vmem>>, vector<1x20x384xf32>
    %2 = vector.shape_cast %1 : vector<1x20x384xf32> to vector<20x384xf32>
    %cst = arith.constant dense<0.000000e+00> : vector<16x384xf32>
    %3 = tpu.matmul %0, %2, %cst {dimension_numbers = #tpu.dot_dimension_numbers<[1], [0], [0], [1], [0, 0, 1, 1], [], []>} : vector<16x20xf32>, vector<20x384xf32>, vector<16x384xf32> -> vector<16x384xf32>
    %c0_4 = arith.constant 0 : index
    %c0_5 = arith.constant 0 : index
    %4 = vector.load %arg3[%c0_4, %c0_5] : memref<16x64xf32, #tpu.memory_space<vmem>>, vector<16x64xf32>
    %5 = vector.extract_strided_slice %4 {offsets = [0, 0], sizes = [16, 1], strides = [1, 1]} : vector<16x64xf32> to vector<16x1xf32>
    %6 = vector.broadcast %5 : vector<16x1xf32> to vector<16x384xf32>
    %7 = arith.mulf %3, %6 : vector<16x384xf32>
    %c383_i32 = arith.constant 383 : i32
    %8 = tpu.dynamic_rotate %3 by %c383_i32 dim 1 : vector<16x384xf32>, i32 -> vector<16x384xf32>
    %9 = vector.extract_strided_slice %4 {offsets = [0, 1], sizes = [16, 1], strides = [1, 1]} : vector<16x64xf32> to vector<16x1xf32>
    %10 = vector.broadcast %9 : vector<16x1xf32> to vector<16x384xf32>
    %11 = arith.mulf %8, %10 : vector<16x384xf32>
    %12 = arith.addf %7, %11 : vector<16x384xf32>
    %c382_i32 = arith.constant 382 : i32
    %13 = tpu.dynamic_rotate %3 by %c382_i32 dim 1 : vector<16x384xf32>, i32 -> vector<16x384xf32>
    %14 = vector.extract_strided_slice %4 {offsets = [0, 2], sizes = [16, 1], strides = [1, 1]} : vector<16x64xf32> to vector<16x1xf32>
    %15 = vector.broadcast %14 : vector<16x1xf32> to vector<16x384xf32>
    %16 = arith.mulf %13, %15 : vector<16x384xf32>
    %17 = arith.addf %12, %16 : vector<16x384xf32>
    %c381_i32 = arith.constant 381 : i32
    %18 = tpu.dynamic_rotate %3 by %c381_i32 dim 1 : vector<16x384xf32>, i32 -> vector<16x384xf32>
    %19 = vector.extract_strided_slice %4 {offsets = [0, 3], sizes = [16, 1], strides = [1, 1]} : vector<16x64xf32> to vector<16x1xf32>
    %20 = vector.broadcast %19 : vector<16x1xf32> to vector<16x384xf32>
    %21 = arith.mulf %18, %20 : vector<16x384xf32>
    %22 = arith.addf %17, %21 : vector<16x384xf32>
    %c380_i32 = arith.constant 380 : i32
    %23 = tpu.dynamic_rotate %3 by %c380_i32 dim 1 : vector<16x384xf32>, i32 -> vector<16x384xf32>
    %24 = vector.extract_strided_slice %4 {offsets = [0, 4], sizes = [16, 1], strides = [1, 1]} : vector<16x64xf32> to vector<16x1xf32>
    %25 = vector.broadcast %24 : vector<16x1xf32> to vector<16x384xf32>
    %26 = arith.mulf %23, %25 : vector<16x384xf32>
    %27 = arith.addf %22, %26 : vector<16x384xf32>
    %c379_i32 = arith.constant 379 : i32
    %28 = tpu.dynamic_rotate %3 by %c379_i32 dim 1 : vector<16x384xf32>, i32 -> vector<16x384xf32>
    %29 = vector.extract_strided_slice %4 {offsets = [0, 5], sizes = [16, 1], strides = [1, 1]} : vector<16x64xf32> to vector<16x1xf32>
    %30 = vector.broadcast %29 : vector<16x1xf32> to vector<16x384xf32>
    %31 = arith.mulf %28, %30 : vector<16x384xf32>
    %32 = arith.addf %27, %31 : vector<16x384xf32>
    %c378_i32 = arith.constant 378 : i32
    %33 = tpu.dynamic_rotate %3 by %c378_i32 dim 1 : vector<16x384xf32>, i32 -> vector<16x384xf32>
    %34 = vector.extract_strided_slice %4 {offsets = [0, 6], sizes = [16, 1], strides = [1, 1]} : vector<16x64xf32> to vector<16x1xf32>
    %35 = vector.broadcast %34 : vector<16x1xf32> to vector<16x384xf32>
    %36 = arith.mulf %33, %35 : vector<16x384xf32>
    %37 = arith.addf %32, %36 : vector<16x384xf32>
    %c377_i32 = arith.constant 377 : i32
    %38 = tpu.dynamic_rotate %3 by %c377_i32 dim 1 : vector<16x384xf32>, i32 -> vector<16x384xf32>
    %39 = vector.extract_strided_slice %4 {offsets = [0, 7], sizes = [16, 1], strides = [1, 1]} : vector<16x64xf32> to vector<16x1xf32>
    %40 = vector.broadcast %39 : vector<16x1xf32> to vector<16x384xf32>
    %41 = arith.mulf %38, %40 : vector<16x384xf32>
    %42 = arith.addf %37, %41 : vector<16x384xf32>
    %c376_i32 = arith.constant 376 : i32
    %43 = tpu.dynamic_rotate %3 by %c376_i32 dim 1 : vector<16x384xf32>, i32 -> vector<16x384xf32>
    %44 = vector.extract_strided_slice %4 {offsets = [0, 8], sizes = [16, 1], strides = [1, 1]} : vector<16x64xf32> to vector<16x1xf32>
    %45 = vector.broadcast %44 : vector<16x1xf32> to vector<16x384xf32>
    %46 = arith.mulf %43, %45 : vector<16x384xf32>
    %47 = arith.addf %42, %46 : vector<16x384xf32>
    %c375_i32 = arith.constant 375 : i32
    %48 = tpu.dynamic_rotate %3 by %c375_i32 dim 1 : vector<16x384xf32>, i32 -> vector<16x384xf32>
    %49 = vector.extract_strided_slice %4 {offsets = [0, 9], sizes = [16, 1], strides = [1, 1]} : vector<16x64xf32> to vector<16x1xf32>
    %50 = vector.broadcast %49 : vector<16x1xf32> to vector<16x384xf32>
    %51 = arith.mulf %48, %50 : vector<16x384xf32>
    %52 = arith.addf %47, %51 : vector<16x384xf32>
    %c374_i32 = arith.constant 374 : i32
    %53 = tpu.dynamic_rotate %3 by %c374_i32 dim 1 : vector<16x384xf32>, i32 -> vector<16x384xf32>
    %54 = vector.extract_strided_slice %4 {offsets = [0, 10], sizes = [16, 1], strides = [1, 1]} : vector<16x64xf32> to vector<16x1xf32>
    %55 = vector.broadcast %54 : vector<16x1xf32> to vector<16x384xf32>
    %56 = arith.mulf %53, %55 : vector<16x384xf32>
    %57 = arith.addf %52, %56 : vector<16x384xf32>
    %c373_i32 = arith.constant 373 : i32
    %58 = tpu.dynamic_rotate %3 by %c373_i32 dim 1 : vector<16x384xf32>, i32 -> vector<16x384xf32>
    %59 = vector.extract_strided_slice %4 {offsets = [0, 11], sizes = [16, 1], strides = [1, 1]} : vector<16x64xf32> to vector<16x1xf32>
    %60 = vector.broadcast %59 : vector<16x1xf32> to vector<16x384xf32>
    %61 = arith.mulf %58, %60 : vector<16x384xf32>
    %62 = arith.addf %57, %61 : vector<16x384xf32>
    %c372_i32 = arith.constant 372 : i32
    %63 = tpu.dynamic_rotate %3 by %c372_i32 dim 1 : vector<16x384xf32>, i32 -> vector<16x384xf32>
    %64 = vector.extract_strided_slice %4 {offsets = [0, 12], sizes = [16, 1], strides = [1, 1]} : vector<16x64xf32> to vector<16x1xf32>
    %65 = vector.broadcast %64 : vector<16x1xf32> to vector<16x384xf32>
    %66 = arith.mulf %63, %65 : vector<16x384xf32>
    %67 = arith.addf %62, %66 : vector<16x384xf32>
    %c371_i32 = arith.constant 371 : i32
    %68 = tpu.dynamic_rotate %3 by %c371_i32 dim 1 : vector<16x384xf32>, i32 -> vector<16x384xf32>
    %69 = vector.extract_strided_slice %4 {offsets = [0, 13], sizes = [16, 1], strides = [1, 1]} : vector<16x64xf32> to vector<16x1xf32>
    %70 = vector.broadcast %69 : vector<16x1xf32> to vector<16x384xf32>
    %71 = arith.mulf %68, %70 : vector<16x384xf32>
    %72 = arith.addf %67, %71 : vector<16x384xf32>
    %c370_i32 = arith.constant 370 : i32
    %73 = tpu.dynamic_rotate %3 by %c370_i32 dim 1 : vector<16x384xf32>, i32 -> vector<16x384xf32>
    %74 = vector.extract_strided_slice %4 {offsets = [0, 14], sizes = [16, 1], strides = [1, 1]} : vector<16x64xf32> to vector<16x1xf32>
    %75 = vector.broadcast %74 : vector<16x1xf32> to vector<16x384xf32>
    %76 = arith.mulf %73, %75 : vector<16x384xf32>
    %77 = arith.addf %72, %76 : vector<16x384xf32>
    %c369_i32 = arith.constant 369 : i32
    %78 = tpu.dynamic_rotate %3 by %c369_i32 dim 1 : vector<16x384xf32>, i32 -> vector<16x384xf32>
    %79 = vector.extract_strided_slice %4 {offsets = [0, 15], sizes = [16, 1], strides = [1, 1]} : vector<16x64xf32> to vector<16x1xf32>
    %80 = vector.broadcast %79 : vector<16x1xf32> to vector<16x384xf32>
    %81 = arith.mulf %78, %80 : vector<16x384xf32>
    %82 = arith.addf %77, %81 : vector<16x384xf32>
    %c368_i32 = arith.constant 368 : i32
    %83 = tpu.dynamic_rotate %3 by %c368_i32 dim 1 : vector<16x384xf32>, i32 -> vector<16x384xf32>
    %84 = vector.extract_strided_slice %4 {offsets = [0, 16], sizes = [16, 1], strides = [1, 1]} : vector<16x64xf32> to vector<16x1xf32>
    %85 = vector.broadcast %84 : vector<16x1xf32> to vector<16x384xf32>
    %86 = arith.mulf %83, %85 : vector<16x384xf32>
    %87 = arith.addf %82, %86 : vector<16x384xf32>
    %c367_i32 = arith.constant 367 : i32
    %88 = tpu.dynamic_rotate %3 by %c367_i32 dim 1 : vector<16x384xf32>, i32 -> vector<16x384xf32>
    %89 = vector.extract_strided_slice %4 {offsets = [0, 17], sizes = [16, 1], strides = [1, 1]} : vector<16x64xf32> to vector<16x1xf32>
    %90 = vector.broadcast %89 : vector<16x1xf32> to vector<16x384xf32>
    %91 = arith.mulf %88, %90 : vector<16x384xf32>
    %92 = arith.addf %87, %91 : vector<16x384xf32>
    %c366_i32 = arith.constant 366 : i32
    %93 = tpu.dynamic_rotate %3 by %c366_i32 dim 1 : vector<16x384xf32>, i32 -> vector<16x384xf32>
    %94 = vector.extract_strided_slice %4 {offsets = [0, 18], sizes = [16, 1], strides = [1, 1]} : vector<16x64xf32> to vector<16x1xf32>
    %95 = vector.broadcast %94 : vector<16x1xf32> to vector<16x384xf32>
    %96 = arith.mulf %93, %95 : vector<16x384xf32>
    %97 = arith.addf %92, %96 : vector<16x384xf32>
    %c365_i32 = arith.constant 365 : i32
    %98 = tpu.dynamic_rotate %3 by %c365_i32 dim 1 : vector<16x384xf32>, i32 -> vector<16x384xf32>
    %99 = vector.extract_strided_slice %4 {offsets = [0, 19], sizes = [16, 1], strides = [1, 1]} : vector<16x64xf32> to vector<16x1xf32>
    %100 = vector.broadcast %99 : vector<16x1xf32> to vector<16x384xf32>
    %101 = arith.mulf %98, %100 : vector<16x384xf32>
    %102 = arith.addf %97, %101 : vector<16x384xf32>
    %c364_i32 = arith.constant 364 : i32
    %103 = tpu.dynamic_rotate %3 by %c364_i32 dim 1 : vector<16x384xf32>, i32 -> vector<16x384xf32>
    %104 = vector.extract_strided_slice %4 {offsets = [0, 20], sizes = [16, 1], strides = [1, 1]} : vector<16x64xf32> to vector<16x1xf32>
    %105 = vector.broadcast %104 : vector<16x1xf32> to vector<16x384xf32>
    %106 = arith.mulf %103, %105 : vector<16x384xf32>
    %107 = arith.addf %102, %106 : vector<16x384xf32>
    %c363_i32 = arith.constant 363 : i32
    %108 = tpu.dynamic_rotate %3 by %c363_i32 dim 1 : vector<16x384xf32>, i32 -> vector<16x384xf32>
    %109 = vector.extract_strided_slice %4 {offsets = [0, 21], sizes = [16, 1], strides = [1, 1]} : vector<16x64xf32> to vector<16x1xf32>
    %110 = vector.broadcast %109 : vector<16x1xf32> to vector<16x384xf32>
    %111 = arith.mulf %108, %110 : vector<16x384xf32>
    %112 = arith.addf %107, %111 : vector<16x384xf32>
    %c362_i32 = arith.constant 362 : i32
    %113 = tpu.dynamic_rotate %3 by %c362_i32 dim 1 : vector<16x384xf32>, i32 -> vector<16x384xf32>
    %114 = vector.extract_strided_slice %4 {offsets = [0, 22], sizes = [16, 1], strides = [1, 1]} : vector<16x64xf32> to vector<16x1xf32>
    %115 = vector.broadcast %114 : vector<16x1xf32> to vector<16x384xf32>
    %116 = arith.mulf %113, %115 : vector<16x384xf32>
    %117 = arith.addf %112, %116 : vector<16x384xf32>
    %c361_i32 = arith.constant 361 : i32
    %118 = tpu.dynamic_rotate %3 by %c361_i32 dim 1 : vector<16x384xf32>, i32 -> vector<16x384xf32>
    %119 = vector.extract_strided_slice %4 {offsets = [0, 23], sizes = [16, 1], strides = [1, 1]} : vector<16x64xf32> to vector<16x1xf32>
    %120 = vector.broadcast %119 : vector<16x1xf32> to vector<16x384xf32>
    %121 = arith.mulf %118, %120 : vector<16x384xf32>
    %122 = arith.addf %117, %121 : vector<16x384xf32>
    %c360_i32 = arith.constant 360 : i32
    %123 = tpu.dynamic_rotate %3 by %c360_i32 dim 1 : vector<16x384xf32>, i32 -> vector<16x384xf32>
    %124 = vector.extract_strided_slice %4 {offsets = [0, 24], sizes = [16, 1], strides = [1, 1]} : vector<16x64xf32> to vector<16x1xf32>
    %125 = vector.broadcast %124 : vector<16x1xf32> to vector<16x384xf32>
    %126 = arith.mulf %123, %125 : vector<16x384xf32>
    %127 = arith.addf %122, %126 : vector<16x384xf32>
    %c359_i32 = arith.constant 359 : i32
    %128 = tpu.dynamic_rotate %3 by %c359_i32 dim 1 : vector<16x384xf32>, i32 -> vector<16x384xf32>
    %129 = vector.extract_strided_slice %4 {offsets = [0, 25], sizes = [16, 1], strides = [1, 1]} : vector<16x64xf32> to vector<16x1xf32>
    %130 = vector.broadcast %129 : vector<16x1xf32> to vector<16x384xf32>
    %131 = arith.mulf %128, %130 : vector<16x384xf32>
    %132 = arith.addf %127, %131 : vector<16x384xf32>
    %c358_i32 = arith.constant 358 : i32
    %133 = tpu.dynamic_rotate %3 by %c358_i32 dim 1 : vector<16x384xf32>, i32 -> vector<16x384xf32>
    %134 = vector.extract_strided_slice %4 {offsets = [0, 26], sizes = [16, 1], strides = [1, 1]} : vector<16x64xf32> to vector<16x1xf32>
    %135 = vector.broadcast %134 : vector<16x1xf32> to vector<16x384xf32>
    %136 = arith.mulf %133, %135 : vector<16x384xf32>
    %137 = arith.addf %132, %136 : vector<16x384xf32>
    %c357_i32 = arith.constant 357 : i32
    %138 = tpu.dynamic_rotate %3 by %c357_i32 dim 1 : vector<16x384xf32>, i32 -> vector<16x384xf32>
    %139 = vector.extract_strided_slice %4 {offsets = [0, 27], sizes = [16, 1], strides = [1, 1]} : vector<16x64xf32> to vector<16x1xf32>
    %140 = vector.broadcast %139 : vector<16x1xf32> to vector<16x384xf32>
    %141 = arith.mulf %138, %140 : vector<16x384xf32>
    %142 = arith.addf %137, %141 : vector<16x384xf32>
    %c356_i32 = arith.constant 356 : i32
    %143 = tpu.dynamic_rotate %3 by %c356_i32 dim 1 : vector<16x384xf32>, i32 -> vector<16x384xf32>
    %144 = vector.extract_strided_slice %4 {offsets = [0, 28], sizes = [16, 1], strides = [1, 1]} : vector<16x64xf32> to vector<16x1xf32>
    %145 = vector.broadcast %144 : vector<16x1xf32> to vector<16x384xf32>
    %146 = arith.mulf %143, %145 : vector<16x384xf32>
    %147 = arith.addf %142, %146 : vector<16x384xf32>
    %c355_i32 = arith.constant 355 : i32
    %148 = tpu.dynamic_rotate %3 by %c355_i32 dim 1 : vector<16x384xf32>, i32 -> vector<16x384xf32>
    %149 = vector.extract_strided_slice %4 {offsets = [0, 29], sizes = [16, 1], strides = [1, 1]} : vector<16x64xf32> to vector<16x1xf32>
    %150 = vector.broadcast %149 : vector<16x1xf32> to vector<16x384xf32>
    %151 = arith.mulf %148, %150 : vector<16x384xf32>
    %152 = arith.addf %147, %151 : vector<16x384xf32>
    %c354_i32 = arith.constant 354 : i32
    %153 = tpu.dynamic_rotate %3 by %c354_i32 dim 1 : vector<16x384xf32>, i32 -> vector<16x384xf32>
    %154 = vector.extract_strided_slice %4 {offsets = [0, 30], sizes = [16, 1], strides = [1, 1]} : vector<16x64xf32> to vector<16x1xf32>
    %155 = vector.broadcast %154 : vector<16x1xf32> to vector<16x384xf32>
    %156 = arith.mulf %153, %155 : vector<16x384xf32>
    %157 = arith.addf %152, %156 : vector<16x384xf32>
    %c353_i32 = arith.constant 353 : i32
    %158 = tpu.dynamic_rotate %3 by %c353_i32 dim 1 : vector<16x384xf32>, i32 -> vector<16x384xf32>
    %159 = vector.extract_strided_slice %4 {offsets = [0, 31], sizes = [16, 1], strides = [1, 1]} : vector<16x64xf32> to vector<16x1xf32>
    %160 = vector.broadcast %159 : vector<16x1xf32> to vector<16x384xf32>
    %161 = arith.mulf %158, %160 : vector<16x384xf32>
    %162 = arith.addf %157, %161 : vector<16x384xf32>
    %c352_i32 = arith.constant 352 : i32
    %163 = tpu.dynamic_rotate %3 by %c352_i32 dim 1 : vector<16x384xf32>, i32 -> vector<16x384xf32>
    %164 = vector.extract_strided_slice %4 {offsets = [0, 32], sizes = [16, 1], strides = [1, 1]} : vector<16x64xf32> to vector<16x1xf32>
    %165 = vector.broadcast %164 : vector<16x1xf32> to vector<16x384xf32>
    %166 = arith.mulf %163, %165 : vector<16x384xf32>
    %167 = arith.addf %162, %166 : vector<16x384xf32>
    %c351_i32 = arith.constant 351 : i32
    %168 = tpu.dynamic_rotate %3 by %c351_i32 dim 1 : vector<16x384xf32>, i32 -> vector<16x384xf32>
    %169 = vector.extract_strided_slice %4 {offsets = [0, 33], sizes = [16, 1], strides = [1, 1]} : vector<16x64xf32> to vector<16x1xf32>
    %170 = vector.broadcast %169 : vector<16x1xf32> to vector<16x384xf32>
    %171 = arith.mulf %168, %170 : vector<16x384xf32>
    %172 = arith.addf %167, %171 : vector<16x384xf32>
    %c350_i32 = arith.constant 350 : i32
    %173 = tpu.dynamic_rotate %3 by %c350_i32 dim 1 : vector<16x384xf32>, i32 -> vector<16x384xf32>
    %174 = vector.extract_strided_slice %4 {offsets = [0, 34], sizes = [16, 1], strides = [1, 1]} : vector<16x64xf32> to vector<16x1xf32>
    %175 = vector.broadcast %174 : vector<16x1xf32> to vector<16x384xf32>
    %176 = arith.mulf %173, %175 : vector<16x384xf32>
    %177 = arith.addf %172, %176 : vector<16x384xf32>
    %c349_i32 = arith.constant 349 : i32
    %178 = tpu.dynamic_rotate %3 by %c349_i32 dim 1 : vector<16x384xf32>, i32 -> vector<16x384xf32>
    %179 = vector.extract_strided_slice %4 {offsets = [0, 35], sizes = [16, 1], strides = [1, 1]} : vector<16x64xf32> to vector<16x1xf32>
    %180 = vector.broadcast %179 : vector<16x1xf32> to vector<16x384xf32>
    %181 = arith.mulf %178, %180 : vector<16x384xf32>
    %182 = arith.addf %177, %181 : vector<16x384xf32>
    %c348_i32 = arith.constant 348 : i32
    %183 = tpu.dynamic_rotate %3 by %c348_i32 dim 1 : vector<16x384xf32>, i32 -> vector<16x384xf32>
    %184 = vector.extract_strided_slice %4 {offsets = [0, 36], sizes = [16, 1], strides = [1, 1]} : vector<16x64xf32> to vector<16x1xf32>
    %185 = vector.broadcast %184 : vector<16x1xf32> to vector<16x384xf32>
    %186 = arith.mulf %183, %185 : vector<16x384xf32>
    %187 = arith.addf %182, %186 : vector<16x384xf32>
    %c347_i32 = arith.constant 347 : i32
    %188 = tpu.dynamic_rotate %3 by %c347_i32 dim 1 : vector<16x384xf32>, i32 -> vector<16x384xf32>
    %189 = vector.extract_strided_slice %4 {offsets = [0, 37], sizes = [16, 1], strides = [1, 1]} : vector<16x64xf32> to vector<16x1xf32>
    %190 = vector.broadcast %189 : vector<16x1xf32> to vector<16x384xf32>
    %191 = arith.mulf %188, %190 : vector<16x384xf32>
    %192 = arith.addf %187, %191 : vector<16x384xf32>
    %c346_i32 = arith.constant 346 : i32
    %193 = tpu.dynamic_rotate %3 by %c346_i32 dim 1 : vector<16x384xf32>, i32 -> vector<16x384xf32>
    %194 = vector.extract_strided_slice %4 {offsets = [0, 38], sizes = [16, 1], strides = [1, 1]} : vector<16x64xf32> to vector<16x1xf32>
    %195 = vector.broadcast %194 : vector<16x1xf32> to vector<16x384xf32>
    %196 = arith.mulf %193, %195 : vector<16x384xf32>
    %197 = arith.addf %192, %196 : vector<16x384xf32>
    %c345_i32 = arith.constant 345 : i32
    %198 = tpu.dynamic_rotate %3 by %c345_i32 dim 1 : vector<16x384xf32>, i32 -> vector<16x384xf32>
    %199 = vector.extract_strided_slice %4 {offsets = [0, 39], sizes = [16, 1], strides = [1, 1]} : vector<16x64xf32> to vector<16x1xf32>
    %200 = vector.broadcast %199 : vector<16x1xf32> to vector<16x384xf32>
    %201 = arith.mulf %198, %200 : vector<16x384xf32>
    %202 = arith.addf %197, %201 : vector<16x384xf32>
    %c344_i32 = arith.constant 344 : i32
    %203 = tpu.dynamic_rotate %3 by %c344_i32 dim 1 : vector<16x384xf32>, i32 -> vector<16x384xf32>
    %204 = vector.extract_strided_slice %4 {offsets = [0, 40], sizes = [16, 1], strides = [1, 1]} : vector<16x64xf32> to vector<16x1xf32>
    %205 = vector.broadcast %204 : vector<16x1xf32> to vector<16x384xf32>
    %206 = arith.mulf %203, %205 : vector<16x384xf32>
    %207 = arith.addf %202, %206 : vector<16x384xf32>
    %c343_i32 = arith.constant 343 : i32
    %208 = tpu.dynamic_rotate %3 by %c343_i32 dim 1 : vector<16x384xf32>, i32 -> vector<16x384xf32>
    %209 = vector.extract_strided_slice %4 {offsets = [0, 41], sizes = [16, 1], strides = [1, 1]} : vector<16x64xf32> to vector<16x1xf32>
    %210 = vector.broadcast %209 : vector<16x1xf32> to vector<16x384xf32>
    %211 = arith.mulf %208, %210 : vector<16x384xf32>
    %212 = arith.addf %207, %211 : vector<16x384xf32>
    %c342_i32 = arith.constant 342 : i32
    %213 = tpu.dynamic_rotate %3 by %c342_i32 dim 1 : vector<16x384xf32>, i32 -> vector<16x384xf32>
    %214 = vector.extract_strided_slice %4 {offsets = [0, 42], sizes = [16, 1], strides = [1, 1]} : vector<16x64xf32> to vector<16x1xf32>
    %215 = vector.broadcast %214 : vector<16x1xf32> to vector<16x384xf32>
    %216 = arith.mulf %213, %215 : vector<16x384xf32>
    %217 = arith.addf %212, %216 : vector<16x384xf32>
    %c341_i32 = arith.constant 341 : i32
    %218 = tpu.dynamic_rotate %3 by %c341_i32 dim 1 : vector<16x384xf32>, i32 -> vector<16x384xf32>
    %219 = vector.extract_strided_slice %4 {offsets = [0, 43], sizes = [16, 1], strides = [1, 1]} : vector<16x64xf32> to vector<16x1xf32>
    %220 = vector.broadcast %219 : vector<16x1xf32> to vector<16x384xf32>
    %221 = arith.mulf %218, %220 : vector<16x384xf32>
    %222 = arith.addf %217, %221 : vector<16x384xf32>
    %c340_i32 = arith.constant 340 : i32
    %223 = tpu.dynamic_rotate %3 by %c340_i32 dim 1 : vector<16x384xf32>, i32 -> vector<16x384xf32>
    %224 = vector.extract_strided_slice %4 {offsets = [0, 44], sizes = [16, 1], strides = [1, 1]} : vector<16x64xf32> to vector<16x1xf32>
    %225 = vector.broadcast %224 : vector<16x1xf32> to vector<16x384xf32>
    %226 = arith.mulf %223, %225 : vector<16x384xf32>
    %227 = arith.addf %222, %226 : vector<16x384xf32>
    %c339_i32 = arith.constant 339 : i32
    %228 = tpu.dynamic_rotate %3 by %c339_i32 dim 1 : vector<16x384xf32>, i32 -> vector<16x384xf32>
    %229 = vector.extract_strided_slice %4 {offsets = [0, 45], sizes = [16, 1], strides = [1, 1]} : vector<16x64xf32> to vector<16x1xf32>
    %230 = vector.broadcast %229 : vector<16x1xf32> to vector<16x384xf32>
    %231 = arith.mulf %228, %230 : vector<16x384xf32>
    %232 = arith.addf %227, %231 : vector<16x384xf32>
    %c338_i32 = arith.constant 338 : i32
    %233 = tpu.dynamic_rotate %3 by %c338_i32 dim 1 : vector<16x384xf32>, i32 -> vector<16x384xf32>
    %234 = vector.extract_strided_slice %4 {offsets = [0, 46], sizes = [16, 1], strides = [1, 1]} : vector<16x64xf32> to vector<16x1xf32>
    %235 = vector.broadcast %234 : vector<16x1xf32> to vector<16x384xf32>
    %236 = arith.mulf %233, %235 : vector<16x384xf32>
    %237 = arith.addf %232, %236 : vector<16x384xf32>
    %c337_i32 = arith.constant 337 : i32
    %238 = tpu.dynamic_rotate %3 by %c337_i32 dim 1 : vector<16x384xf32>, i32 -> vector<16x384xf32>
    %239 = vector.extract_strided_slice %4 {offsets = [0, 47], sizes = [16, 1], strides = [1, 1]} : vector<16x64xf32> to vector<16x1xf32>
    %240 = vector.broadcast %239 : vector<16x1xf32> to vector<16x384xf32>
    %241 = arith.mulf %238, %240 : vector<16x384xf32>
    %242 = arith.addf %237, %241 : vector<16x384xf32>
    %c336_i32 = arith.constant 336 : i32
    %243 = tpu.dynamic_rotate %3 by %c336_i32 dim 1 : vector<16x384xf32>, i32 -> vector<16x384xf32>
    %244 = vector.extract_strided_slice %4 {offsets = [0, 48], sizes = [16, 1], strides = [1, 1]} : vector<16x64xf32> to vector<16x1xf32>
    %245 = vector.broadcast %244 : vector<16x1xf32> to vector<16x384xf32>
    %246 = arith.mulf %243, %245 : vector<16x384xf32>
    %247 = arith.addf %242, %246 : vector<16x384xf32>
    %c335_i32 = arith.constant 335 : i32
    %248 = tpu.dynamic_rotate %3 by %c335_i32 dim 1 : vector<16x384xf32>, i32 -> vector<16x384xf32>
    %249 = vector.extract_strided_slice %4 {offsets = [0, 49], sizes = [16, 1], strides = [1, 1]} : vector<16x64xf32> to vector<16x1xf32>
    %250 = vector.broadcast %249 : vector<16x1xf32> to vector<16x384xf32>
    %251 = arith.mulf %248, %250 : vector<16x384xf32>
    %252 = arith.addf %247, %251 : vector<16x384xf32>
    %c334_i32 = arith.constant 334 : i32
    %253 = tpu.dynamic_rotate %3 by %c334_i32 dim 1 : vector<16x384xf32>, i32 -> vector<16x384xf32>
    %254 = vector.extract_strided_slice %4 {offsets = [0, 50], sizes = [16, 1], strides = [1, 1]} : vector<16x64xf32> to vector<16x1xf32>
    %255 = vector.broadcast %254 : vector<16x1xf32> to vector<16x384xf32>
    %256 = arith.mulf %253, %255 : vector<16x384xf32>
    %257 = arith.addf %252, %256 : vector<16x384xf32>
    %c333_i32 = arith.constant 333 : i32
    %258 = tpu.dynamic_rotate %3 by %c333_i32 dim 1 : vector<16x384xf32>, i32 -> vector<16x384xf32>
    %259 = vector.extract_strided_slice %4 {offsets = [0, 51], sizes = [16, 1], strides = [1, 1]} : vector<16x64xf32> to vector<16x1xf32>
    %260 = vector.broadcast %259 : vector<16x1xf32> to vector<16x384xf32>
    %261 = arith.mulf %258, %260 : vector<16x384xf32>
    %262 = arith.addf %257, %261 : vector<16x384xf32>
    %c332_i32 = arith.constant 332 : i32
    %263 = tpu.dynamic_rotate %3 by %c332_i32 dim 1 : vector<16x384xf32>, i32 -> vector<16x384xf32>
    %264 = vector.extract_strided_slice %4 {offsets = [0, 52], sizes = [16, 1], strides = [1, 1]} : vector<16x64xf32> to vector<16x1xf32>
    %265 = vector.broadcast %264 : vector<16x1xf32> to vector<16x384xf32>
    %266 = arith.mulf %263, %265 : vector<16x384xf32>
    %267 = arith.addf %262, %266 : vector<16x384xf32>
    %c331_i32 = arith.constant 331 : i32
    %268 = tpu.dynamic_rotate %3 by %c331_i32 dim 1 : vector<16x384xf32>, i32 -> vector<16x384xf32>
    %269 = vector.extract_strided_slice %4 {offsets = [0, 53], sizes = [16, 1], strides = [1, 1]} : vector<16x64xf32> to vector<16x1xf32>
    %270 = vector.broadcast %269 : vector<16x1xf32> to vector<16x384xf32>
    %271 = arith.mulf %268, %270 : vector<16x384xf32>
    %272 = arith.addf %267, %271 : vector<16x384xf32>
    %c330_i32 = arith.constant 330 : i32
    %273 = tpu.dynamic_rotate %3 by %c330_i32 dim 1 : vector<16x384xf32>, i32 -> vector<16x384xf32>
    %274 = vector.extract_strided_slice %4 {offsets = [0, 54], sizes = [16, 1], strides = [1, 1]} : vector<16x64xf32> to vector<16x1xf32>
    %275 = vector.broadcast %274 : vector<16x1xf32> to vector<16x384xf32>
    %276 = arith.mulf %273, %275 : vector<16x384xf32>
    %277 = arith.addf %272, %276 : vector<16x384xf32>
    %c329_i32 = arith.constant 329 : i32
    %278 = tpu.dynamic_rotate %3 by %c329_i32 dim 1 : vector<16x384xf32>, i32 -> vector<16x384xf32>
    %279 = vector.extract_strided_slice %4 {offsets = [0, 55], sizes = [16, 1], strides = [1, 1]} : vector<16x64xf32> to vector<16x1xf32>
    %280 = vector.broadcast %279 : vector<16x1xf32> to vector<16x384xf32>
    %281 = arith.mulf %278, %280 : vector<16x384xf32>
    %282 = arith.addf %277, %281 : vector<16x384xf32>
    %c328_i32 = arith.constant 328 : i32
    %283 = tpu.dynamic_rotate %3 by %c328_i32 dim 1 : vector<16x384xf32>, i32 -> vector<16x384xf32>
    %284 = vector.extract_strided_slice %4 {offsets = [0, 56], sizes = [16, 1], strides = [1, 1]} : vector<16x64xf32> to vector<16x1xf32>
    %285 = vector.broadcast %284 : vector<16x1xf32> to vector<16x384xf32>
    %286 = arith.mulf %283, %285 : vector<16x384xf32>
    %287 = arith.addf %282, %286 : vector<16x384xf32>
    %c327_i32 = arith.constant 327 : i32
    %288 = tpu.dynamic_rotate %3 by %c327_i32 dim 1 : vector<16x384xf32>, i32 -> vector<16x384xf32>
    %289 = vector.extract_strided_slice %4 {offsets = [0, 57], sizes = [16, 1], strides = [1, 1]} : vector<16x64xf32> to vector<16x1xf32>
    %290 = vector.broadcast %289 : vector<16x1xf32> to vector<16x384xf32>
    %291 = arith.mulf %288, %290 : vector<16x384xf32>
    %292 = arith.addf %287, %291 : vector<16x384xf32>
    %c326_i32 = arith.constant 326 : i32
    %293 = tpu.dynamic_rotate %3 by %c326_i32 dim 1 : vector<16x384xf32>, i32 -> vector<16x384xf32>
    %294 = vector.extract_strided_slice %4 {offsets = [0, 58], sizes = [16, 1], strides = [1, 1]} : vector<16x64xf32> to vector<16x1xf32>
    %295 = vector.broadcast %294 : vector<16x1xf32> to vector<16x384xf32>
    %296 = arith.mulf %293, %295 : vector<16x384xf32>
    %297 = arith.addf %292, %296 : vector<16x384xf32>
    %c325_i32 = arith.constant 325 : i32
    %298 = tpu.dynamic_rotate %3 by %c325_i32 dim 1 : vector<16x384xf32>, i32 -> vector<16x384xf32>
    %299 = vector.extract_strided_slice %4 {offsets = [0, 59], sizes = [16, 1], strides = [1, 1]} : vector<16x64xf32> to vector<16x1xf32>
    %300 = vector.broadcast %299 : vector<16x1xf32> to vector<16x384xf32>
    %301 = arith.mulf %298, %300 : vector<16x384xf32>
    %302 = arith.addf %297, %301 : vector<16x384xf32>
    %c324_i32 = arith.constant 324 : i32
    %303 = tpu.dynamic_rotate %3 by %c324_i32 dim 1 : vector<16x384xf32>, i32 -> vector<16x384xf32>
    %304 = vector.extract_strided_slice %4 {offsets = [0, 60], sizes = [16, 1], strides = [1, 1]} : vector<16x64xf32> to vector<16x1xf32>
    %305 = vector.broadcast %304 : vector<16x1xf32> to vector<16x384xf32>
    %306 = arith.mulf %303, %305 : vector<16x384xf32>
    %307 = arith.addf %302, %306 : vector<16x384xf32>
    %c323_i32 = arith.constant 323 : i32
    %308 = tpu.dynamic_rotate %3 by %c323_i32 dim 1 : vector<16x384xf32>, i32 -> vector<16x384xf32>
    %309 = vector.extract_strided_slice %4 {offsets = [0, 61], sizes = [16, 1], strides = [1, 1]} : vector<16x64xf32> to vector<16x1xf32>
    %310 = vector.broadcast %309 : vector<16x1xf32> to vector<16x384xf32>
    %311 = arith.mulf %308, %310 : vector<16x384xf32>
    %312 = arith.addf %307, %311 : vector<16x384xf32>
    %c322_i32 = arith.constant 322 : i32
    %313 = tpu.dynamic_rotate %3 by %c322_i32 dim 1 : vector<16x384xf32>, i32 -> vector<16x384xf32>
    %314 = vector.extract_strided_slice %4 {offsets = [0, 62], sizes = [16, 1], strides = [1, 1]} : vector<16x64xf32> to vector<16x1xf32>
    %315 = vector.broadcast %314 : vector<16x1xf32> to vector<16x384xf32>
    %316 = arith.mulf %313, %315 : vector<16x384xf32>
    %317 = arith.addf %312, %316 : vector<16x384xf32>
    %c321_i32 = arith.constant 321 : i32
    %318 = tpu.dynamic_rotate %3 by %c321_i32 dim 1 : vector<16x384xf32>, i32 -> vector<16x384xf32>
    %319 = vector.extract_strided_slice %4 {offsets = [0, 63], sizes = [16, 1], strides = [1, 1]} : vector<16x64xf32> to vector<16x1xf32>
    %320 = vector.broadcast %319 : vector<16x1xf32> to vector<16x384xf32>
    %321 = arith.mulf %318, %320 : vector<16x384xf32>
    %322 = arith.addf %317, %321 : vector<16x384xf32>
    %c0_6 = arith.constant 0 : index
    %c0_7 = arith.constant 0 : index
    %323 = vector.load %arg4[%c0_6, %c0_7] : memref<16x1xf32, #tpu.memory_space<vmem>>, vector<16x1xf32>
    %324 = vector.broadcast %323 : vector<16x1xf32> to vector<16x384xf32>
    %325 = arith.addf %322, %324 : vector<16x384xf32>
    %cst_8 = arith.constant 0.000000e+00 : f32
    %326 = vector.broadcast %cst_8 : f32 to vector<16x384xf32>
    %327 = arith.cmpf ogt, %325, %326 : vector<16x384xf32>
    %cst_9 = arith.constant 0.000000e+00 : f32
    %328 = vector.broadcast %cst_9 : f32 to vector<16x384xf32>
    %329 = arith.minimumf %325, %328 : vector<16x384xf32>
    %330 = math.exp %329 : vector<16x384xf32>
    %cst_10 = arith.constant 1.000000e+00 : f32
    %331 = vector.broadcast %cst_10 : f32 to vector<16x384xf32>
    %332 = arith.subf %330, %331 : vector<16x384xf32>
    %333 = arith.select %327, %325, %332 : vector<16x384xi1>, vector<16x384xf32>
    %c0_11 = arith.constant 0 : index
    %c0_12 = arith.constant 0 : index
    %334 = vector.load %arg5[%c0_11, %c0_12] : memref<384x128xf32, #tpu.memory_space<vmem>>, vector<384x128xf32>
    %cst_13 = arith.constant dense<0.000000e+00> : vector<16x128xf32>
    %335 = tpu.matmul %333, %334, %cst_13 {dimension_numbers = #tpu.dot_dimension_numbers<[1], [0], [0], [1], [0, 0, 1, 1], [], []>} : vector<16x384xf32>, vector<384x128xf32>, vector<16x128xf32> -> vector<16x128xf32>
    %c0_14 = arith.constant 0 : index
    %c0_15 = arith.constant 0 : index
    %336 = vector.load %arg6[%c0_14, %c0_15] : memref<16x16xf32, #tpu.memory_space<vmem>>, vector<16x16xf32>
    %337 = vector.extract_strided_slice %336 {offsets = [0, 0], sizes = [16, 1], strides = [1, 1]} : vector<16x16xf32> to vector<16x1xf32>
    %338 = vector.broadcast %337 : vector<16x1xf32> to vector<16x128xf32>
    %339 = arith.mulf %335, %338 : vector<16x128xf32>
    %c127_i32 = arith.constant 127 : i32
    %340 = tpu.dynamic_rotate %335 by %c127_i32 dim 1 : vector<16x128xf32>, i32 -> vector<16x128xf32>
    %341 = vector.extract_strided_slice %336 {offsets = [0, 1], sizes = [16, 1], strides = [1, 1]} : vector<16x16xf32> to vector<16x1xf32>
    %342 = vector.broadcast %341 : vector<16x1xf32> to vector<16x128xf32>
    %343 = arith.mulf %340, %342 : vector<16x128xf32>
    %344 = arith.addf %339, %343 : vector<16x128xf32>
    %c126_i32 = arith.constant 126 : i32
    %345 = tpu.dynamic_rotate %335 by %c126_i32 dim 1 : vector<16x128xf32>, i32 -> vector<16x128xf32>
    %346 = vector.extract_strided_slice %336 {offsets = [0, 2], sizes = [16, 1], strides = [1, 1]} : vector<16x16xf32> to vector<16x1xf32>
    %347 = vector.broadcast %346 : vector<16x1xf32> to vector<16x128xf32>
    %348 = arith.mulf %345, %347 : vector<16x128xf32>
    %349 = arith.addf %344, %348 : vector<16x128xf32>
    %c125_i32 = arith.constant 125 : i32
    %350 = tpu.dynamic_rotate %335 by %c125_i32 dim 1 : vector<16x128xf32>, i32 -> vector<16x128xf32>
    %351 = vector.extract_strided_slice %336 {offsets = [0, 3], sizes = [16, 1], strides = [1, 1]} : vector<16x16xf32> to vector<16x1xf32>
    %352 = vector.broadcast %351 : vector<16x1xf32> to vector<16x128xf32>
    %353 = arith.mulf %350, %352 : vector<16x128xf32>
    %354 = arith.addf %349, %353 : vector<16x128xf32>
    %c124_i32 = arith.constant 124 : i32
    %355 = tpu.dynamic_rotate %335 by %c124_i32 dim 1 : vector<16x128xf32>, i32 -> vector<16x128xf32>
    %356 = vector.extract_strided_slice %336 {offsets = [0, 4], sizes = [16, 1], strides = [1, 1]} : vector<16x16xf32> to vector<16x1xf32>
    %357 = vector.broadcast %356 : vector<16x1xf32> to vector<16x128xf32>
    %358 = arith.mulf %355, %357 : vector<16x128xf32>
    %359 = arith.addf %354, %358 : vector<16x128xf32>
    %c123_i32 = arith.constant 123 : i32
    %360 = tpu.dynamic_rotate %335 by %c123_i32 dim 1 : vector<16x128xf32>, i32 -> vector<16x128xf32>
    %361 = vector.extract_strided_slice %336 {offsets = [0, 5], sizes = [16, 1], strides = [1, 1]} : vector<16x16xf32> to vector<16x1xf32>
    %362 = vector.broadcast %361 : vector<16x1xf32> to vector<16x128xf32>
    %363 = arith.mulf %360, %362 : vector<16x128xf32>
    %364 = arith.addf %359, %363 : vector<16x128xf32>
    %c122_i32 = arith.constant 122 : i32
    %365 = tpu.dynamic_rotate %335 by %c122_i32 dim 1 : vector<16x128xf32>, i32 -> vector<16x128xf32>
    %366 = vector.extract_strided_slice %336 {offsets = [0, 6], sizes = [16, 1], strides = [1, 1]} : vector<16x16xf32> to vector<16x1xf32>
    %367 = vector.broadcast %366 : vector<16x1xf32> to vector<16x128xf32>
    %368 = arith.mulf %365, %367 : vector<16x128xf32>
    %369 = arith.addf %364, %368 : vector<16x128xf32>
    %c121_i32 = arith.constant 121 : i32
    %370 = tpu.dynamic_rotate %335 by %c121_i32 dim 1 : vector<16x128xf32>, i32 -> vector<16x128xf32>
    %371 = vector.extract_strided_slice %336 {offsets = [0, 7], sizes = [16, 1], strides = [1, 1]} : vector<16x16xf32> to vector<16x1xf32>
    %372 = vector.broadcast %371 : vector<16x1xf32> to vector<16x128xf32>
    %373 = arith.mulf %370, %372 : vector<16x128xf32>
    %374 = arith.addf %369, %373 : vector<16x128xf32>
    %c120_i32 = arith.constant 120 : i32
    %375 = tpu.dynamic_rotate %335 by %c120_i32 dim 1 : vector<16x128xf32>, i32 -> vector<16x128xf32>
    %376 = vector.extract_strided_slice %336 {offsets = [0, 8], sizes = [16, 1], strides = [1, 1]} : vector<16x16xf32> to vector<16x1xf32>
    %377 = vector.broadcast %376 : vector<16x1xf32> to vector<16x128xf32>
    %378 = arith.mulf %375, %377 : vector<16x128xf32>
    %379 = arith.addf %374, %378 : vector<16x128xf32>
    %c119_i32 = arith.constant 119 : i32
    %380 = tpu.dynamic_rotate %335 by %c119_i32 dim 1 : vector<16x128xf32>, i32 -> vector<16x128xf32>
    %381 = vector.extract_strided_slice %336 {offsets = [0, 9], sizes = [16, 1], strides = [1, 1]} : vector<16x16xf32> to vector<16x1xf32>
    %382 = vector.broadcast %381 : vector<16x1xf32> to vector<16x128xf32>
    %383 = arith.mulf %380, %382 : vector<16x128xf32>
    %384 = arith.addf %379, %383 : vector<16x128xf32>
    %c118_i32 = arith.constant 118 : i32
    %385 = tpu.dynamic_rotate %335 by %c118_i32 dim 1 : vector<16x128xf32>, i32 -> vector<16x128xf32>
    %386 = vector.extract_strided_slice %336 {offsets = [0, 10], sizes = [16, 1], strides = [1, 1]} : vector<16x16xf32> to vector<16x1xf32>
    %387 = vector.broadcast %386 : vector<16x1xf32> to vector<16x128xf32>
    %388 = arith.mulf %385, %387 : vector<16x128xf32>
    %389 = arith.addf %384, %388 : vector<16x128xf32>
    %c117_i32 = arith.constant 117 : i32
    %390 = tpu.dynamic_rotate %335 by %c117_i32 dim 1 : vector<16x128xf32>, i32 -> vector<16x128xf32>
    %391 = vector.extract_strided_slice %336 {offsets = [0, 11], sizes = [16, 1], strides = [1, 1]} : vector<16x16xf32> to vector<16x1xf32>
    %392 = vector.broadcast %391 : vector<16x1xf32> to vector<16x128xf32>
    %393 = arith.mulf %390, %392 : vector<16x128xf32>
    %394 = arith.addf %389, %393 : vector<16x128xf32>
    %c116_i32 = arith.constant 116 : i32
    %395 = tpu.dynamic_rotate %335 by %c116_i32 dim 1 : vector<16x128xf32>, i32 -> vector<16x128xf32>
    %396 = vector.extract_strided_slice %336 {offsets = [0, 12], sizes = [16, 1], strides = [1, 1]} : vector<16x16xf32> to vector<16x1xf32>
    %397 = vector.broadcast %396 : vector<16x1xf32> to vector<16x128xf32>
    %398 = arith.mulf %395, %397 : vector<16x128xf32>
    %399 = arith.addf %394, %398 : vector<16x128xf32>
    %c115_i32 = arith.constant 115 : i32
    %400 = tpu.dynamic_rotate %335 by %c115_i32 dim 1 : vector<16x128xf32>, i32 -> vector<16x128xf32>
    %401 = vector.extract_strided_slice %336 {offsets = [0, 13], sizes = [16, 1], strides = [1, 1]} : vector<16x16xf32> to vector<16x1xf32>
    %402 = vector.broadcast %401 : vector<16x1xf32> to vector<16x128xf32>
    %403 = arith.mulf %400, %402 : vector<16x128xf32>
    %404 = arith.addf %399, %403 : vector<16x128xf32>
    %c114_i32 = arith.constant 114 : i32
    %405 = tpu.dynamic_rotate %335 by %c114_i32 dim 1 : vector<16x128xf32>, i32 -> vector<16x128xf32>
    %406 = vector.extract_strided_slice %336 {offsets = [0, 14], sizes = [16, 1], strides = [1, 1]} : vector<16x16xf32> to vector<16x1xf32>
    %407 = vector.broadcast %406 : vector<16x1xf32> to vector<16x128xf32>
    %408 = arith.mulf %405, %407 : vector<16x128xf32>
    %409 = arith.addf %404, %408 : vector<16x128xf32>
    %c113_i32 = arith.constant 113 : i32
    %410 = tpu.dynamic_rotate %335 by %c113_i32 dim 1 : vector<16x128xf32>, i32 -> vector<16x128xf32>
    %411 = vector.extract_strided_slice %336 {offsets = [0, 15], sizes = [16, 1], strides = [1, 1]} : vector<16x16xf32> to vector<16x1xf32>
    %412 = vector.broadcast %411 : vector<16x1xf32> to vector<16x128xf32>
    %413 = arith.mulf %410, %412 : vector<16x128xf32>
    %414 = arith.addf %409, %413 : vector<16x128xf32>
    %c0_16 = arith.constant 0 : index
    %c0_17 = arith.constant 0 : index
    %415 = vector.load %arg7[%c0_16, %c0_17] : memref<16x16xf32, #tpu.memory_space<vmem>>, vector<16x16xf32>
    %cst_18 = arith.constant dense<0.000000e+00> : vector<16x128xf32>
    %416 = tpu.matmul %415, %414, %cst_18 {dimension_numbers = #tpu.dot_dimension_numbers<[1], [0], [0], [1], [0, 0, 1, 1], [], []>} : vector<16x16xf32>, vector<16x128xf32>, vector<16x128xf32> -> vector<16x128xf32>
    %c0_19 = arith.constant 0 : index
    %c0_20 = arith.constant 0 : index
    %417 = vector.load %arg8[%c0_19, %c0_20] : memref<16x1xf32, #tpu.memory_space<vmem>>, vector<16x1xf32>
    %418 = vector.broadcast %417 : vector<16x1xf32> to vector<16x128xf32>
    %419 = arith.addf %416, %418 : vector<16x128xf32>
    %cst_21 = arith.constant 0.000000e+00 : f32
    %420 = vector.broadcast %cst_21 : f32 to vector<16x128xf32>
    %421 = arith.cmpf ogt, %419, %420 : vector<16x128xf32>
    %cst_22 = arith.constant 0.000000e+00 : f32
    %422 = vector.broadcast %cst_22 : f32 to vector<16x128xf32>
    %423 = arith.minimumf %419, %422 : vector<16x128xf32>
    %424 = math.exp %423 : vector<16x128xf32>
    %cst_23 = arith.constant 1.000000e+00 : f32
    %425 = vector.broadcast %cst_23 : f32 to vector<16x128xf32>
    %426 = arith.subf %424, %425 : vector<16x128xf32>
    %427 = arith.select %421, %419, %426 : vector<16x128xi1>, vector<16x128xf32>
    %c0_24 = arith.constant 0 : index
    %c0_25 = arith.constant 0 : index
    %428 = vector.load %arg9[%c0_24, %c0_25] : memref<128x48xf32, #tpu.memory_space<vmem>>, vector<128x48xf32>
    %cst_26 = arith.constant dense<0.000000e+00> : vector<16x48xf32>
    %429 = tpu.matmul %427, %428, %cst_26 {dimension_numbers = #tpu.dot_dimension_numbers<[1], [0], [0], [1], [0, 0, 1, 1], [], []>} : vector<16x128xf32>, vector<128x48xf32>, vector<16x48xf32> -> vector<16x48xf32>
    %c0_27 = arith.constant 0 : index
    %c0_28 = arith.constant 0 : index
    %430 = vector.load %arg10[%c0_27, %c0_28] : memref<16x48xf32, #tpu.memory_space<vmem>>, vector<16x48xf32>
    %431 = arith.mulf %429, %430 : vector<16x48xf32>
    %cst_29 = arith.constant dense<0.000000e+00> : vector<48xf32>
    %432 = vector.multi_reduction <add>, %431, %cst_29 [0] : vector<16x48xf32> to vector<48xf32>
    %433 = vector.shape_cast %432 : vector<48xf32> to vector<1x48xf32>
    %c0_30 = arith.constant 0 : index
    %c0_31 = arith.constant 0 : index
    %434 = vector.load %arg11[%c0_30, %c0_31] : memref<48x3xf32, #tpu.memory_space<vmem>>, vector<48x3xf32>
    %cst_32 = arith.constant dense<0.000000e+00> : vector<1x3xf32>
    %435 = tpu.matmul %433, %434, %cst_32 {dimension_numbers = #tpu.dot_dimension_numbers<[1], [0], [0], [1], [0, 0, 1, 1], [], []>} : vector<1x48xf32>, vector<48x3xf32>, vector<1x3xf32> -> vector<1x3xf32>
    %c0_33 = arith.constant 0 : index
    %c0_34 = arith.constant 0 : index
    %436 = vector.load %arg12[%c0_33, %c0_34] : memref<1x3xf32, #tpu.memory_space<vmem>>, vector<1x3xf32>
    %437 = arith.addf %435, %436 : vector<1x3xf32>
    %c0_35 = arith.constant 0 : index
    %c0_36 = arith.constant 0 : index
    %c0_37 = arith.constant 0 : index
    %438 = vector.load %arg13[%c0_35, %c0_36, %c0_37] : memref<1x1x3xf32, #tpu.memory_space<vmem>>, vector<1x1x3xf32>
    %439 = vector.shape_cast %438 : vector<1x1x3xf32> to vector<1x3xf32>
    %440 = vector.shape_cast %437 : vector<1x3xf32> to vector<1x1x3xf32>
    tpu.vector_store %arg13[%c0_35, %c0_36, %c0_37], %440 {strides = array<i32>} : memref<1x1x3xf32, #tpu.memory_space<vmem>>, vector<1x1x3xf32>,
    return
  }
  func.func @transform_0(%arg0: i32) -> (i32, i32, i32) {
    %c0_i32 = arith.constant 0 : i32
    %c0_i32_0 = arith.constant 0 : i32
    %c0_i32_1 = arith.constant 0 : i32
    return %arg0, %c0_i32, %c0_i32_0 : i32, i32, i32
  }
  func.func @transform_1(%arg0: i32) -> (i32, i32) {
    %c0_i32 = arith.constant 0 : i32
    %c0_i32_0 = arith.constant 0 : i32
    %c0_i32_1 = arith.constant 0 : i32
    return %c0_i32, %c0_i32_0 : i32, i32
  }
  func.func @transform_2(%arg0: i32) -> (i32, i32) {
    %c0_i32 = arith.constant 0 : i32
    %c0_i32_0 = arith.constant 0 : i32
    %c0_i32_1 = arith.constant 0 : i32
    return %c0_i32, %c0_i32_0 : i32, i32
  }
  func.func @transform_3(%arg0: i32) -> (i32, i32) {
    %c0_i32 = arith.constant 0 : i32
    %c0_i32_0 = arith.constant 0 : i32
    %c0_i32_1 = arith.constant 0 : i32
    return %c0_i32, %c0_i32_0 : i32, i32
  }
  func.func @transform_4(%arg0: i32) -> (i32, i32) {
    %c0_i32 = arith.constant 0 : i32
    %c0_i32_0 = arith.constant 0 : i32
    %c0_i32_1 = arith.constant 0 : i32
    return %c0_i32, %c0_i32_0 : i32, i32
  }
  func.func @transform_5(%arg0: i32) -> (i32, i32) {
    %c0_i32 = arith.constant 0 : i32
    %c0_i32_0 = arith.constant 0 : i32
    %c0_i32_1 = arith.constant 0 : i32
    return %c0_i32, %c0_i32_0 : i32, i32
  }
  func.func @transform_6(%arg0: i32) -> (i32, i32) {
    %c0_i32 = arith.constant 0 : i32
    %c0_i32_0 = arith.constant 0 : i32
    %c0_i32_1 = arith.constant 0 : i32
    return %c0_i32, %c0_i32_0 : i32, i32
  }
  func.func @transform_7(%arg0: i32) -> (i32, i32) {
    %c0_i32 = arith.constant 0 : i32
    %c0_i32_0 = arith.constant 0 : i32
    %c0_i32_1 = arith.constant 0 : i32
    return %c0_i32, %c0_i32_0 : i32, i32
  }
  func.func @transform_8(%arg0: i32) -> (i32, i32) {
    %c0_i32 = arith.constant 0 : i32
    %c0_i32_0 = arith.constant 0 : i32
    %c0_i32_1 = arith.constant 0 : i32
    return %c0_i32, %c0_i32_0 : i32, i32
  }
  func.func @transform_9(%arg0: i32) -> (i32, i32) {
    %c0_i32 = arith.constant 0 : i32
    %c0_i32_0 = arith.constant 0 : i32
    %c0_i32_1 = arith.constant 0 : i32
    return %c0_i32, %c0_i32_0 : i32, i32
  }
  func.func @transform_10(%arg0: i32) -> (i32, i32) {
    %c0_i32 = arith.constant 0 : i32
    %c0_i32_0 = arith.constant 0 : i32
    %c0_i32_1 = arith.constant 0 : i32
    return %c0_i32, %c0_i32_0 : i32, i32
  }
  func.func @transform_11(%arg0: i32) -> (i32, i32) {
    %c0_i32 = arith.constant 0 : i32
    %c0_i32_0 = arith.constant 0 : i32
    %c0_i32_1 = arith.constant 0 : i32
    return %c0_i32, %c0_i32_0 : i32, i32
  }
  func.func @transform_12(%arg0: i32) -> (i32, i32, i32) {
    %c0_i32 = arith.constant 0 : i32
    %c0_i32_0 = arith.constant 0 : i32
    %c0_i32_1 = arith.constant 0 : i32
    return %arg0, %c0_i32, %c0_i32_0 : i32, i32, i32
  }
}

</mosaic_0001>

<llo_original>
// kernel: eegnet_25s_forward.1
$region0: #{eegnet_25s_forward.1}
  #allocation0 [shape = 'u32[]', space=smem, size = 0x4, offset = 0x4, fixed_abs, tag = 'smem constant byte address 0x4 - core index']
  #allocation1 [shape = 'u32[72,128]{1,0:T(1,128)}', space=vmem, size = 0x9000, scoped, tag = 'internal scratch']
  %s0 = inlined_call_operand.vmem [shape: f32[2,20,384], index: 0, kind: input, shape index: {}]
  %s1 = inlined_call_operand.vmem [shape: f32[16,20], index: 1, kind: input, shape index: {}]
  %s2 = inlined_call_operand.vmem [shape: f32[16,64], index: 2, kind: input, shape index: {}]
  %s3 = inlined_call_operand.vmem [shape: f32[16,1], index: 3, kind: input, shape index: {}]
  %s4 = inlined_call_operand.vmem [shape: f32[384,128], index: 4, kind: input, shape index: {}]
  %s5 = inlined_call_operand.vmem [shape: f32[16,16], index: 5, kind: input, shape index: {}]
  %s6 = inlined_call_operand.vmem [shape: f32[16,16], index: 6, kind: input, shape index: {}]
  %s7 = inlined_call_operand.vmem [shape: f32[16,1], index: 7, kind: input, shape index: {}]
  %s8 = inlined_call_operand.vmem [shape: f32[128,48], index: 8, kind: input, shape index: {}]
  %s9 = inlined_call_operand.vmem [shape: f32[16,48], index: 9, kind: input, shape index: {}]
  %s10 = inlined_call_operand.vmem [shape: f32[48,3], index: 10, kind: input, shape index: {}]
  %s11 = inlined_call_operand.vmem [shape: f32[1,3], index: 11, kind: input, shape index: {}]
  %s12 = inlined_call_operand.hbm [shape: f32[2,1,3], index: 12, kind: output, shape index: {}]
  %s13 = sld [smem:[#allocation0]]
  $region81: #{eegnet_25s_forward.1} parent=0
    _
  %s15 = ssub.s32 1, %s13
  %s16 = scalar_select 0, %s15, %s13
  $region1: #{eegnet_25s_forward.1} parent=0
    #allocation2 [shape = 'u8[1024]{0}', space=vmem, size = 0x400, scoped, tag = 'output window, operand 0']
    #allocation3 [shape = 's32[2]{0}', space=sflag, size = 0x8, scoped, tag = 'scoped memory for eegnet_25s_forward.1']
    %17 = vsyncpa [#allocation3], 0
    %s18 = scalar_lea.sflag [#allocation3], 1
    %19 = vsyncpa %s18, 0
    loop: start=0, step=1, limit=4
    $region2: #{eegnet_25s_forward.1} parent=1 // loop_pre_header
      _
    $region3: #{eegnet_25s_forward.1} parent=1 // loop_header
      %s21 = sphi 0, %s25
      %p22 = scmp.ge.s32.totalorder %s21, 4
      %s31 = sphi 0, %s33
      %s34 = sphi 0, %s31
      %s35 = sphi 0, %s34
      %s51 = sphi 0, %s35
      %s55 = sphi 0, %s55
      %s57 = sphi 0, %s55
      %s58 = sphi 0, %s57
      %s72 = sphi 0, %s58
      %s76 = sphi 0, %s76
      %s78 = sphi 0, %s76
      %s79 = sphi 0, %s78
      %s93 = sphi 0, %s79
      %s97 = sphi 0, %s97
      %s99 = sphi 0, %s97
      %s100 = sphi 0, %s99
      %s114 = sphi 0, %s100
      %s118 = sphi 0, %s118
      %s120 = sphi 0, %s118
      %s121 = sphi 0, %s120
      %s135 = sphi 0, %s121
      %s139 = sphi 0, %s139
      %s141 = sphi 0, %s139
      %s142 = sphi 0, %s141
      %s156 = sphi 0, %s142
      %s160 = sphi 0, %s160
      %s162 = sphi 0, %s160
      %s163 = sphi 0, %s162
      %s177 = sphi 0, %s163
      %s181 = sphi 0, %s181
      %s183 = sphi 0, %s181
      %s184 = sphi 0, %s183
      %s198 = sphi 0, %s184
      %s202 = sphi 0, %s202
      %s204 = sphi 0, %s202
      %s205 = sphi 0, %s204
      %s219 = sphi 0, %s205
      %s223 = sphi 0, %s223
      %s225 = sphi 0, %s223
      %s226 = sphi 0, %s225
      %s240 = sphi 0, %s226
      %s244 = sphi 0, %s244
      %s246 = sphi 0, %s244
      %s247 = sphi 0, %s246
      %s261 = sphi 0, %s247
      %s265 = sphi 0, %s265
      %s267 = sphi 0, %s265
      %s268 = sphi 0, %s267
      %s282 = sphi 0, %s268
      %s288 = sphi 0, %s290
      %s291 = sphi 0, %s288
      %s292 = sphi 0, %s291
      %s308 = sphi 0, %s292
    $region4: #{eegnet_25s_forward.1} parent=1 // loop_header_branch
      %24 = sbr.rel (%p22) target = $region8
    $region5: #{eegnet_25s_forward.1} parent=1 // loop_body
      %s26 = ssub.s32 %s21, 1
      %s27 = ssub.s32 %s21, 2
      %s28 = sadd.s32 %s21, 1
      %s29 = ssub.s32 %s21, %s28
      %p30 = scmp.eq.s32.totalorder %s29, 0
      %s32 = sadd.s32 %s31, 1
      %s33 = scalar_select %p30, %s31, %s32
      %p36 = pneg %p30
      %p37 = scmp.eq.s32.totalorder %s21, 1
      %p38 = por %p36, %p37
      %p39 = scmp.ne.s32.totalorder %s31, %s34
      %p40 = scmp.eq.s32.totalorder %s21, 0
      %p41 = por %p39, %p40
      %p42 = scmp.ne.s32.totalorder %s31, %s34
      %p43 = scmp.eq.s32.totalorder %s26, 1
      %p44 = por %p42, %p43
      %p45 = scmp.ne.s32.totalorder %s34, %s35
      %p46 = scmp.eq.s32.totalorder %s26, 0
      %p47 = por %p45, %p46
      %p48 = scmp.ne.s32.totalorder %s34, %s35
      %p49 = scmp.eq.s32.totalorder %s27, 1
      %p50 = por %p48, %p49
      %p52 = scmp.ne.s32.totalorder %s35, %s51
      %p53 = scmp.eq.s32.totalorder %s27, 0
      %p54 = por %p52, %p53
      %s56 = sadd.s32 %s55, 1
      %p59 = scmp.eq.s32.totalorder %s21, 1
      %p60 = scmp.ne.s32.totalorder %s55, %s57
      %p61 = scmp.eq.s32.totalorder %s21, 0
      %p62 = por %p60, %p61
      %p63 = scmp.ne.s32.totalorder %s55, %s57
      %p64 = scmp.eq.s32.totalorder %s26, 1
      %p65 = por %p63, %p64
      %p66 = scmp.ne.s32.totalorder %s57, %s58
      %p67 = scmp.eq.s32.totalorder %s26, 0
      %p68 = por %p66, %p67
      %p69 = scmp.ne.s32.totalorder %s57, %s58
      %p70 = scmp.eq.s32.totalorder %s27, 1
      %p71 = por %p69, %p70
      %p73 = scmp.ne.s32.totalorder %s58, %s72
      %p74 = scmp.eq.s32.totalorder %s27, 0
      %p75 = por %p73, %p74
      %s77 = sadd.s32 %s76, 1
      %p80 = scmp.eq.s32.totalorder %s21, 1
      %p81 = scmp.ne.s32.totalorder %s76, %s78
      %p82 = scmp.eq.s32.totalorder %s21, 0
      %p83 = por %p81, %p82
      %p84 = scmp.ne.s32.totalorder %s76, %s78
      %p85 = scmp.eq.s32.totalorder %s26, 1
      %p86 = por %p84, %p85
      %p87 = scmp.ne.s32.totalorder %s78, %s79
      %p88 = scmp.eq.s32.totalorder %s26, 0
      %p89 = por %p87, %p88
      %p90 = scmp.ne.s32.totalorder %s78, %s79
      %p91 = scmp.eq.s32.totalorder %s27, 1
      %p92 = por %p90, %p91
      %p94 = scmp.ne.s32.totalorder %s79, %s93
      %p95 = scmp.eq.s32.totalorder %s27, 0
      %p96 = por %p94, %p95
      %s98 = sadd.s32 %s97, 1
      %p101 = scmp.eq.s32.totalorder %s21, 1
      %p102 = scmp.ne.s32.totalorder %s97, %s99
      %p103 = scmp.eq.s32.totalorder %s21, 0
      %p104 = por %p102, %p103
      %p105 = scmp.ne.s32.totalorder %s97, %s99
      %p106 = scmp.eq.s32.totalorder %s26, 1
      %p107 = por %p105, %p106
      %p108 = scmp.ne.s32.totalorder %s99, %s100
      %p109 = scmp.eq.s32.totalorder %s26, 0
      %p110 = por %p108, %p109
      %p111 = scmp.ne.s32.totalorder %s99, %s100
      %p112 = scmp.eq.s32.totalorder %s27, 1
      %p113 = por %p111, %p112
      %p115 = scmp.ne.s32.totalorder %s100, %s114
      %p116 = scmp.eq.s32.totalorder %s27, 0
      %p117 = por %p115, %p116
      %s119 = sadd.s32 %s118, 1
      %p122 = scmp.eq.s32.totalorder %s21, 1
      %p123 = scmp.ne.s32.totalorder %s118, %s120
      %p124 = scmp.eq.s32.totalorder %s21, 0
      %p125 = por %p123, %p124
      %p126 = scmp.ne.s32.totalorder %s118, %s120
      %p127 = scmp.eq.s32.totalorder %s26, 1
      %p128 = por %p126, %p127
      %p129 = scmp.ne.s32.totalorder %s120, %s121
      %p130 = scmp.eq.s32.totalorder %s26, 0
      %p131 = por %p129, %p130
      %p132 = scmp.ne.s32.totalorder %s120, %s121
      %p133 = scmp.eq.s32.totalorder %s27, 1
      %p134 = por %p132, %p133
      %p136 = scmp.ne.s32.totalorder %s121, %s135
      %p137 = scmp.eq.s32.totalorder %s27, 0
      %p138 = por %p136, %p137
      %s140 = sadd.s32 %s139, 1
      %p143 = scmp.eq.s32.totalorder %s21, 1
      %p144 = scmp.ne.s32.totalorder %s139, %s141
      %p145 = scmp.eq.s32.totalorder %s21, 0
      %p146 = por %p144, %p145
      %p147 = scmp.ne.s32.totalorder %s139, %s141
      %p148 = scmp.eq.s32.totalorder %s26, 1
      %p149 = por %p147, %p148
      %p150 = scmp.ne.s32.totalorder %s141, %s142
      %p151 = scmp.eq.s32.totalorder %s26, 0
      %p152 = por %p150, %p151
      %p153 = scmp.ne.s32.totalorder %s141, %s142
      %p154 = scmp.eq.s32.totalorder %s27, 1
      %p155 = por %p153, %p154
      %p157 = scmp.ne.s32.totalorder %s142, %s156
      %p158 = scmp.eq.s32.totalorder %s27, 0
      %p159 = por %p157, %p158
      %s161 = sadd.s32 %s160, 1
      %p164 = scmp.eq.s32.totalorder %s21, 1
      %p165 = scmp.ne.s32.totalorder %s160, %s162
      %p166 = scmp.eq.s32.totalorder %s21, 0
      %p167 = por %p165, %p166
      %p168 = scmp.ne.s32.totalorder %s160, %s162
      %p169 = scmp.eq.s32.totalorder %s26, 1
      %p170 = por %p168, %p169
      %p171 = scmp.ne.s32.totalorder %s162, %s163
      %p172 = scmp.eq.s32.totalorder %s26, 0
      %p173 = por %p171, %p172
      %p174 = scmp.ne.s32.totalorder %s162, %s163
      %p175 = scmp.eq.s32.totalorder %s27, 1
      %p176 = por %p174, %p175
      %p178 = scmp.ne.s32.totalorder %s163, %s177
      %p179 = scmp.eq.s32.totalorder %s27, 0
      %p180 = por %p178, %p179
      %s182 = sadd.s32 %s181, 1
      %p185 = scmp.eq.s32.totalorder %s21, 1
      %p186 = scmp.ne.s32.totalorder %s181, %s183
      %p187 = scmp.eq.s32.totalorder %s21, 0
      %p188 = por %p186, %p187
      %p189 = scmp.ne.s32.totalorder %s181, %s183
      %p190 = scmp.eq.s32.totalorder %s26, 1
      %p191 = por %p189, %p190
      %p192 = scmp.ne.s32.totalorder %s183, %s184
      %p193 = scmp.eq.s32.totalorder %s26, 0
      %p194 = por %p192, %p193
      %p195 = scmp.ne.s32.totalorder %s183, %s184
      %p196 = scmp.eq.s32.totalorder %s27, 1
      %p197 = por %p195, %p196
      %p199 = scmp.ne.s32.totalorder %s184, %s198
      %p200 = scmp.eq.s32.totalorder %s27, 0
      %p201 = por %p199, %p200
      %s203 = sadd.s32 %s202, 1
      %p206 = scmp.eq.s32.totalorder %s21, 1
      %p207 = scmp.ne.s32.totalorder %s202, %s204
      %p208 = scmp.eq.s32.totalorder %s21, 0
      %p209 = por %p207, %p208
      %p210 = scmp.ne.s32.totalorder %s202, %s204
      %p211 = scmp.eq.s32.totalorder %s26, 1
      %p212 = por %p210, %p211
      %p213 = scmp.ne.s32.totalorder %s204, %s205
      %p214 = scmp.eq.s32.totalorder %s26, 0
      %p215 = por %p213, %p214
      %p216 = scmp.ne.s32.totalorder %s204, %s205
      %p217 = scmp.eq.s32.totalorder %s27, 1
      %p218 = por %p216, %p217
      %p220 = scmp.ne.s32.totalorder %s205, %s219
      %p221 = scmp.eq.s32.totalorder %s27, 0
      %p222 = por %p220, %p221
      %s224 = sadd.s32 %s223, 1
      %p227 = scmp.eq.s32.totalorder %s21, 1
      %p228 = scmp.ne.s32.totalorder %s223, %s225
      %p229 = scmp.eq.s32.totalorder %s21, 0
      %p230 = por %p228, %p229
      %p231 = scmp.ne.s32.totalorder %s223, %s225
      %p232 = scmp.eq.s32.totalorder %s26, 1
      %p233 = por %p231, %p232
      %p234 = scmp.ne.s32.totalorder %s225, %s226
      %p235 = scmp.eq.s32.totalorder %s26, 0
      %p236 = por %p234, %p235
      %p237 = scmp.ne.s32.totalorder %s225, %s226
      %p238 = scmp.eq.s32.totalorder %s27, 1
      %p239 = por %p237, %p238
      %p241 = scmp.ne.s32.totalorder %s226, %s240
      %p242 = scmp.eq.s32.totalorder %s27, 0
      %p243 = por %p241, %p242
      %s245 = sadd.s32 %s244, 1
      %p248 = scmp.eq.s32.totalorder %s21, 1
      %p249 = scmp.ne.s32.totalorder %s244, %s246
      %p250 = scmp.eq.s32.totalorder %s21, 0
      %p251 = por %p249, %p250
      %p252 = scmp.ne.s32.totalorder %s244, %s246
      %p253 = scmp.eq.s32.totalorder %s26, 1
      %p254 = por %p252, %p253
      %p255 = scmp.ne.s32.totalorder %s246, %s247
      %p256 = scmp.eq.s32.totalorder %s26, 0
      %p257 = por %p255, %p256
      %p258 = scmp.ne.s32.totalorder %s246, %s247
      %p259 = scmp.eq.s32.totalorder %s27, 1
      %p260 = por %p258, %p259
      %p262 = scmp.ne.s32.totalorder %s247, %s261
      %p263 = scmp.eq.s32.totalorder %s27, 0
      %p264 = por %p262, %p263
      %s266 = sadd.s32 %s265, 1
      %p269 = scmp.eq.s32.totalorder %s21, 1
      %p270 = scmp.ne.s32.totalorder %s265, %s267
      %p271 = scmp.eq.s32.totalorder %s21, 0
      %p272 = por %p270, %p271
      %p273 = scmp.ne.s32.totalorder %s265, %s267
      %p274 = scmp.eq.s32.totalorder %s26, 1
      %p275 = por %p273, %p274
      %p276 = scmp.ne.s32.totalorder %s267, %s268
      %p277 = scmp.eq.s32.totalorder %s26, 0
      %p278 = por %p276, %p277
      %p279 = scmp.ne.s32.totalorder %s267, %s268
      %p280 = scmp.eq.s32.totalorder %s27, 1
      %p281 = por %p279, %p280
      %p283 = scmp.ne.s32.totalorder %s268, %s282
      %p284 = scmp.eq.s32.totalorder %s27, 0
      %p285 = por %p283, %p284
      %s286 = ssub.s32 %s21, %s28
      %p287 = scmp.eq.s32.totalorder %s286, 0
      %s289 = sadd.s32 %s288, 1
      %s290 = scalar_select %p287, %s288, %s289
      %p293 = pneg %p287
      %p294 = scmp.eq.s32.totalorder %s21, 1
      %p295 = por %p293, %p294
      %p296 = scmp.ne.s32.totalorder %s288, %s291
      %p297 = scmp.eq.s32.totalorder %s21, 0
      %p298 = por %p296, %p297
      %p299 = scmp.ne.s32.totalorder %s288, %s291
      %p300 = scmp.eq.s32.totalorder %s26, 1
      %p301 = por %p299, %p300
      %p302 = scmp.ne.s32.totalorder %s291, %s292
      %p303 = scmp.eq.s32.totalorder %s26, 0
      %p304 = por %p302, %p303
      %p305 = scmp.ne.s32.totalorder %s291, %s292
      %p306 = scmp.eq.s32.totalorder %s27, 1
      %p307 = por %p305, %p306
      %p309 = scmp.ne.s32.totalorder %s292, %s308
      %p310 = scmp.eq.s32.totalorder %s27, 0
      %p311 = por %p309, %p310
      %p312 = scmp.le.s32.totalorder 1, %s21
      %p313 = scmp.lt.s32.totalorder %s21, 3
      %p314 = pnand %p312, %p313
      %p315 = pneg %p314
      // Predicated region
      $region9: #{eegnet_25s_forward.1} parent=5 // pred_check
        _
      $region10: #{eegnet_25s_forward.1} parent=5 // pred_check_branch
        %317 = sbr.rel (%p314) target = $region12
      $region11: #{eegnet_25s_forward.1} parent=5 // pred_region
        %s318 = ssub.s32 %s21, 1
        // Predicated region
        $region13: #{eegnet_25s_forward.1} parent=11 // pred_check
          %p319 = pneg %p68
        $region14: #{eegnet_25s_forward.1} parent=11 // pred_check_branch
          %321 = sbr.rel (%p319) target = $region16
        $region15: #{eegnet_25s_forward.1} parent=11 // pred_region
          _
        $region16: #{eegnet_25s_forward.1} parent=11 // pred_fallthru
          _
        // Predicated region
        $region17: #{eegnet_25s_forward.1} parent=11 // pred_check
          %p322 = pneg %p89
        $region18: #{eegnet_25s_forward.1} parent=11 // pred_check_branch
          %324 = sbr.rel (%p322) target = $region20
        $region19: #{eegnet_25s_forward.1} parent=11 // pred_region
          _
        $region20: #{eegnet_25s_forward.1} parent=11 // pred_fallthru
          _
        // Predicated region
        $region21: #{eegnet_25s_forward.1} parent=11 // pred_check
          %p325 = pneg %p110
        $region22: #{eegnet_25s_forward.1} parent=11 // pred_check_branch
          %327 = sbr.rel (%p325) target = $region24
        $region23: #{eegnet_25s_forward.1} parent=11 // pred_region
          _
        $region24: #{eegnet_25s_forward.1} parent=11 // pred_fallthru
          _
        // Predicated region
        $region25: #{eegnet_25s_forward.1} parent=11 // pred_check
          %p328 = pneg %p131
        $region26: #{eegnet_25s_forward.1} parent=11 // pred_check_branch
          %330 = sbr.rel (%p328) target = $region28
        $region27: #{eegnet_25s_forward.1} parent=11 // pred_region
          _
        $region28: #{eegnet_25s_forward.1} parent=11 // pred_fallthru
          _
        // Predicated region
        $region29: #{eegnet_25s_forward.1} parent=11 // pred_check
          %p331 = pneg %p152
        $region30: #{eegnet_25s_forward.1} parent=11 // pred_check_branch
          %333 = sbr.rel (%p331) target = $region32
        $region31: #{eegnet_25s_forward.1} parent=11 // pred_region
          _
        $region32: #{eegnet_25s_forward.1} parent=11 // pred_fallthru
          _
        // Predicated region
        $region33: #{eegnet_25s_forward.1} parent=11 // pred_check
          %p334 = pneg %p173
        $region34: #{eegnet_25s_forward.1} parent=11 // pred_check_branch
          %336 = sbr.rel (%p334) target = $region36
        $region35: #{eegnet_25s_forward.1} parent=11 // pred_region
          _
        $region36: #{eegnet_25s_forward.1} parent=11 // pred_fallthru
          _
        // Predicated region
        $region37: #{eegnet_25s_forward.1} parent=11 // pred_check
          %p337 = pneg %p194
        $region38: #{eegnet_25s_forward.1} parent=11 // pred_check_branch
          %339 = sbr.rel (%p337) target = $region40
        $region39: #{eegnet_25s_forward.1} parent=11 // pred_region
          _
        $region40: #{eegnet_25s_forward.1} parent=11 // pred_fallthru
          _
        // Predicated region
        $region41: #{eegnet_25s_forward.1} parent=11 // pred_check
          %p340 = pneg %p215
        $region42: #{eegnet_25s_forward.1} parent=11 // pred_check_branch
          %342 = sbr.rel (%p340) target = $region44
        $region43: #{eegnet_25s_forward.1} parent=11 // pred_region
          _
        $region44: #{eegnet_25s_forward.1} parent=11 // pred_fallthru
          _
        // Predicated region
        $region45: #{eegnet_25s_forward.1} parent=11 // pred_check
          %p343 = pneg %p236
        $region46: #{eegnet_25s_forward.1} parent=11 // pred_check_branch
          %345 = sbr.rel (%p343) target = $region48
        $region47: #{eegnet_25s_forward.1} parent=11 // pred_region
          _
        $region48: #{eegnet_25s_forward.1} parent=11 // pred_fallthru
          _
        // Predicated region
        $region49: #{eegnet_25s_forward.1} parent=11 // pred_check
          %p346 = pneg %p257
        $region50: #{eegnet_25s_forward.1} parent=11 // pred_check_branch
          %348 = sbr.rel (%p346) target = $region52
        $region51: #{eegnet_25s_forward.1} parent=11 // pred_region
          _
        $region52: #{eegnet_25s_forward.1} parent=11 // pred_fallthru
          _
        // Predicated region
        $region53: #{eegnet_25s_forward.1} parent=11 // pred_check
          %p349 = pneg %p278
        $region54: #{eegnet_25s_forward.1} parent=11 // pred_check_branch
          %351 = sbr.rel (%p349) target = $region56
        $region55: #{eegnet_25s_forward.1} parent=11 // pred_region
          _
        $region56: #{eegnet_25s_forward.1} parent=11 // pred_fallthru
          _
      $region12: #{eegnet_25s_forward.1} parent=5 // pred_fallthru
        _
      %p352 = scmp.lt.s32.totalorder %s21, 2
      // Predicated region
      $region57: #{eegnet_25s_forward.1} parent=5 // pred_check
        %p353 = pneg %p352
      $region58: #{eegnet_25s_forward.1} parent=5 // pred_check_branch
        %355 = sbr.rel (%p353) target = $region60
      $region59: #{eegnet_25s_forward.1} parent=5 // pred_region
        // Predicated region
        $region61: #{eegnet_25s_forward.1} parent=59 // pred_check
          %p356 = pneg %p41
        $region62: #{eegnet_25s_forward.1} parent=59 // pred_check_branch
          %358 = sbr.rel (%p356) target = $region64
        $region63: #{eegnet_25s_forward.1} parent=59 // pred_region
          %p359 = scmp.lt.s32.totalorder %s21, 1
          %s360 = scalar_select %p359, %s21, 1
          %s361 = smul.addr %s360, 9
          %s362 = smul.addr %s361, 8
          %s363 = scalar_lea.vmem %s0, %s362
        $region64: #{eegnet_25s_forward.1} parent=59 // pred_fallthru
          _
      $region60: #{eegnet_25s_forward.1} parent=5 // pred_fallthru
        _
      %p364 = scmp.le.s32.totalorder 1, %s21
      %p365 = scmp.lt.s32.totalorder %s21, 3
      %p366 = pnand %p364, %p365
      %p367 = pneg %p366
      // Predicated region
      $region65: #{eegnet_25s_forward.1} parent=5 // pred_check
        _
      $region66: #{eegnet_25s_forward.1} parent=5 // pred_check_branch
        %369 = sbr.rel (%p366) target = $region68
      $region67: #{eegnet_25s_forward.1} parent=5 // pred_region
        %s370 = ssub.s32 %s21, 1
        %p371 = scmp.lt.s32.totalorder %s26, 1
        %s372 = scalar_select %p371, %s26, 1
        %s373 = smul.addr %s372, 9
        %s374 = smul.addr %s373, 8
        %s375 = scalar_lea.vmem %s0, %s374
        %p376 = pneg %p47
        %p377 = pneg %p44
        %p378 = pneg %p68
        %p379 = pneg %p65
        %p380 = pneg %p89
        %p381 = pneg %p86
        %p382 = pneg %p110
        %p383 = pneg %p107
        %p384 = pneg %p131
        %p385 = pneg %p128
        %p386 = pneg %p152
        %p387 = pneg %p149
        %p388 = pneg %p173
        %p389 = pneg %p170
        %p390 = pneg %p194
        %p391 = pneg %p191
        %p392 = pneg %p215
        %p393 = pneg %p212
        %p394 = pneg %p236
        %p395 = pneg %p233
        %p396 = pneg %p257
        %p397 = pneg %p254
        %p398 = pneg %p278
        %p399 = pneg %p275
        %p400 = pneg %p304
        %p401 = pneg %p301
        %s402 = sand.u32 %s291, 1
        %s403 = scalar_lea.sflag [#allocation3], %s402
        %s404 = sand.u32 %s291, 1
        %s405 = scalar_lea.vmem [#allocation2], %s404
        %p406 = scmp.lt.s32.totalorder %s26, 1
        %s407 = scalar_select %p406, %s26, 1
        %s408 = smul.addr %s407, 9
        %s409 = smul.addr %s408, 8
        %s410 = scalar_lea.vmem %s0, %s409
        %v411 = vld [vmem:[%s1] sm:$0xff]
        %v412 = vld [vmem:[%s1 + $0x8] sm:$0xff]
        %v413 = vld [vmem:[%s410] sm:$0xff]
        %v414 = vld [vmem:[%s410 + $0x8] sm:$0xff]
        %v415 = vld [vmem:[%s410 + $0x10] sm:$0xff]
        %v416 = vld [vmem:[%s410 + $0x18] sm:$0xff]
        %v417 = vld [vmem:[%s410 + $0x20] sm:$0xff]
        %v418 = vld [vmem:[%s410 + $0x28] sm:$0xff]
        %v419 = vld [vmem:[%s410 + $0x30] sm:$0xf]
        %v420 = vld [vmem:[%s410 + $0x38] sm:$0xf]
        %v421 = vld [vmem:[%s410 + $0x40] sm:$0xf]
        %vm422 = vcmask 162816
        %v424 = vsel %vm422, %v411, 0
        %v427 = vsel %vm422, %v412, 0
        %vm429 = vcmask 1043456
        %v431 = vsel %vm429, %v419, 0
        %v434 = vsel %vm429, %v420, 0
        %v437 = vsel %vm429, %v421, 0
        %439 = vmatpush.msra.mxu0 0.0
        %440 = vmatpush.msra.mxu0 0.0
        %441 = vmatpush.msra.mxu0 0.0
        %442 = vmatpush.msra.mxu0 0.0
        %443 = vmatpush.msra.mxu0 0.0
        %444 = vmatpush.msra.mxu0 0.0
        %445 = vmatpush.msra.mxu0 0.0
        %446 = vmatpush.msra.mxu0 0.0
        %447 = vmatpush.msra.mxu0 0.0
        %448 = vmatpush.msra.mxu0 0.0
        %449 = vmatpush.msra.mxu0 0.0
        %450 = vmatpush.msra.mxu0 0.0
        %451 = vmatpush.msra.mxu0 0.0
        %452 = vmatpush.msra.mxu0 %v431
        %453 = vmatpush.msra.mxu0 %v416
        %454 = vmatpush.msra.mxu0 %v413
        %455 = vmatmul.f32.gmra.mxu0 %v424
        %v456 = vpop.f32.mrf.mxu0
        %v457 = vadd.f32 0.0, %v456
        %458 = vmatmul.f32.gmra.mxu0 %v427
        %v459 = vpop.f32.mrf.mxu0
        %v460 = vadd.f32 0.0, %v459
        %461 = vdwg.mxu0
        %462 = vmatpush.msra.mxu0 0.0
        %463 = vmatpush.msra.mxu0 0.0
        %464 = vmatpush.msra.mxu0 0.0
        %465 = vmatpush.msra.mxu0 0.0
        %466 = vmatpush.msra.mxu0 0.0
        %467 = vmatpush.msra.mxu0 0.0
        %468 = vmatpush.msra.mxu0 0.0
        %469 = vmatpush.msra.mxu0 0.0
        %470 = vmatpush.msra.mxu0 0.0
        %471 = vmatpush.msra.mxu0 0.0
        %472 = vmatpush.msra.mxu0 0.0
        %473 = vmatpush.msra.mxu0 0.0
        %474 = vmatpush.msra.mxu0 0.0
        %475 = vmatpush.msra.mxu0 %v434
        %476 = vmatpush.msra.mxu0 %v417
        %477 = vmatpush.msra.mxu0 %v414
        %478 = vmatmul.f32.gmra.mxu0 %v424
        %v479 = vpop.f32.mrf.mxu0
        %v480 = vadd.f32 0.0, %v479
        %481 = vmatmul.f32.gmra.mxu0 %v427
        %v482 = vpop.f32.mrf.mxu0
        %v483 = vadd.f32 0.0, %v482
        %484 = vdwg.mxu0
        %485 = vmatpush.msra.mxu0 0.0
        %486 = vmatpush.msra.mxu0 0.0
        %487 = vmatpush.msra.mxu0 0.0
        %488 = vmatpush.msra.mxu0 0.0
        %489 = vmatpush.msra.mxu0 0.0
        %490 = vmatpush.msra.mxu0 0.0
        %491 = vmatpush.msra.mxu0 0.0
        %492 = vmatpush.msra.mxu0 0.0
        %493 = vmatpush.msra.mxu0 0.0
        %494 = vmatpush.msra.mxu0 0.0
        %495 = vmatpush.msra.mxu0 0.0
        %496 = vmatpush.msra.mxu0 0.0
        %497 = vmatpush.msra.mxu0 0.0
        %498 = vmatpush.msra.mxu0 %v437
        %499 = vmatpush.msra.mxu0 %v418
        %500 = vmatpush.msra.mxu0 %v415
        %501 = vmatmul.f32.gmra.mxu0 %v424
        %v502 = vpop.f32.mrf.mxu0
        %v503 = vadd.f32 0.0, %v502
        %504 = vmatmul.f32.gmra.mxu0 %v427
        %v505 = vpop.f32.mrf.mxu0
        %v506 = vadd.f32 0.0, %v505
        %507 = vdwg.mxu0
        %v508 = vld [vmem:[%s2] sm:$0xff]
        %v509 = vld [vmem:[%s2 + $0x8] sm:$0xff]
        %511 = vset.pattern.permute.xlu0 0
        %512 = vperm.xlu0 %511, %v508
        %v513 = vpop.permute.xlu0 %512
        %516 = vset.pattern.permute.xlu0 0
        %517 = vperm.xlu0 %516, %v509
        %v518 = vpop.permute.xlu0 %517
        %v520 = vmul.f32 %v457, %v513
        %v521 = vmul.f32 %v480, %v513
        %v522 = vmul.f32 %v503, %v513
        %v523 = vmul.f32 %v460, %v518
        %v524 = vmul.f32 %v483, %v518
        %v525 = vmul.f32 %v506, %v518
        %526 = vrot.lane.b32.xlu0 %v457, 127
        %v527 = vpop.permute.xlu0 %526
        %528 = vrot.lane.b32.xlu0 %v460, 127
        %v529 = vpop.permute.xlu0 %528
        %530 = vrot.lane.b32.xlu0 %v480, 127
        %v531 = vpop.permute.xlu0 %530
        %532 = vrot.lane.b32.xlu0 %v483, 127
        %v533 = vpop.permute.xlu0 %532
        %534 = vrot.lane.b32.xlu0 %v503, 127
        %v535 = vpop.permute.xlu0 %534
        %536 = vrot.lane.b32.xlu0 %v506, 127
        %v537 = vpop.permute.xlu0 %536
        %v538 = vlaneseq
        %v539 = vand.u32 %v538, 127
        %vm540 = vcmp.lt.s32.totalorder %v539, 127
        %v541 = vsel %vm540, %v531, %v535
        %v542 = vsel %vm540, %v533, %v537
        %v543 = vsel %vm540, %v527, %v531
        %v544 = vsel %vm540, %v529, %v533
        %v545 = vsel %vm540, %v535, %v527
        %v546 = vsel %vm540, %v537, %v529
        %547 = vset.pattern.permute.xlu0 1
        %548 = vperm.xlu0 %547, %v508
        %v549 = vpop.permute.xlu0 %548
        %551 = vset.pattern.permute.xlu0 1
        %552 = vperm.xlu0 %551, %v509
        %v553 = vpop.permute.xlu0 %552
        %v555 = vmul.f32 %v543, %v549
        %v556 = vmul.f32 %v541, %v549
        %v557 = vmul.f32 %v545, %v549
        %v558 = vmul.f32 %v544, %v553
        %v559 = vmul.f32 %v542, %v553
        %v560 = vmul.f32 %v546, %v553
        %v561 = vadd.f32 %v520, %v555
        %v562 = vadd.f32 %v521, %v556
        %v563 = vadd.f32 %v522, %v557
        %v564 = vadd.f32 %v523, %v558
        %v565 = vadd.f32 %v524, %v559
        %v566 = vadd.f32 %v525, %v560
        %567 = vrot.lane.b32.xlu0 %v457, 126
        %v568 = vpop.permute.xlu0 %567
        %569 = vrot.lane.b32.xlu0 %v460, 126
        %v570 = vpop.permute.xlu0 %569
        %571 = vrot.lane.b32.xlu0 %v480, 126
        %v572 = vpop.permute.xlu0 %571
        %573 = vrot.lane.b32.xlu0 %v483, 126
        %v574 = vpop.permute.xlu0 %573
        %575 = vrot.lane.b32.xlu0 %v503, 126
        %v576 = vpop.permute.xlu0 %575
        %577 = vrot.lane.b32.xlu0 %v506, 126
        %v578 = vpop.permute.xlu0 %577
        %vm579 = vcmp.lt.s32.totalorder %v539, 126
        %v580 = vsel %vm579, %v572, %v576
        %v581 = vsel %vm579, %v574, %v578
        %v582 = vsel %vm579, %v568, %v572
        %v583 = vsel %vm579, %v570, %v574
        %v584 = vsel %vm579, %v576, %v568
        %v585 = vsel %vm579, %v578, %v570
        %586 = vset.pattern.permute.xlu0 2
        %587 = vperm.xlu0 %586, %v508
        %v588 = vpop.permute.xlu0 %587
        %590 = vset.pattern.permute.xlu0 2
        %591 = vperm.xlu0 %590, %v509
        %v592 = vpop.permute.xlu0 %591
        %v594 = vmul.f32 %v582, %v588
        %v595 = vmul.f32 %v580, %v588
        %v596 = vmul.f32 %v584, %v588
        %v597 = vmul.f32 %v583, %v592
        %v598 = vmul.f32 %v581, %v592
        %v599 = vmul.f32 %v585, %v592
        %v600 = vadd.f32 %v561, %v594
        %v601 = vadd.f32 %v562, %v595
        %v602 = vadd.f32 %v563, %v596
        %v603 = vadd.f32 %v564, %v597
        %v604 = vadd.f32 %v565, %v598
        %v605 = vadd.f32 %v566, %v599
        %606 = vrot.lane.b32.xlu0 %v457, 125
        %v607 = vpop.permute.xlu0 %606
        %608 = vrot.lane.b32.xlu0 %v460, 125
        %v609 = vpop.permute.xlu0 %608
        %610 = vrot.lane.b32.xlu0 %v480, 125
        %v611 = vpop.permute.xlu0 %610
        %612 = vrot.lane.b32.xlu0 %v483, 125
        %v613 = vpop.permute.xlu0 %612
        %614 = vrot.lane.b32.xlu0 %v503, 125
        %v615 = vpop.permute.xlu0 %614
        %616 = vrot.lane.b32.xlu0 %v506, 125
        %v617 = vpop.permute.xlu0 %616
        %vm618 = vcmp.lt.s32.totalorder %v539, 125
        %v619 = vsel %vm618, %v611, %v615
        %v620 = vsel %vm618, %v613, %v617
        %v621 = vsel %vm618, %v607, %v611
        %v622 = vsel %vm618, %v609, %v613
        %v623 = vsel %vm618, %v615, %v607
        %v624 = vsel %vm618, %v617, %v609
        %625 = vset.pattern.permute.xlu0 3
        %626 = vperm.xlu0 %625, %v508
        %v627 = vpop.permute.xlu0 %626
        %629 = vset.pattern.permute.xlu0 3
        %630 = vperm.xlu0 %629, %v509
        %v631 = vpop.permute.xlu0 %630
        %v633 = vmul.f32 %v621, %v627
        %v634 = vmul.f32 %v619, %v627
        %v635 = vmul.f32 %v623, %v627
        %v636 = vmul.f32 %v622, %v631
        %v637 = vmul.f32 %v620, %v631
        %v638 = vmul.f32 %v624, %v631
        %v639 = vadd.f32 %v600, %v633
        %v640 = vadd.f32 %v601, %v634
        %v641 = vadd.f32 %v602, %v635
        %v642 = vadd.f32 %v603, %v636
        %v643 = vadd.f32 %v604, %v637
        %v644 = vadd.f32 %v605, %v638
        %645 = vrot.lane.b32.xlu0 %v457, 124
        %v646 = vpop.permute.xlu0 %645
        %647 = vrot.lane.b32.xlu0 %v460, 124
        %v648 = vpop.permute.xlu0 %647
        %649 = vrot.lane.b32.xlu0 %v480, 124
        %v650 = vpop.permute.xlu0 %649
        %651 = vrot.lane.b32.xlu0 %v483, 124
        %v652 = vpop.permute.xlu0 %651
        %653 = vrot.lane.b32.xlu0 %v503, 124
        %v654 = vpop.permute.xlu0 %653
        %655 = vrot.lane.b32.xlu0 %v506, 124
        %v656 = vpop.permute.xlu0 %655
        %vm657 = vcmp.lt.s32.totalorder %v539, 124
        %v658 = vsel %vm657, %v650, %v654
        %v659 = vsel %vm657, %v652, %v656
        %v660 = vsel %vm657, %v646, %v650
        %v661 = vsel %vm657, %v648, %v652
        %v662 = vsel %vm657, %v654, %v646
        %v663 = vsel %vm657, %v656, %v648
        %664 = vset.pattern.permute.xlu0 4
        %665 = vperm.xlu0 %664, %v508
        %v666 = vpop.permute.xlu0 %665
        %668 = vset.pattern.permute.xlu0 4
        %669 = vperm.xlu0 %668, %v509
        %v670 = vpop.permute.xlu0 %669
        %v672 = vmul.f32 %v660, %v666
        %v673 = vmul.f32 %v658, %v666
        %v674 = vmul.f32 %v662, %v666
        %v675 = vmul.f32 %v661, %v670
        %v676 = vmul.f32 %v659, %v670
        %v677 = vmul.f32 %v663, %v670
        %v678 = vadd.f32 %v639, %v672
        %v679 = vadd.f32 %v640, %v673
        %v680 = vadd.f32 %v641, %v674
        %v681 = vadd.f32 %v642, %v675
        %v682 = vadd.f32 %v643, %v676
        %v683 = vadd.f32 %v644, %v677
        %684 = vrot.lane.b32.xlu0 %v457, 123
        %v685 = vpop.permute.xlu0 %684
        %686 = vrot.lane.b32.xlu0 %v460, 123
        %v687 = vpop.permute.xlu0 %686
        %688 = vrot.lane.b32.xlu0 %v480, 123
        %v689 = vpop.permute.xlu0 %688
        %690 = vrot.lane.b32.xlu0 %v483, 123
        %v691 = vpop.permute.xlu0 %690
        %692 = vrot.lane.b32.xlu0 %v503, 123
        %v693 = vpop.permute.xlu0 %692
        %694 = vrot.lane.b32.xlu0 %v506, 123
        %v695 = vpop.permute.xlu0 %694
        %vm696 = vcmp.lt.s32.totalorder %v539, 123
        %v697 = vsel %vm696, %v689, %v693
        %v698 = vsel %vm696, %v691, %v695
        %v699 = vsel %vm696, %v685, %v689
        %v700 = vsel %vm696, %v687, %v691
        %v701 = vsel %vm696, %v693, %v685
        %v702 = vsel %vm696, %v695, %v687
        %703 = vset.pattern.permute.xlu0 5
        %704 = vperm.xlu0 %703, %v508
        %v705 = vpop.permute.xlu0 %704
        %707 = vset.pattern.permute.xlu0 5
        %708 = vperm.xlu0 %707, %v509
        %v709 = vpop.permute.xlu0 %708
        %v711 = vmul.f32 %v699, %v705
        %v712 = vmul.f32 %v697, %v705
        %v713 = vmul.f32 %v701, %v705
        %v714 = vmul.f32 %v700, %v709
        %v715 = vmul.f32 %v698, %v709
        %v716 = vmul.f32 %v702, %v709
        %v717 = vadd.f32 %v678, %v711
        %v718 = vadd.f32 %v679, %v712
        %v719 = vadd.f32 %v680, %v713
        %v720 = vadd.f32 %v681, %v714
        %v721 = vadd.f32 %v682, %v715
        %v722 = vadd.f32 %v683, %v716
        %723 = vrot.lane.b32.xlu0 %v457, 122
        %v724 = vpop.permute.xlu0 %723
        %725 = vrot.lane.b32.xlu0 %v460, 122
        %v726 = vpop.permute.xlu0 %725
        %727 = vrot.lane.b32.xlu0 %v480, 122
        %v728 = vpop.permute.xlu0 %727
        %729 = vrot.lane.b32.xlu0 %v483, 122
        %v730 = vpop.permute.xlu0 %729
        %731 = vrot.lane.b32.xlu0 %v503, 122
        %v732 = vpop.permute.xlu0 %731
        %733 = vrot.lane.b32.xlu0 %v506, 122
        %v734 = vpop.permute.xlu0 %733
        %vm735 = vcmp.lt.s32.totalorder %v539, 122
        %v736 = vsel %vm735, %v728, %v732
        %v737 = vsel %vm735, %v730, %v734
        %v738 = vsel %vm735, %v724, %v728
        %v739 = vsel %vm735, %v726, %v730
        %v740 = vsel %vm735, %v732, %v724
        %v741 = vsel %vm735, %v734, %v726
        %742 = vset.pattern.permute.xlu0 6
        %743 = vperm.xlu0 %742, %v508
        %v744 = vpop.permute.xlu0 %743
        %746 = vset.pattern.permute.xlu0 6
        %747 = vperm.xlu0 %746, %v509
        %v748 = vpop.permute.xlu0 %747
        %v750 = vmul.f32 %v738, %v744
        %v751 = vmul.f32 %v736, %v744
        %v752 = vmul.f32 %v740, %v744
        %v753 = vmul.f32 %v739, %v748
        %v754 = vmul.f32 %v737, %v748
        %v755 = vmul.f32 %v741, %v748
        %v756 = vadd.f32 %v717, %v750
        %v757 = vadd.f32 %v718, %v751
        %v758 = vadd.f32 %v719, %v752
        %v759 = vadd.f32 %v720, %v753
        %v760 = vadd.f32 %v721, %v754
        %v761 = vadd.f32 %v722, %v755
        %762 = vrot.lane.b32.xlu0 %v457, 121
        %v763 = vpop.permute.xlu0 %762
        %764 = vrot.lane.b32.xlu0 %v460, 121
        %v765 = vpop.permute.xlu0 %764
        %766 = vrot.lane.b32.xlu0 %v480, 121
        %v767 = vpop.permute.xlu0 %766
        %768 = vrot.lane.b32.xlu0 %v483, 121
        %v769 = vpop.permute.xlu0 %768
        %770 = vrot.lane.b32.xlu0 %v503, 121
        %v771 = vpop.permute.xlu0 %770
        %772 = vrot.lane.b32.xlu0 %v506, 121
        %v773 = vpop.permute.xlu0 %772
        %vm774 = vcmp.lt.s32.totalorder %v539, 121
        %v775 = vsel %vm774, %v767, %v771
        %v776 = vsel %vm774, %v769, %v773
        %v777 = vsel %vm774, %v763, %v767
        %v778 = vsel %vm774, %v765, %v769
        %v779 = vsel %vm774, %v771, %v763
        %v780 = vsel %vm774, %v773, %v765
        %781 = vset.pattern.permute.xlu0 7
        %782 = vperm.xlu0 %781, %v508
        %v783 = vpop.permute.xlu0 %782
        %785 = vset.pattern.permute.xlu0 7
        %786 = vperm.xlu0 %785, %v509
        %v787 = vpop.permute.xlu0 %786
        %v789 = vmul.f32 %v777, %v783
        %v790 = vmul.f32 %v775, %v783
        %v791 = vmul.f32 %v779, %v783
        %v792 = vmul.f32 %v778, %v787
        %v793 = vmul.f32 %v776, %v787
        %v794 = vmul.f32 %v780, %v787
        %v795 = vadd.f32 %v756, %v789
        %v796 = vadd.f32 %v757, %v790
        %v797 = vadd.f32 %v758, %v791
        %v798 = vadd.f32 %v759, %v792
        %v799 = vadd.f32 %v760, %v793
        %v800 = vadd.f32 %v761, %v794
        %801 = vrot.lane.b32.xlu0 %v457, 120
        %v802 = vpop.permute.xlu0 %801
        %803 = vrot.lane.b32.xlu0 %v460, 120
        %v804 = vpop.permute.xlu0 %803
        %805 = vrot.lane.b32.xlu0 %v480, 120
        %v806 = vpop.permute.xlu0 %805
        %807 = vrot.lane.b32.xlu0 %v483, 120
        %v808 = vpop.permute.xlu0 %807
        %809 = vrot.lane.b32.xlu0 %v503, 120
        %v810 = vpop.permute.xlu0 %809
        %811 = vrot.lane.b32.xlu0 %v506, 120
        %v812 = vpop.permute.xlu0 %811
        %vm813 = vcmp.lt.s32.totalorder %v539, 120
        %v814 = vsel %vm813, %v806, %v810
        %v815 = vsel %vm813, %v808, %v812
        %v816 = vsel %vm813, %v802, %v806
        %v817 = vsel %vm813, %v804, %v808
        %v818 = vsel %vm813, %v810, %v802
        %v819 = vsel %vm813, %v812, %v804
        %820 = vset.pattern.permute.xlu0 8
        %821 = vperm.xlu0 %820, %v508
        %v822 = vpop.permute.xlu0 %821
        %824 = vset.pattern.permute.xlu0 8
        %825 = vperm.xlu0 %824, %v509
        %v826 = vpop.permute.xlu0 %825
        %v828 = vmul.f32 %v816, %v822
        %v829 = vmul.f32 %v814, %v822
        %v830 = vmul.f32 %v818, %v822
        %v831 = vmul.f32 %v817, %v826
        %v832 = vmul.f32 %v815, %v826
        %v833 = vmul.f32 %v819, %v826
        %v834 = vadd.f32 %v795, %v828
        %v835 = vadd.f32 %v796, %v829
        %v836 = vadd.f32 %v797, %v830
        %v837 = vadd.f32 %v798, %v831
        %v838 = vadd.f32 %v799, %v832
        %v839 = vadd.f32 %v800, %v833
        %840 = vrot.lane.b32.xlu0 %v457, 119
        %v841 = vpop.permute.xlu0 %840
        %842 = vrot.lane.b32.xlu0 %v460, 119
        %v843 = vpop.permute.xlu0 %842
        %844 = vrot.lane.b32.xlu0 %v480, 119
        %v845 = vpop.permute.xlu0 %844
        %846 = vrot.lane.b32.xlu0 %v483, 119
        %v847 = vpop.permute.xlu0 %846
        %848 = vrot.lane.b32.xlu0 %v503, 119
        %v849 = vpop.permute.xlu0 %848
        %850 = vrot.lane.b32.xlu0 %v506, 119
        %v851 = vpop.permute.xlu0 %850
        %vm852 = vcmp.lt.s32.totalorder %v539, 119
        %v853 = vsel %vm852, %v845, %v849
        %v854 = vsel %vm852, %v847, %v851
        %v855 = vsel %vm852, %v841, %v845
        %v856 = vsel %vm852, %v843, %v847
        %v857 = vsel %vm852, %v849, %v841
        %v858 = vsel %vm852, %v851, %v843
        %859 = vset.pattern.permute.xlu0 9
        %860 = vperm.xlu0 %859, %v508
        %v861 = vpop.permute.xlu0 %860
        %863 = vset.pattern.permute.xlu0 9
        %864 = vperm.xlu0 %863, %v509
        %v865 = vpop.permute.xlu0 %864
        %v867 = vmul.f32 %v855, %v861
        %v868 = vmul.f32 %v853, %v861
        %v869 = vmul.f32 %v857, %v861
        %v870 = vmul.f32 %v856, %v865
        %v871 = vmul.f32 %v854, %v865
        %v872 = vmul.f32 %v858, %v865
        %v873 = vadd.f32 %v834, %v867
        %v874 = vadd.f32 %v835, %v868
        %v875 = vadd.f32 %v836, %v869
        %v876 = vadd.f32 %v837, %v870
        %v877 = vadd.f32 %v838, %v871
        %v878 = vadd.f32 %v839, %v872
        %879 = vrot.lane.b32.xlu0 %v457, 118
        %v880 = vpop.permute.xlu0 %879
        %881 = vrot.lane.b32.xlu0 %v460, 118
        %v882 = vpop.permute.xlu0 %881
        %883 = vrot.lane.b32.xlu0 %v480, 118
        %v884 = vpop.permute.xlu0 %883
        %885 = vrot.lane.b32.xlu0 %v483, 118
        %v886 = vpop.permute.xlu0 %885
        %887 = vrot.lane.b32.xlu0 %v503, 118
        %v888 = vpop.permute.xlu0 %887
        %889 = vrot.lane.b32.xlu0 %v506, 118
        %v890 = vpop.permute.xlu0 %889
        %vm891 = vcmp.lt.s32.totalorder %v539, 118
        %v892 = vsel %vm891, %v884, %v888
        %v893 = vsel %vm891, %v886, %v890
        %v894 = vsel %vm891, %v880, %v884
        %v895 = vsel %vm891, %v882, %v886
        %v896 = vsel %vm891, %v888, %v880
        %v897 = vsel %vm891, %v890, %v882
        %898 = vset.pattern.permute.xlu0 10
        %899 = vperm.xlu0 %898, %v508
        %v900 = vpop.permute.xlu0 %899
        %902 = vset.pattern.permute.xlu0 10
        %903 = vperm.xlu0 %902, %v509
        %v904 = vpop.permute.xlu0 %903
        %v906 = vmul.f32 %v894, %v900
        %v907 = vmul.f32 %v892, %v900
        %v908 = vmul.f32 %v896, %v900
        %v909 = vmul.f32 %v895, %v904
        %v910 = vmul.f32 %v893, %v904
        %v911 = vmul.f32 %v897, %v904
        %v912 = vadd.f32 %v873, %v906
        %v913 = vadd.f32 %v874, %v907
        %v914 = vadd.f32 %v875, %v908
        %v915 = vadd.f32 %v876, %v909
        %v916 = vadd.f32 %v877, %v910
        %v917 = vadd.f32 %v878, %v911
        %918 = vrot.lane.b32.xlu0 %v457, 117
        %v919 = vpop.permute.xlu0 %918
        %920 = vrot.lane.b32.xlu0 %v460, 117
        %v921 = vpop.permute.xlu0 %920
        %922 = vrot.lane.b32.xlu0 %v480, 117
        %v923 = vpop.permute.xlu0 %922
        %924 = vrot.lane.b32.xlu0 %v483, 117
        %v925 = vpop.permute.xlu0 %924
        %926 = vrot.lane.b32.xlu0 %v503, 117
        %v927 = vpop.permute.xlu0 %926
        %928 = vrot.lane.b32.xlu0 %v506, 117
        %v929 = vpop.permute.xlu0 %928
        %vm930 = vcmp.lt.s32.totalorder %v539, 117
        %v931 = vsel %vm930, %v923, %v927
        %v932 = vsel %vm930, %v925, %v929
        %v933 = vsel %vm930, %v919, %v923
        %v934 = vsel %vm930, %v921, %v925
        %v935 = vsel %vm930, %v927, %v919
        %v936 = vsel %vm930, %v929, %v921
        %937 = vset.pattern.permute.xlu0 11
        %938 = vperm.xlu0 %937, %v508
        %v939 = vpop.permute.xlu0 %938
        %941 = vset.pattern.permute.xlu0 11
        %942 = vperm.xlu0 %941, %v509
        %v943 = vpop.permute.xlu0 %942
        %v945 = vmul.f32 %v933, %v939
        %v946 = vmul.f32 %v931, %v939
        %v947 = vmul.f32 %v935, %v939
        %v948 = vmul.f32 %v934, %v943
        %v949 = vmul.f32 %v932, %v943
        %v950 = vmul.f32 %v936, %v943
        %v951 = vadd.f32 %v912, %v945
        %v952 = vadd.f32 %v913, %v946
        %v953 = vadd.f32 %v914, %v947
        %v954 = vadd.f32 %v915, %v948
        %v955 = vadd.f32 %v916, %v949
        %v956 = vadd.f32 %v917, %v950
        %957 = vrot.lane.b32.xlu0 %v457, 116
        %v958 = vpop.permute.xlu0 %957
        %959 = vrot.lane.b32.xlu0 %v460, 116
        %v960 = vpop.permute.xlu0 %959
        %961 = vrot.lane.b32.xlu0 %v480, 116
        %v962 = vpop.permute.xlu0 %961
        %963 = vrot.lane.b32.xlu0 %v483, 116
        %v964 = vpop.permute.xlu0 %963
        %965 = vrot.lane.b32.xlu0 %v503, 116
        %v966 = vpop.permute.xlu0 %965
        %967 = vrot.lane.b32.xlu0 %v506, 116
        %v968 = vpop.permute.xlu0 %967
        %vm969 = vcmp.lt.s32.totalorder %v539, 116
        %v970 = vsel %vm969, %v962, %v966
        %v971 = vsel %vm969, %v964, %v968
        %v972 = vsel %vm969, %v958, %v962
        %v973 = vsel %vm969, %v960, %v964
        %v974 = vsel %vm969, %v966, %v958
        %v975 = vsel %vm969, %v968, %v960
        %976 = vset.pattern.permute.xlu0 12
        %977 = vperm.xlu0 %976, %v508
        %v978 = vpop.permute.xlu0 %977
        %980 = vset.pattern.permute.xlu0 12
        %981 = vperm.xlu0 %980, %v509
        %v982 = vpop.permute.xlu0 %981
        %v984 = vmul.f32 %v972, %v978
        %v985 = vmul.f32 %v970, %v978
        %v986 = vmul.f32 %v974, %v978
        %v987 = vmul.f32 %v973, %v982
        %v988 = vmul.f32 %v971, %v982
        %v989 = vmul.f32 %v975, %v982
        %v990 = vadd.f32 %v951, %v984
        %v991 = vadd.f32 %v952, %v985
        %v992 = vadd.f32 %v953, %v986
        %v993 = vadd.f32 %v954, %v987
        %v994 = vadd.f32 %v955, %v988
        %v995 = vadd.f32 %v956, %v989
        %996 = vrot.lane.b32.xlu0 %v457, 115
        %v997 = vpop.permute.xlu0 %996
        %998 = vrot.lane.b32.xlu0 %v460, 115
        %v999 = vpop.permute.xlu0 %998
        %1000 = vrot.lane.b32.xlu0 %v480, 115
        %v1001 = vpop.permute.xlu0 %1000
        %1002 = vrot.lane.b32.xlu0 %v483, 115
        %v1003 = vpop.permute.xlu0 %1002
        %1004 = vrot.lane.b32.xlu0 %v503, 115
        %v1005 = vpop.permute.xlu0 %1004
        %1006 = vrot.lane.b32.xlu0 %v506, 115
        %v1007 = vpop.permute.xlu0 %1006
        %vm1008 = vcmp.lt.s32.totalorder %v539, 115
        %v1009 = vsel %vm1008, %v1001, %v1005
        %v1010 = vsel %vm1008, %v1003, %v1007
        %v1011 = vsel %vm1008, %v997, %v1001
        %v1012 = vsel %vm1008, %v999, %v1003
        %v1013 = vsel %vm1008, %v1005, %v997
        %v1014 = vsel %vm1008, %v1007, %v999
        %1015 = vset.pattern.permute.xlu0 13
        %1016 = vperm.xlu0 %1015, %v508
        %v1017 = vpop.permute.xlu0 %1016
        %1019 = vset.pattern.permute.xlu0 13
        %1020 = vperm.xlu0 %1019, %v509
        %v1021 = vpop.permute.xlu0 %1020
        %v1023 = vmul.f32 %v1011, %v1017
        %v1024 = vmul.f32 %v1009, %v1017
        %v1025 = vmul.f32 %v1013, %v1017
        %v1026 = vmul.f32 %v1012, %v1021
        %v1027 = vmul.f32 %v1010, %v1021
        %v1028 = vmul.f32 %v1014, %v1021
        %v1029 = vadd.f32 %v990, %v1023
        %v1030 = vadd.f32 %v991, %v1024
        %v1031 = vadd.f32 %v992, %v1025
        %v1032 = vadd.f32 %v993, %v1026
        %v1033 = vadd.f32 %v994, %v1027
        %v1034 = vadd.f32 %v995, %v1028
        %1035 = vrot.lane.b32.xlu0 %v457, 114
        %v1036 = vpop.permute.xlu0 %1035
        %1037 = vrot.lane.b32.xlu0 %v460, 114
        %v1038 = vpop.permute.xlu0 %1037
        %1039 = vrot.lane.b32.xlu0 %v480, 114
        %v1040 = vpop.permute.xlu0 %1039
        %1041 = vrot.lane.b32.xlu0 %v483, 114
        %v1042 = vpop.permute.xlu0 %1041
        %1043 = vrot.lane.b32.xlu0 %v503, 114
        %v1044 = vpop.permute.xlu0 %1043
        %1045 = vrot.lane.b32.xlu0 %v506, 114
        %v1046 = vpop.permute.xlu0 %1045
        %vm1047 = vcmp.lt.s32.totalorder %v539, 114
        %v1048 = vsel %vm1047, %v1040, %v1044
        %v1049 = vsel %vm1047, %v1042, %v1046
        %v1050 = vsel %vm1047, %v1036, %v1040
        %v1051 = vsel %vm1047, %v1038, %v1042
        %v1052 = vsel %vm1047, %v1044, %v1036
        %v1053 = vsel %vm1047, %v1046, %v1038
        %1054 = vset.pattern.permute.xlu0 14
        %1055 = vperm.xlu0 %1054, %v508
        %v1056 = vpop.permute.xlu0 %1055
        %1058 = vset.pattern.permute.xlu0 14
        %1059 = vperm.xlu0 %1058, %v509
        %v1060 = vpop.permute.xlu0 %1059
        %v1062 = vmul.f32 %v1050, %v1056
        %v1063 = vmul.f32 %v1048, %v1056
        %v1064 = vmul.f32 %v1052, %v1056
        %v1065 = vmul.f32 %v1051, %v1060
        %v1066 = vmul.f32 %v1049, %v1060
        %v1067 = vmul.f32 %v1053, %v1060
        %v1068 = vadd.f32 %v1029, %v1062
        %v1069 = vadd.f32 %v1030, %v1063
        %v1070 = vadd.f32 %v1031, %v1064
        %v1071 = vadd.f32 %v1032, %v1065
        %v1072 = vadd.f32 %v1033, %v1066
        %v1073 = vadd.f32 %v1034, %v1067
        %1074 = vrot.lane.b32.xlu0 %v457, 113
        %v1075 = vpop.permute.xlu0 %1074
        %1076 = vrot.lane.b32.xlu0 %v460, 113
        %v1077 = vpop.permute.xlu0 %1076
        %1078 = vrot.lane.b32.xlu0 %v480, 113
        %v1079 = vpop.permute.xlu0 %1078
        %1080 = vrot.lane.b32.xlu0 %v483, 113
        %v1081 = vpop.permute.xlu0 %1080
        %1082 = vrot.lane.b32.xlu0 %v503, 113
        %v1083 = vpop.permute.xlu0 %1082
        %1084 = vrot.lane.b32.xlu0 %v506, 113
        %v1085 = vpop.permute.xlu0 %1084
        %vm1086 = vcmp.lt.s32.totalorder %v539, 113
        %v1087 = vsel %vm1086, %v1079, %v1083
        %v1088 = vsel %vm1086, %v1081, %v1085
        %v1089 = vsel %vm1086, %v1075, %v1079
        %v1090 = vsel %vm1086, %v1077, %v1081
        %v1091 = vsel %vm1086, %v1083, %v1075
        %v1092 = vsel %vm1086, %v1085, %v1077
        %1093 = vset.pattern.permute.xlu0 15
        %1094 = vperm.xlu0 %1093, %v508
        %v1095 = vpop.permute.xlu0 %1094
        %1097 = vset.pattern.permute.xlu0 15
        %1098 = vperm.xlu0 %1097, %v509
        %v1099 = vpop.permute.xlu0 %1098
        %v1101 = vmul.f32 %v1089, %v1095
        %v1102 = vmul.f32 %v1087, %v1095
        %v1103 = vmul.f32 %v1091, %v1095
        %v1104 = vmul.f32 %v1090, %v1099
        %v1105 = vmul.f32 %v1088, %v1099
        %v1106 = vmul.f32 %v1092, %v1099
        %v1107 = vadd.f32 %v1068, %v1101
        %v1108 = vadd.f32 %v1069, %v1102
        %v1109 = vadd.f32 %v1070, %v1103
        %v1110 = vadd.f32 %v1071, %v1104
        %v1111 = vadd.f32 %v1072, %v1105
        %v1112 = vadd.f32 %v1073, %v1106
        %1113 = vrot.lane.b32.xlu0 %v457, 112
        %v1114 = vpop.permute.xlu0 %1113
        %1115 = vrot.lane.b32.xlu0 %v460, 112
        %v1116 = vpop.permute.xlu0 %1115
        %1117 = vrot.lane.b32.xlu0 %v480, 112
        %v1118 = vpop.permute.xlu0 %1117
        %1119 = vrot.lane.b32.xlu0 %v483, 112
        %v1120 = vpop.permute.xlu0 %1119
        %1121 = vrot.lane.b32.xlu0 %v503, 112
        %v1122 = vpop.permute.xlu0 %1121
        %1123 = vrot.lane.b32.xlu0 %v506, 112
        %v1124 = vpop.permute.xlu0 %1123
        %vm1125 = vcmp.lt.s32.totalorder %v539, 112
        %v1126 = vsel %vm1125, %v1118, %v1122
        %v1127 = vsel %vm1125, %v1120, %v1124
        %v1128 = vsel %vm1125, %v1114, %v1118
        %v1129 = vsel %vm1125, %v1116, %v1120
        %v1130 = vsel %vm1125, %v1122, %v1114
        %v1131 = vsel %vm1125, %v1124, %v1116
        %1132 = vset.pattern.permute.xlu0 16
        %1133 = vperm.xlu0 %1132, %v508
        %v1134 = vpop.permute.xlu0 %1133
        %1136 = vset.pattern.permute.xlu0 16
        %1137 = vperm.xlu0 %1136, %v509
        %v1138 = vpop.permute.xlu0 %1137
        %v1140 = vmul.f32 %v1128, %v1134
        %v1141 = vmul.f32 %v1126, %v1134
        %v1142 = vmul.f32 %v1130, %v1134
        %v1143 = vmul.f32 %v1129, %v1138
        %v1144 = vmul.f32 %v1127, %v1138
        %v1145 = vmul.f32 %v1131, %v1138
        %v1146 = vadd.f32 %v1107, %v1140
        %v1147 = vadd.f32 %v1108, %v1141
        %v1148 = vadd.f32 %v1109, %v1142
        %v1149 = vadd.f32 %v1110, %v1143
        %v1150 = vadd.f32 %v1111, %v1144
        %v1151 = vadd.f32 %v1112, %v1145
        %1152 = vrot.lane.b32.xlu0 %v457, 111
        %v1153 = vpop.permute.xlu0 %1152
        %1154 = vrot.lane.b32.xlu0 %v460, 111
        %v1155 = vpop.permute.xlu0 %1154
        %1156 = vrot.lane.b32.xlu0 %v480, 111
        %v1157 = vpop.permute.xlu0 %1156
        %1158 = vrot.lane.b32.xlu0 %v483, 111
        %v1159 = vpop.permute.xlu0 %1158
        %1160 = vrot.lane.b32.xlu0 %v503, 111
        %v1161 = vpop.permute.xlu0 %1160
        %1162 = vrot.lane.b32.xlu0 %v506, 111
        %v1163 = vpop.permute.xlu0 %1162
        %vm1164 = vcmp.lt.s32.totalorder %v539, 111
        %v1165 = vsel %vm1164, %v1157, %v1161
        %v1166 = vsel %vm1164, %v1159, %v1163
        %v1167 = vsel %vm1164, %v1153, %v1157
        %v1168 = vsel %vm1164, %v1155, %v1159
        %v1169 = vsel %vm1164, %v1161, %v1153
        %v1170 = vsel %vm1164, %v1163, %v1155
        %1171 = vset.pattern.permute.xlu0 17
        %1172 = vperm.xlu0 %1171, %v508
        %v1173 = vpop.permute.xlu0 %1172
        %1175 = vset.pattern.permute.xlu0 17
        %1176 = vperm.xlu0 %1175, %v509
        %v1177 = vpop.permute.xlu0 %1176
        %v1179 = vmul.f32 %v1167, %v1173
        %v1180 = vmul.f32 %v1165, %v1173
        %v1181 = vmul.f32 %v1169, %v1173
        %v1182 = vmul.f32 %v1168, %v1177
        %v1183 = vmul.f32 %v1166, %v1177
        %v1184 = vmul.f32 %v1170, %v1177
        %v1185 = vadd.f32 %v1146, %v1179
        %v1186 = vadd.f32 %v1147, %v1180
        %v1187 = vadd.f32 %v1148, %v1181
        %v1188 = vadd.f32 %v1149, %v1182
        %v1189 = vadd.f32 %v1150, %v1183
        %v1190 = vadd.f32 %v1151, %v1184
        %1191 = vrot.lane.b32.xlu0 %v457, 110
        %v1192 = vpop.permute.xlu0 %1191
        %1193 = vrot.lane.b32.xlu0 %v460, 110
        %v1194 = vpop.permute.xlu0 %1193
        %1195 = vrot.lane.b32.xlu0 %v480, 110
        %v1196 = vpop.permute.xlu0 %1195
        %1197 = vrot.lane.b32.xlu0 %v483, 110
        %v1198 = vpop.permute.xlu0 %1197
        %1199 = vrot.lane.b32.xlu0 %v503, 110
        %v1200 = vpop.permute.xlu0 %1199
        %1201 = vrot.lane.b32.xlu0 %v506, 110
        %v1202 = vpop.permute.xlu0 %1201
        %vm1203 = vcmp.lt.s32.totalorder %v539, 110
        %v1204 = vsel %vm1203, %v1196, %v1200
        %v1205 = vsel %vm1203, %v1198, %v1202
        %v1206 = vsel %vm1203, %v1192, %v1196
        %v1207 = vsel %vm1203, %v1194, %v1198
        %v1208 = vsel %vm1203, %v1200, %v1192
        %v1209 = vsel %vm1203, %v1202, %v1194
        %1210 = vset.pattern.permute.xlu0 18
        %1211 = vperm.xlu0 %1210, %v508
        %v1212 = vpop.permute.xlu0 %1211
        %1214 = vset.pattern.permute.xlu0 18
        %1215 = vperm.xlu0 %1214, %v509
        %v1216 = vpop.permute.xlu0 %1215
        %v1218 = vmul.f32 %v1206, %v1212
        %v1219 = vmul.f32 %v1204, %v1212
        %v1220 = vmul.f32 %v1208, %v1212
        %v1221 = vmul.f32 %v1207, %v1216
        %v1222 = vmul.f32 %v1205, %v1216
        %v1223 = vmul.f32 %v1209, %v1216
        %v1224 = vadd.f32 %v1185, %v1218
        %v1225 = vadd.f32 %v1186, %v1219
        %v1226 = vadd.f32 %v1187, %v1220
        %v1227 = vadd.f32 %v1188, %v1221
        %v1228 = vadd.f32 %v1189, %v1222
        %v1229 = vadd.f32 %v1190, %v1223
        %1230 = vrot.lane.b32.xlu0 %v457, 109
        %v1231 = vpop.permute.xlu0 %1230
        %1232 = vrot.lane.b32.xlu0 %v460, 109
        %v1233 = vpop.permute.xlu0 %1232
        %1234 = vrot.lane.b32.xlu0 %v480, 109
        %v1235 = vpop.permute.xlu0 %1234
        %1236 = vrot.lane.b32.xlu0 %v483, 109
        %v1237 = vpop.permute.xlu0 %1236
        %1238 = vrot.lane.b32.xlu0 %v503, 109
        %v1239 = vpop.permute.xlu0 %1238
        %1240 = vrot.lane.b32.xlu0 %v506, 109
        %v1241 = vpop.permute.xlu0 %1240
        %vm1242 = vcmp.lt.s32.totalorder %v539, 109
        %v1243 = vsel %vm1242, %v1235, %v1239
        %v1244 = vsel %vm1242, %v1237, %v1241
        %v1245 = vsel %vm1242, %v1231, %v1235
        %v1246 = vsel %vm1242, %v1233, %v1237
        %v1247 = vsel %vm1242, %v1239, %v1231
        %v1248 = vsel %vm1242, %v1241, %v1233
        %1249 = vset.pattern.permute.xlu0 19
        %1250 = vperm.xlu0 %1249, %v508
        %v1251 = vpop.permute.xlu0 %1250
        %1253 = vset.pattern.permute.xlu0 19
        %1254 = vperm.xlu0 %1253, %v509
        %v1255 = vpop.permute.xlu0 %1254
        %v1257 = vmul.f32 %v1245, %v1251
        %v1258 = vmul.f32 %v1243, %v1251
        %v1259 = vmul.f32 %v1247, %v1251
        %v1260 = vmul.f32 %v1246, %v1255
        %v1261 = vmul.f32 %v1244, %v1255
        %v1262 = vmul.f32 %v1248, %v1255
        %v1263 = vadd.f32 %v1224, %v1257
        %v1264 = vadd.f32 %v1225, %v1258
        %v1265 = vadd.f32 %v1226, %v1259
        %v1266 = vadd.f32 %v1227, %v1260
        %v1267 = vadd.f32 %v1228, %v1261
        %v1268 = vadd.f32 %v1229, %v1262
        %1269 = vrot.lane.b32.xlu0 %v457, 108
        %v1270 = vpop.permute.xlu0 %1269
        %1271 = vrot.lane.b32.xlu0 %v460, 108
        %v1272 = vpop.permute.xlu0 %1271
        %1273 = vrot.lane.b32.xlu0 %v480, 108
        %v1274 = vpop.permute.xlu0 %1273
        %1275 = vrot.lane.b32.xlu0 %v483, 108
        %v1276 = vpop.permute.xlu0 %1275
        %1277 = vrot.lane.b32.xlu0 %v503, 108
        %v1278 = vpop.permute.xlu0 %1277
        %1279 = vrot.lane.b32.xlu0 %v506, 108
        %v1280 = vpop.permute.xlu0 %1279
        %vm1281 = vcmp.lt.s32.totalorder %v539, 108
        %v1282 = vsel %vm1281, %v1274, %v1278
        %v1283 = vsel %vm1281, %v1276, %v1280
        %v1284 = vsel %vm1281, %v1270, %v1274
        %v1285 = vsel %vm1281, %v1272, %v1276
        %v1286 = vsel %vm1281, %v1278, %v1270
        %v1287 = vsel %vm1281, %v1280, %v1272
        %1288 = vset.pattern.permute.xlu0 20
        %1289 = vperm.xlu0 %1288, %v508
        %v1290 = vpop.permute.xlu0 %1289
        %1292 = vset.pattern.permute.xlu0 20
        %1293 = vperm.xlu0 %1292, %v509
        %v1294 = vpop.permute.xlu0 %1293
        %v1296 = vmul.f32 %v1284, %v1290
        %v1297 = vmul.f32 %v1282, %v1290
        %v1298 = vmul.f32 %v1286, %v1290
        %v1299 = vmul.f32 %v1285, %v1294
        %v1300 = vmul.f32 %v1283, %v1294
        %v1301 = vmul.f32 %v1287, %v1294
        %v1302 = vadd.f32 %v1263, %v1296
        %v1303 = vadd.f32 %v1264, %v1297
        %v1304 = vadd.f32 %v1265, %v1298
        %v1305 = vadd.f32 %v1266, %v1299
        %v1306 = vadd.f32 %v1267, %v1300
        %v1307 = vadd.f32 %v1268, %v1301
        %1308 = vrot.lane.b32.xlu0 %v457, 107
        %v1309 = vpop.permute.xlu0 %1308
        %1310 = vrot.lane.b32.xlu0 %v460, 107
        %v1311 = vpop.permute.xlu0 %1310
        %1312 = vrot.lane.b32.xlu0 %v480, 107
        %v1313 = vpop.permute.xlu0 %1312
        %1314 = vrot.lane.b32.xlu0 %v483, 107
        %v1315 = vpop.permute.xlu0 %1314
        %1316 = vrot.lane.b32.xlu0 %v503, 107
        %v1317 = vpop.permute.xlu0 %1316
        %1318 = vrot.lane.b32.xlu0 %v506, 107
        %v1319 = vpop.permute.xlu0 %1318
        %vm1320 = vcmp.lt.s32.totalorder %v539, 107
        %v1321 = vsel %vm1320, %v1313, %v1317
        %v1322 = vsel %vm1320, %v1315, %v1319
        %v1323 = vsel %vm1320, %v1309, %v1313
        %v1324 = vsel %vm1320, %v1311, %v1315
        %v1325 = vsel %vm1320, %v1317, %v1309
        %v1326 = vsel %vm1320, %v1319, %v1311
        %1327 = vset.pattern.permute.xlu0 21
        %1328 = vperm.xlu0 %1327, %v508
        %v1329 = vpop.permute.xlu0 %1328
        %1331 = vset.pattern.permute.xlu0 21
        %1332 = vperm.xlu0 %1331, %v509
        %v1333 = vpop.permute.xlu0 %1332
        %v1335 = vmul.f32 %v1323, %v1329
        %v1336 = vmul.f32 %v1321, %v1329
        %v1337 = vmul.f32 %v1325, %v1329
        %v1338 = vmul.f32 %v1324, %v1333
        %v1339 = vmul.f32 %v1322, %v1333
        %v1340 = vmul.f32 %v1326, %v1333
        %v1341 = vadd.f32 %v1302, %v1335
        %v1342 = vadd.f32 %v1303, %v1336
        %v1343 = vadd.f32 %v1304, %v1337
        %v1344 = vadd.f32 %v1305, %v1338
        %v1345 = vadd.f32 %v1306, %v1339
        %v1346 = vadd.f32 %v1307, %v1340
        %1347 = vrot.lane.b32.xlu0 %v457, 106
        %v1348 = vpop.permute.xlu0 %1347
        %1349 = vrot.lane.b32.xlu0 %v460, 106
        %v1350 = vpop.permute.xlu0 %1349
        %1351 = vrot.lane.b32.xlu0 %v480, 106
        %v1352 = vpop.permute.xlu0 %1351
        %1353 = vrot.lane.b32.xlu0 %v483, 106
        %v1354 = vpop.permute.xlu0 %1353
        %1355 = vrot.lane.b32.xlu0 %v503, 106
        %v1356 = vpop.permute.xlu0 %1355
        %1357 = vrot.lane.b32.xlu0 %v506, 106
        %v1358 = vpop.permute.xlu0 %1357
        %vm1359 = vcmp.lt.s32.totalorder %v539, 106
        %v1360 = vsel %vm1359, %v1352, %v1356
        %v1361 = vsel %vm1359, %v1354, %v1358
        %v1362 = vsel %vm1359, %v1348, %v1352
        %v1363 = vsel %vm1359, %v1350, %v1354
        %v1364 = vsel %vm1359, %v1356, %v1348
        %v1365 = vsel %vm1359, %v1358, %v1350
        %1366 = vset.pattern.permute.xlu0 22
        %1367 = vperm.xlu0 %1366, %v508
        %v1368 = vpop.permute.xlu0 %1367
        %1370 = vset.pattern.permute.xlu0 22
        %1371 = vperm.xlu0 %1370, %v509
        %v1372 = vpop.permute.xlu0 %1371
        %v1374 = vmul.f32 %v1362, %v1368
        %v1375 = vmul.f32 %v1360, %v1368
        %v1376 = vmul.f32 %v1364, %v1368
        %v1377 = vmul.f32 %v1363, %v1372
        %v1378 = vmul.f32 %v1361, %v1372
        %v1379 = vmul.f32 %v1365, %v1372
        %v1380 = vadd.f32 %v1341, %v1374
        %v1381 = vadd.f32 %v1342, %v1375
        %v1382 = vadd.f32 %v1343, %v1376
        %v1383 = vadd.f32 %v1344, %v1377
        %v1384 = vadd.f32 %v1345, %v1378
        %v1385 = vadd.f32 %v1346, %v1379
        %1386 = vrot.lane.b32.xlu0 %v457, 105
        %v1387 = vpop.permute.xlu0 %1386
        %1388 = vrot.lane.b32.xlu0 %v460, 105
        %v1389 = vpop.permute.xlu0 %1388
        %1390 = vrot.lane.b32.xlu0 %v480, 105
        %v1391 = vpop.permute.xlu0 %1390
        %1392 = vrot.lane.b32.xlu0 %v483, 105
        %v1393 = vpop.permute.xlu0 %1392
        %1394 = vrot.lane.b32.xlu0 %v503, 105
        %v1395 = vpop.permute.xlu0 %1394
        %1396 = vrot.lane.b32.xlu0 %v506, 105
        %v1397 = vpop.permute.xlu0 %1396
        %vm1398 = vcmp.lt.s32.totalorder %v539, 105
        %v1399 = vsel %vm1398, %v1391, %v1395
        %v1400 = vsel %vm1398, %v1393, %v1397
        %v1401 = vsel %vm1398, %v1387, %v1391
        %v1402 = vsel %vm1398, %v1389, %v1393
        %v1403 = vsel %vm1398, %v1395, %v1387
        %v1404 = vsel %vm1398, %v1397, %v1389
        %1405 = vset.pattern.permute.xlu0 23
        %1406 = vperm.xlu0 %1405, %v508
        %v1407 = vpop.permute.xlu0 %1406
        %1409 = vset.pattern.permute.xlu0 23
        %1410 = vperm.xlu0 %1409, %v509
        %v1411 = vpop.permute.xlu0 %1410
        %v1413 = vmul.f32 %v1401, %v1407
        %v1414 = vmul.f32 %v1399, %v1407
        %v1415 = vmul.f32 %v1403, %v1407
        %v1416 = vmul.f32 %v1402, %v1411
        %v1417 = vmul.f32 %v1400, %v1411
        %v1418 = vmul.f32 %v1404, %v1411
        %v1419 = vadd.f32 %v1380, %v1413
        %v1420 = vadd.f32 %v1381, %v1414
        %v1421 = vadd.f32 %v1382, %v1415
        %v1422 = vadd.f32 %v1383, %v1416
        %v1423 = vadd.f32 %v1384, %v1417
        %v1424 = vadd.f32 %v1385, %v1418
        %1425 = vrot.lane.b32.xlu0 %v457, 104
        %v1426 = vpop.permute.xlu0 %1425
        %1427 = vrot.lane.b32.xlu0 %v460, 104
        %v1428 = vpop.permute.xlu0 %1427
        %1429 = vrot.lane.b32.xlu0 %v480, 104
        %v1430 = vpop.permute.xlu0 %1429
        %1431 = vrot.lane.b32.xlu0 %v483, 104
        %v1432 = vpop.permute.xlu0 %1431
        %1433 = vrot.lane.b32.xlu0 %v503, 104
        %v1434 = vpop.permute.xlu0 %1433
        %1435 = vrot.lane.b32.xlu0 %v506, 104
        %v1436 = vpop.permute.xlu0 %1435
        %vm1437 = vcmp.lt.s32.totalorder %v539, 104
        %v1438 = vsel %vm1437, %v1430, %v1434
        %v1439 = vsel %vm1437, %v1432, %v1436
        %v1440 = vsel %vm1437, %v1426, %v1430
        %v1441 = vsel %vm1437, %v1428, %v1432
        %v1442 = vsel %vm1437, %v1434, %v1426
        %v1443 = vsel %vm1437, %v1436, %v1428
        %1444 = vset.pattern.permute.xlu0 24
        %1445 = vperm.xlu0 %1444, %v508
        %v1446 = vpop.permute.xlu0 %1445
        %1448 = vset.pattern.permute.xlu0 24
        %1449 = vperm.xlu0 %1448, %v509
        %v1450 = vpop.permute.xlu0 %1449
        %v1452 = vmul.f32 %v1440, %v1446
        %v1453 = vmul.f32 %v1438, %v1446
        %v1454 = vmul.f32 %v1442, %v1446
        %v1455 = vmul.f32 %v1441, %v1450
        %v1456 = vmul.f32 %v1439, %v1450
        %v1457 = vmul.f32 %v1443, %v1450
        %v1458 = vadd.f32 %v1419, %v1452
        %v1459 = vadd.f32 %v1420, %v1453
        %v1460 = vadd.f32 %v1421, %v1454
        %v1461 = vadd.f32 %v1422, %v1455
        %v1462 = vadd.f32 %v1423, %v1456
        %v1463 = vadd.f32 %v1424, %v1457
        %1464 = vrot.lane.b32.xlu0 %v457, 103
        %v1465 = vpop.permute.xlu0 %1464
        %1466 = vrot.lane.b32.xlu0 %v460, 103
        %v1467 = vpop.permute.xlu0 %1466
        %1468 = vrot.lane.b32.xlu0 %v480, 103
        %v1469 = vpop.permute.xlu0 %1468
        %1470 = vrot.lane.b32.xlu0 %v483, 103
        %v1471 = vpop.permute.xlu0 %1470
        %1472 = vrot.lane.b32.xlu0 %v503, 103
        %v1473 = vpop.permute.xlu0 %1472
        %1474 = vrot.lane.b32.xlu0 %v506, 103
        %v1475 = vpop.permute.xlu0 %1474
        %vm1476 = vcmp.lt.s32.totalorder %v539, 103
        %v1477 = vsel %vm1476, %v1469, %v1473
        %v1478 = vsel %vm1476, %v1471, %v1475
        %v1479 = vsel %vm1476, %v1465, %v1469
        %v1480 = vsel %vm1476, %v1467, %v1471
        %v1481 = vsel %vm1476, %v1473, %v1465
        %v1482 = vsel %vm1476, %v1475, %v1467
        %1483 = vset.pattern.permute.xlu0 25
        %1484 = vperm.xlu0 %1483, %v508
        %v1485 = vpop.permute.xlu0 %1484
        %1487 = vset.pattern.permute.xlu0 25
        %1488 = vperm.xlu0 %1487, %v509
        %v1489 = vpop.permute.xlu0 %1488
        %v1491 = vmul.f32 %v1479, %v1485
        %v1492 = vmul.f32 %v1477, %v1485
        %v1493 = vmul.f32 %v1481, %v1485
        %v1494 = vmul.f32 %v1480, %v1489
        %v1495 = vmul.f32 %v1478, %v1489
        %v1496 = vmul.f32 %v1482, %v1489
        %v1497 = vadd.f32 %v1458, %v1491
        %v1498 = vadd.f32 %v1459, %v1492
        %v1499 = vadd.f32 %v1460, %v1493
        %v1500 = vadd.f32 %v1461, %v1494
        %v1501 = vadd.f32 %v1462, %v1495
        %v1502 = vadd.f32 %v1463, %v1496
        %1503 = vrot.lane.b32.xlu0 %v457, 102
        %v1504 = vpop.permute.xlu0 %1503
        %1505 = vrot.lane.b32.xlu0 %v460, 102
        %v1506 = vpop.permute.xlu0 %1505
        %1507 = vrot.lane.b32.xlu0 %v480, 102
        %v1508 = vpop.permute.xlu0 %1507
        %1509 = vrot.lane.b32.xlu0 %v483, 102
        %v1510 = vpop.permute.xlu0 %1509
        %1511 = vrot.lane.b32.xlu0 %v503, 102
        %v1512 = vpop.permute.xlu0 %1511
        %1513 = vrot.lane.b32.xlu0 %v506, 102
        %v1514 = vpop.permute.xlu0 %1513
        %vm1515 = vcmp.lt.s32.totalorder %v539, 102
        %v1516 = vsel %vm1515, %v1508, %v1512
        %v1517 = vsel %vm1515, %v1510, %v1514
        %v1518 = vsel %vm1515, %v1504, %v1508
        %v1519 = vsel %vm1515, %v1506, %v1510
        %v1520 = vsel %vm1515, %v1512, %v1504
        %v1521 = vsel %vm1515, %v1514, %v1506
        %1522 = vset.pattern.permute.xlu0 26
        %1523 = vperm.xlu0 %1522, %v508
        %v1524 = vpop.permute.xlu0 %1523
        %1526 = vset.pattern.permute.xlu0 26
        %1527 = vperm.xlu0 %1526, %v509
        %v1528 = vpop.permute.xlu0 %1527
        %v1530 = vmul.f32 %v1518, %v1524
        %v1531 = vmul.f32 %v1516, %v1524
        %v1532 = vmul.f32 %v1520, %v1524
        %v1533 = vmul.f32 %v1519, %v1528
        %v1534 = vmul.f32 %v1517, %v1528
        %v1535 = vmul.f32 %v1521, %v1528
        %v1536 = vadd.f32 %v1497, %v1530
        %v1537 = vadd.f32 %v1498, %v1531
        %v1538 = vadd.f32 %v1499, %v1532
        %v1539 = vadd.f32 %v1500, %v1533
        %v1540 = vadd.f32 %v1501, %v1534
        %v1541 = vadd.f32 %v1502, %v1535
        %1542 = vrot.lane.b32.xlu0 %v457, 101
        %v1543 = vpop.permute.xlu0 %1542
        %1544 = vrot.lane.b32.xlu0 %v460, 101
        %v1545 = vpop.permute.xlu0 %1544
        %1546 = vrot.lane.b32.xlu0 %v480, 101
        %v1547 = vpop.permute.xlu0 %1546
        %1548 = vrot.lane.b32.xlu0 %v483, 101
        %v1549 = vpop.permute.xlu0 %1548
        %1550 = vrot.lane.b32.xlu0 %v503, 101
        %v1551 = vpop.permute.xlu0 %1550
        %1552 = vrot.lane.b32.xlu0 %v506, 101
        %v1553 = vpop.permute.xlu0 %1552
        %vm1554 = vcmp.lt.s32.totalorder %v539, 101
        %v1555 = vsel %vm1554, %v1547, %v1551
        %v1556 = vsel %vm1554, %v1549, %v1553
        %v1557 = vsel %vm1554, %v1543, %v1547
        %v1558 = vsel %vm1554, %v1545, %v1549
        %v1559 = vsel %vm1554, %v1551, %v1543
        %v1560 = vsel %vm1554, %v1553, %v1545
        %1561 = vset.pattern.permute.xlu0 27
        %1562 = vperm.xlu0 %1561, %v508
        %v1563 = vpop.permute.xlu0 %1562
        %1565 = vset.pattern.permute.xlu0 27
        %1566 = vperm.xlu0 %1565, %v509
        %v1567 = vpop.permute.xlu0 %1566
        %v1569 = vmul.f32 %v1557, %v1563
        %v1570 = vmul.f32 %v1555, %v1563
        %v1571 = vmul.f32 %v1559, %v1563
        %v1572 = vmul.f32 %v1558, %v1567
        %v1573 = vmul.f32 %v1556, %v1567
        %v1574 = vmul.f32 %v1560, %v1567
        %v1575 = vadd.f32 %v1536, %v1569
        %v1576 = vadd.f32 %v1537, %v1570
        %v1577 = vadd.f32 %v1538, %v1571
        %v1578 = vadd.f32 %v1539, %v1572
        %v1579 = vadd.f32 %v1540, %v1573
        %v1580 = vadd.f32 %v1541, %v1574
        %1581 = vrot.lane.b32.xlu0 %v457, 100
        %v1582 = vpop.permute.xlu0 %1581
        %1583 = vrot.lane.b32.xlu0 %v460, 100
        %v1584 = vpop.permute.xlu0 %1583
        %1585 = vrot.lane.b32.xlu0 %v480, 100
        %v1586 = vpop.permute.xlu0 %1585
        %1587 = vrot.lane.b32.xlu0 %v483, 100
        %v1588 = vpop.permute.xlu0 %1587
        %1589 = vrot.lane.b32.xlu0 %v503, 100
        %v1590 = vpop.permute.xlu0 %1589
        %1591 = vrot.lane.b32.xlu0 %v506, 100
        %v1592 = vpop.permute.xlu0 %1591
        %vm1593 = vcmp.lt.s32.totalorder %v539, 100
        %v1594 = vsel %vm1593, %v1586, %v1590
        %v1595 = vsel %vm1593, %v1588, %v1592
        %v1596 = vsel %vm1593, %v1582, %v1586
        %v1597 = vsel %vm1593, %v1584, %v1588
        %v1598 = vsel %vm1593, %v1590, %v1582
        %v1599 = vsel %vm1593, %v1592, %v1584
        %1600 = vset.pattern.permute.xlu0 28
        %1601 = vperm.xlu0 %1600, %v508
        %v1602 = vpop.permute.xlu0 %1601
        %1604 = vset.pattern.permute.xlu0 28
        %1605 = vperm.xlu0 %1604, %v509
        %v1606 = vpop.permute.xlu0 %1605
        %v1608 = vmul.f32 %v1596, %v1602
        %v1609 = vmul.f32 %v1594, %v1602
        %v1610 = vmul.f32 %v1598, %v1602
        %v1611 = vmul.f32 %v1597, %v1606
        %v1612 = vmul.f32 %v1595, %v1606
        %v1613 = vmul.f32 %v1599, %v1606
        %v1614 = vadd.f32 %v1575, %v1608
        %v1615 = vadd.f32 %v1576, %v1609
        %v1616 = vadd.f32 %v1577, %v1610
        %v1617 = vadd.f32 %v1578, %v1611
        %v1618 = vadd.f32 %v1579, %v1612
        %v1619 = vadd.f32 %v1580, %v1613
        %1620 = vrot.lane.b32.xlu0 %v457, 99
        %v1621 = vpop.permute.xlu0 %1620
        %1622 = vrot.lane.b32.xlu0 %v460, 99
        %v1623 = vpop.permute.xlu0 %1622
        %1624 = vrot.lane.b32.xlu0 %v480, 99
        %v1625 = vpop.permute.xlu0 %1624
        %1626 = vrot.lane.b32.xlu0 %v483, 99
        %v1627 = vpop.permute.xlu0 %1626
        %1628 = vrot.lane.b32.xlu0 %v503, 99
        %v1629 = vpop.permute.xlu0 %1628
        %1630 = vrot.lane.b32.xlu0 %v506, 99
        %v1631 = vpop.permute.xlu0 %1630
        %vm1632 = vcmp.lt.s32.totalorder %v539, 99
        %v1633 = vsel %vm1632, %v1625, %v1629
        %v1634 = vsel %vm1632, %v1627, %v1631
        %v1635 = vsel %vm1632, %v1621, %v1625
        %v1636 = vsel %vm1632, %v1623, %v1627
        %v1637 = vsel %vm1632, %v1629, %v1621
        %v1638 = vsel %vm1632, %v1631, %v1623
        %1639 = vset.pattern.permute.xlu0 29
        %1640 = vperm.xlu0 %1639, %v508
        %v1641 = vpop.permute.xlu0 %1640
        %1643 = vset.pattern.permute.xlu0 29
        %1644 = vperm.xlu0 %1643, %v509
        %v1645 = vpop.permute.xlu0 %1644
        %v1647 = vmul.f32 %v1635, %v1641
        %v1648 = vmul.f32 %v1633, %v1641
        %v1649 = vmul.f32 %v1637, %v1641
        %v1650 = vmul.f32 %v1636, %v1645
        %v1651 = vmul.f32 %v1634, %v1645
        %v1652 = vmul.f32 %v1638, %v1645
        %v1653 = vadd.f32 %v1614, %v1647
        %v1654 = vadd.f32 %v1615, %v1648
        %v1655 = vadd.f32 %v1616, %v1649
        %v1656 = vadd.f32 %v1617, %v1650
        %v1657 = vadd.f32 %v1618, %v1651
        %v1658 = vadd.f32 %v1619, %v1652
        %1659 = vrot.lane.b32.xlu0 %v457, 98
        %v1660 = vpop.permute.xlu0 %1659
        %1661 = vrot.lane.b32.xlu0 %v460, 98
        %v1662 = vpop.permute.xlu0 %1661
        %1663 = vrot.lane.b32.xlu0 %v480, 98
        %v1664 = vpop.permute.xlu0 %1663
        %1665 = vrot.lane.b32.xlu0 %v483, 98
        %v1666 = vpop.permute.xlu0 %1665
        %1667 = vrot.lane.b32.xlu0 %v503, 98
        %v1668 = vpop.permute.xlu0 %1667
        %1669 = vrot.lane.b32.xlu0 %v506, 98
        %v1670 = vpop.permute.xlu0 %1669
        %vm1671 = vcmp.lt.s32.totalorder %v539, 98
        %v1672 = vsel %vm1671, %v1664, %v1668
        %v1673 = vsel %vm1671, %v1666, %v1670
        %v1674 = vsel %vm1671, %v1660, %v1664
        %v1675 = vsel %vm1671, %v1662, %v1666
        %v1676 = vsel %vm1671, %v1668, %v1660
        %v1677 = vsel %vm1671, %v1670, %v1662
        %1678 = vset.pattern.permute.xlu0 30
        %1679 = vperm.xlu0 %1678, %v508
        %v1680 = vpop.permute.xlu0 %1679
        %1682 = vset.pattern.permute.xlu0 30
        %1683 = vperm.xlu0 %1682, %v509
        %v1684 = vpop.permute.xlu0 %1683
        %v1686 = vmul.f32 %v1674, %v1680
        %v1687 = vmul.f32 %v1672, %v1680
        %v1688 = vmul.f32 %v1676, %v1680
        %v1689 = vmul.f32 %v1675, %v1684
        %v1690 = vmul.f32 %v1673, %v1684
        %v1691 = vmul.f32 %v1677, %v1684
        %v1692 = vadd.f32 %v1653, %v1686
        %v1693 = vadd.f32 %v1654, %v1687
        %v1694 = vadd.f32 %v1655, %v1688
        %v1695 = vadd.f32 %v1656, %v1689
        %v1696 = vadd.f32 %v1657, %v1690
        %v1697 = vadd.f32 %v1658, %v1691
        %1698 = vrot.lane.b32.xlu0 %v457, 97
        %v1699 = vpop.permute.xlu0 %1698
        %1700 = vrot.lane.b32.xlu0 %v460, 97
        %v1701 = vpop.permute.xlu0 %1700
        %1702 = vrot.lane.b32.xlu0 %v480, 97
        %v1703 = vpop.permute.xlu0 %1702
        %1704 = vrot.lane.b32.xlu0 %v483, 97
        %v1705 = vpop.permute.xlu0 %1704
        %1706 = vrot.lane.b32.xlu0 %v503, 97
        %v1707 = vpop.permute.xlu0 %1706
        %1708 = vrot.lane.b32.xlu0 %v506, 97
        %v1709 = vpop.permute.xlu0 %1708
        %vm1710 = vcmp.lt.s32.totalorder %v539, 97
        %v1711 = vsel %vm1710, %v1703, %v1707
        %v1712 = vsel %vm1710, %v1705, %v1709
        %v1713 = vsel %vm1710, %v1699, %v1703
        %v1714 = vsel %vm1710, %v1701, %v1705
        %v1715 = vsel %vm1710, %v1707, %v1699
        %v1716 = vsel %vm1710, %v1709, %v1701
        %1717 = vset.pattern.permute.xlu0 31
        %1718 = vperm.xlu0 %1717, %v508
        %v1719 = vpop.permute.xlu0 %1718
        %1721 = vset.pattern.permute.xlu0 31
        %1722 = vperm.xlu0 %1721, %v509
        %v1723 = vpop.permute.xlu0 %1722
        %v1725 = vmul.f32 %v1713, %v1719
        %v1726 = vmul.f32 %v1711, %v1719
        %v1727 = vmul.f32 %v1715, %v1719
        %v1728 = vmul.f32 %v1714, %v1723
        %v1729 = vmul.f32 %v1712, %v1723
        %v1730 = vmul.f32 %v1716, %v1723
        %v1731 = vadd.f32 %v1692, %v1725
        %v1732 = vadd.f32 %v1693, %v1726
        %v1733 = vadd.f32 %v1694, %v1727
        %v1734 = vadd.f32 %v1695, %v1728
        %v1735 = vadd.f32 %v1696, %v1729
        %v1736 = vadd.f32 %v1697, %v1730
        %1737 = vrot.lane.b32.xlu0 %v457, 96
        %v1738 = vpop.permute.xlu0 %1737
        %1739 = vrot.lane.b32.xlu0 %v460, 96
        %v1740 = vpop.permute.xlu0 %1739
        %1741 = vrot.lane.b32.xlu0 %v480, 96
        %v1742 = vpop.permute.xlu0 %1741
        %1743 = vrot.lane.b32.xlu0 %v483, 96
        %v1744 = vpop.permute.xlu0 %1743
        %1745 = vrot.lane.b32.xlu0 %v503, 96
        %v1746 = vpop.permute.xlu0 %1745
        %1747 = vrot.lane.b32.xlu0 %v506, 96
        %v1748 = vpop.permute.xlu0 %1747
        %vm1749 = vcmp.lt.s32.totalorder %v539, 96
        %v1750 = vsel %vm1749, %v1742, %v1746
        %v1751 = vsel %vm1749, %v1744, %v1748
        %v1752 = vsel %vm1749, %v1738, %v1742
        %v1753 = vsel %vm1749, %v1740, %v1744
        %v1754 = vsel %vm1749, %v1746, %v1738
        %v1755 = vsel %vm1749, %v1748, %v1740
        %1756 = vset.pattern.permute.xlu0 32
        %1757 = vperm.xlu0 %1756, %v508
        %v1758 = vpop.permute.xlu0 %1757
        %1760 = vset.pattern.permute.xlu0 32
        %1761 = vperm.xlu0 %1760, %v509
        %v1762 = vpop.permute.xlu0 %1761
        %v1764 = vmul.f32 %v1752, %v1758
        %v1765 = vmul.f32 %v1750, %v1758
        %v1766 = vmul.f32 %v1754, %v1758
        %v1767 = vmul.f32 %v1753, %v1762
        %v1768 = vmul.f32 %v1751, %v1762
        %v1769 = vmul.f32 %v1755, %v1762
        %v1770 = vadd.f32 %v1731, %v1764
        %v1771 = vadd.f32 %v1732, %v1765
        %v1772 = vadd.f32 %v1733, %v1766
        %v1773 = vadd.f32 %v1734, %v1767
        %v1774 = vadd.f32 %v1735, %v1768
        %v1775 = vadd.f32 %v1736, %v1769
        %1776 = vrot.lane.b32.xlu0 %v457, 95
        %v1777 = vpop.permute.xlu0 %1776
        %1778 = vrot.lane.b32.xlu0 %v460, 95
        %v1779 = vpop.permute.xlu0 %1778
        %1780 = vrot.lane.b32.xlu0 %v480, 95
        %v1781 = vpop.permute.xlu0 %1780
        %1782 = vrot.lane.b32.xlu0 %v483, 95
        %v1783 = vpop.permute.xlu0 %1782
        %1784 = vrot.lane.b32.xlu0 %v503, 95
        %v1785 = vpop.permute.xlu0 %1784
        %1786 = vrot.lane.b32.xlu0 %v506, 95
        %v1787 = vpop.permute.xlu0 %1786
        %vm1788 = vcmp.lt.s32.totalorder %v539, 95
        %v1789 = vsel %vm1788, %v1781, %v1785
        %v1790 = vsel %vm1788, %v1783, %v1787
        %v1791 = vsel %vm1788, %v1777, %v1781
        %v1792 = vsel %vm1788, %v1779, %v1783
        %v1793 = vsel %vm1788, %v1785, %v1777
        %v1794 = vsel %vm1788, %v1787, %v1779
        %1795 = vset.pattern.permute.xlu0 33
        %1796 = vperm.xlu0 %1795, %v508
        %v1797 = vpop.permute.xlu0 %1796
        %1799 = vset.pattern.permute.xlu0 33
        %1800 = vperm.xlu0 %1799, %v509
        %v1801 = vpop.permute.xlu0 %1800
        %v1803 = vmul.f32 %v1791, %v1797
        %v1804 = vmul.f32 %v1789, %v1797
        %v1805 = vmul.f32 %v1793, %v1797
        %v1806 = vmul.f32 %v1792, %v1801
        %v1807 = vmul.f32 %v1790, %v1801
        %v1808 = vmul.f32 %v1794, %v1801
        %v1809 = vadd.f32 %v1770, %v1803
        %v1810 = vadd.f32 %v1771, %v1804
        %v1811 = vadd.f32 %v1772, %v1805
        %v1812 = vadd.f32 %v1773, %v1806
        %v1813 = vadd.f32 %v1774, %v1807
        %v1814 = vadd.f32 %v1775, %v1808
        %1815 = vrot.lane.b32.xlu0 %v457, 94
        %v1816 = vpop.permute.xlu0 %1815
        %1817 = vrot.lane.b32.xlu0 %v460, 94
        %v1818 = vpop.permute.xlu0 %1817
        %1819 = vrot.lane.b32.xlu0 %v480, 94
        %v1820 = vpop.permute.xlu0 %1819
        %1821 = vrot.lane.b32.xlu0 %v483, 94
        %v1822 = vpop.permute.xlu0 %1821
        %1823 = vrot.lane.b32.xlu0 %v503, 94
        %v1824 = vpop.permute.xlu0 %1823
        %1825 = vrot.lane.b32.xlu0 %v506, 94
        %v1826 = vpop.permute.xlu0 %1825
        %vm1827 = vcmp.lt.s32.totalorder %v539, 94
        %v1828 = vsel %vm1827, %v1820, %v1824
        %v1829 = vsel %vm1827, %v1822, %v1826
        %v1830 = vsel %vm1827, %v1816, %v1820
        %v1831 = vsel %vm1827, %v1818, %v1822
        %v1832 = vsel %vm1827, %v1824, %v1816
        %v1833 = vsel %vm1827, %v1826, %v1818
        %1834 = vset.pattern.permute.xlu0 34
        %1835 = vperm.xlu0 %1834, %v508
        %v1836 = vpop.permute.xlu0 %1835
        %1838 = vset.pattern.permute.xlu0 34
        %1839 = vperm.xlu0 %1838, %v509
        %v1840 = vpop.permute.xlu0 %1839
        %v1842 = vmul.f32 %v1830, %v1836
        %v1843 = vmul.f32 %v1828, %v1836
        %v1844 = vmul.f32 %v1832, %v1836
        %v1845 = vmul.f32 %v1831, %v1840
        %v1846 = vmul.f32 %v1829, %v1840
        %v1847 = vmul.f32 %v1833, %v1840
        %v1848 = vadd.f32 %v1809, %v1842
        %v1849 = vadd.f32 %v1810, %v1843
        %v1850 = vadd.f32 %v1811, %v1844
        %v1851 = vadd.f32 %v1812, %v1845
        %v1852 = vadd.f32 %v1813, %v1846
        %v1853 = vadd.f32 %v1814, %v1847
        %1854 = vrot.lane.b32.xlu0 %v457, 93
        %v1855 = vpop.permute.xlu0 %1854
        %1856 = vrot.lane.b32.xlu0 %v460, 93
        %v1857 = vpop.permute.xlu0 %1856
        %1858 = vrot.lane.b32.xlu0 %v480, 93
        %v1859 = vpop.permute.xlu0 %1858
        %1860 = vrot.lane.b32.xlu0 %v483, 93
        %v1861 = vpop.permute.xlu0 %1860
        %1862 = vrot.lane.b32.xlu0 %v503, 93
        %v1863 = vpop.permute.xlu0 %1862
        %1864 = vrot.lane.b32.xlu0 %v506, 93
        %v1865 = vpop.permute.xlu0 %1864
        %vm1866 = vcmp.lt.s32.totalorder %v539, 93
        %v1867 = vsel %vm1866, %v1859, %v1863
        %v1868 = vsel %vm1866, %v1861, %v1865
        %v1869 = vsel %vm1866, %v1855, %v1859
        %v1870 = vsel %vm1866, %v1857, %v1861
        %v1871 = vsel %vm1866, %v1863, %v1855
        %v1872 = vsel %vm1866, %v1865, %v1857
        %1873 = vset.pattern.permute.xlu0 35
        %1874 = vperm.xlu0 %1873, %v508
        %v1875 = vpop.permute.xlu0 %1874
        %1877 = vset.pattern.permute.xlu0 35
        %1878 = vperm.xlu0 %1877, %v509
        %v1879 = vpop.permute.xlu0 %1878
        %v1881 = vmul.f32 %v1869, %v1875
        %v1882 = vmul.f32 %v1867, %v1875
        %v1883 = vmul.f32 %v1871, %v1875
        %v1884 = vmul.f32 %v1870, %v1879
        %v1885 = vmul.f32 %v1868, %v1879
        %v1886 = vmul.f32 %v1872, %v1879
        %v1887 = vadd.f32 %v1848, %v1881
        %v1888 = vadd.f32 %v1849, %v1882
        %v1889 = vadd.f32 %v1850, %v1883
        %v1890 = vadd.f32 %v1851, %v1884
        %v1891 = vadd.f32 %v1852, %v1885
        %v1892 = vadd.f32 %v1853, %v1886
        %1893 = vrot.lane.b32.xlu0 %v457, 92
        %v1894 = vpop.permute.xlu0 %1893
        %1895 = vrot.lane.b32.xlu0 %v460, 92
        %v1896 = vpop.permute.xlu0 %1895
        %1897 = vrot.lane.b32.xlu0 %v480, 92
        %v1898 = vpop.permute.xlu0 %1897
        %1899 = vrot.lane.b32.xlu0 %v483, 92
        %v1900 = vpop.permute.xlu0 %1899
        %1901 = vrot.lane.b32.xlu0 %v503, 92
        %v1902 = vpop.permute.xlu0 %1901
        %1903 = vrot.lane.b32.xlu0 %v506, 92
        %v1904 = vpop.permute.xlu0 %1903
        %vm1905 = vcmp.lt.s32.totalorder %v539, 92
        %v1906 = vsel %vm1905, %v1898, %v1902
        %v1907 = vsel %vm1905, %v1900, %v1904
        %v1908 = vsel %vm1905, %v1894, %v1898
        %v1909 = vsel %vm1905, %v1896, %v1900
        %v1910 = vsel %vm1905, %v1902, %v1894
        %v1911 = vsel %vm1905, %v1904, %v1896
        %1912 = vset.pattern.permute.xlu0 36
        %1913 = vperm.xlu0 %1912, %v508
        %v1914 = vpop.permute.xlu0 %1913
        %1916 = vset.pattern.permute.xlu0 36
        %1917 = vperm.xlu0 %1916, %v509
        %v1918 = vpop.permute.xlu0 %1917
        %v1920 = vmul.f32 %v1908, %v1914
        %v1921 = vmul.f32 %v1906, %v1914
        %v1922 = vmul.f32 %v1910, %v1914
        %v1923 = vmul.f32 %v1909, %v1918
        %v1924 = vmul.f32 %v1907, %v1918
        %v1925 = vmul.f32 %v1911, %v1918
        %v1926 = vadd.f32 %v1887, %v1920
        %v1927 = vadd.f32 %v1888, %v1921
        %v1928 = vadd.f32 %v1889, %v1922
        %v1929 = vadd.f32 %v1890, %v1923
        %v1930 = vadd.f32 %v1891, %v1924
        %v1931 = vadd.f32 %v1892, %v1925
        %1932 = vrot.lane.b32.xlu0 %v457, 91
        %v1933 = vpop.permute.xlu0 %1932
        %1934 = vrot.lane.b32.xlu0 %v460, 91
        %v1935 = vpop.permute.xlu0 %1934
        %1936 = vrot.lane.b32.xlu0 %v480, 91
        %v1937 = vpop.permute.xlu0 %1936
        %1938 = vrot.lane.b32.xlu0 %v483, 91
        %v1939 = vpop.permute.xlu0 %1938
        %1940 = vrot.lane.b32.xlu0 %v503, 91
        %v1941 = vpop.permute.xlu0 %1940
        %1942 = vrot.lane.b32.xlu0 %v506, 91
        %v1943 = vpop.permute.xlu0 %1942
        %vm1944 = vcmp.lt.s32.totalorder %v539, 91
        %v1945 = vsel %vm1944, %v1937, %v1941
        %v1946 = vsel %vm1944, %v1939, %v1943
        %v1947 = vsel %vm1944, %v1933, %v1937
        %v1948 = vsel %vm1944, %v1935, %v1939
        %v1949 = vsel %vm1944, %v1941, %v1933
        %v1950 = vsel %vm1944, %v1943, %v1935
        %1951 = vset.pattern.permute.xlu0 37
        %1952 = vperm.xlu0 %1951, %v508
        %v1953 = vpop.permute.xlu0 %1952
        %1955 = vset.pattern.permute.xlu0 37
        %1956 = vperm.xlu0 %1955, %v509
        %v1957 = vpop.permute.xlu0 %1956
        %v1959 = vmul.f32 %v1947, %v1953
        %v1960 = vmul.f32 %v1945, %v1953
        %v1961 = vmul.f32 %v1949, %v1953
        %v1962 = vmul.f32 %v1948, %v1957
        %v1963 = vmul.f32 %v1946, %v1957
        %v1964 = vmul.f32 %v1950, %v1957
        %v1965 = vadd.f32 %v1926, %v1959
        %v1966 = vadd.f32 %v1927, %v1960
        %v1967 = vadd.f32 %v1928, %v1961
        %v1968 = vadd.f32 %v1929, %v1962
        %v1969 = vadd.f32 %v1930, %v1963
        %v1970 = vadd.f32 %v1931, %v1964
        %1971 = vrot.lane.b32.xlu0 %v457, 90
        %v1972 = vpop.permute.xlu0 %1971
        %1973 = vrot.lane.b32.xlu0 %v460, 90
        %v1974 = vpop.permute.xlu0 %1973
        %1975 = vrot.lane.b32.xlu0 %v480, 90
        %v1976 = vpop.permute.xlu0 %1975
        %1977 = vrot.lane.b32.xlu0 %v483, 90
        %v1978 = vpop.permute.xlu0 %1977
        %1979 = vrot.lane.b32.xlu0 %v503, 90
        %v1980 = vpop.permute.xlu0 %1979
        %1981 = vrot.lane.b32.xlu0 %v506, 90
        %v1982 = vpop.permute.xlu0 %1981
        %vm1983 = vcmp.lt.s32.totalorder %v539, 90
        %v1984 = vsel %vm1983, %v1976, %v1980
        %v1985 = vsel %vm1983, %v1978, %v1982
        %v1986 = vsel %vm1983, %v1972, %v1976
        %v1987 = vsel %vm1983, %v1974, %v1978
        %v1988 = vsel %vm1983, %v1980, %v1972
        %v1989 = vsel %vm1983, %v1982, %v1974
        %1990 = vset.pattern.permute.xlu0 38
        %1991 = vperm.xlu0 %1990, %v508
        %v1992 = vpop.permute.xlu0 %1991
        %1994 = vset.pattern.permute.xlu0 38
        %1995 = vperm.xlu0 %1994, %v509
        %v1996 = vpop.permute.xlu0 %1995
        %v1998 = vmul.f32 %v1986, %v1992
        %v1999 = vmul.f32 %v1984, %v1992
        %v2000 = vmul.f32 %v1988, %v1992
        %v2001 = vmul.f32 %v1987, %v1996
        %v2002 = vmul.f32 %v1985, %v1996
        %v2003 = vmul.f32 %v1989, %v1996
        %v2004 = vadd.f32 %v1965, %v1998
        %v2005 = vadd.f32 %v1966, %v1999
        %v2006 = vadd.f32 %v1967, %v2000
        %v2007 = vadd.f32 %v1968, %v2001
        %v2008 = vadd.f32 %v1969, %v2002
        %v2009 = vadd.f32 %v1970, %v2003
        %2010 = vrot.lane.b32.xlu0 %v457, 89
        %v2011 = vpop.permute.xlu0 %2010
        %2012 = vrot.lane.b32.xlu0 %v460, 89
        %v2013 = vpop.permute.xlu0 %2012
        %2014 = vrot.lane.b32.xlu0 %v480, 89
        %v2015 = vpop.permute.xlu0 %2014
        %2016 = vrot.lane.b32.xlu0 %v483, 89
        %v2017 = vpop.permute.xlu0 %2016
        %2018 = vrot.lane.b32.xlu0 %v503, 89
        %v2019 = vpop.permute.xlu0 %2018
        %2020 = vrot.lane.b32.xlu0 %v506, 89
        %v2021 = vpop.permute.xlu0 %2020
        %vm2022 = vcmp.lt.s32.totalorder %v539, 89
        %v2023 = vsel %vm2022, %v2015, %v2019
        %v2024 = vsel %vm2022, %v2017, %v2021
        %v2025 = vsel %vm2022, %v2011, %v2015
        %v2026 = vsel %vm2022, %v2013, %v2017
        %v2027 = vsel %vm2022, %v2019, %v2011
        %v2028 = vsel %vm2022, %v2021, %v2013
        %2029 = vset.pattern.permute.xlu0 39
        %2030 = vperm.xlu0 %2029, %v508
        %v2031 = vpop.permute.xlu0 %2030
        %2033 = vset.pattern.permute.xlu0 39
        %2034 = vperm.xlu0 %2033, %v509
        %v2035 = vpop.permute.xlu0 %2034
        %v2037 = vmul.f32 %v2025, %v2031
        %v2038 = vmul.f32 %v2023, %v2031
        %v2039 = vmul.f32 %v2027, %v2031
        %v2040 = vmul.f32 %v2026, %v2035
        %v2041 = vmul.f32 %v2024, %v2035
        %v2042 = vmul.f32 %v2028, %v2035
        %v2043 = vadd.f32 %v2004, %v2037
        %v2044 = vadd.f32 %v2005, %v2038
        %v2045 = vadd.f32 %v2006, %v2039
        %v2046 = vadd.f32 %v2007, %v2040
        %v2047 = vadd.f32 %v2008, %v2041
        %v2048 = vadd.f32 %v2009, %v2042
        %2049 = vrot.lane.b32.xlu0 %v457, 88
        %v2050 = vpop.permute.xlu0 %2049
        %2051 = vrot.lane.b32.xlu0 %v460, 88
        %v2052 = vpop.permute.xlu0 %2051
        %2053 = vrot.lane.b32.xlu0 %v480, 88
        %v2054 = vpop.permute.xlu0 %2053
        %2055 = vrot.lane.b32.xlu0 %v483, 88
        %v2056 = vpop.permute.xlu0 %2055
        %2057 = vrot.lane.b32.xlu0 %v503, 88
        %v2058 = vpop.permute.xlu0 %2057
        %2059 = vrot.lane.b32.xlu0 %v506, 88
        %v2060 = vpop.permute.xlu0 %2059
        %vm2061 = vcmp.lt.s32.totalorder %v539, 88
        %v2062 = vsel %vm2061, %v2054, %v2058
        %v2063 = vsel %vm2061, %v2056, %v2060
        %v2064 = vsel %vm2061, %v2050, %v2054
        %v2065 = vsel %vm2061, %v2052, %v2056
        %v2066 = vsel %vm2061, %v2058, %v2050
        %v2067 = vsel %vm2061, %v2060, %v2052
        %2068 = vset.pattern.permute.xlu0 40
        %2069 = vperm.xlu0 %2068, %v508
        %v2070 = vpop.permute.xlu0 %2069
        %2072 = vset.pattern.permute.xlu0 40
        %2073 = vperm.xlu0 %2072, %v509
        %v2074 = vpop.permute.xlu0 %2073
        %v2076 = vmul.f32 %v2064, %v2070
        %v2077 = vmul.f32 %v2062, %v2070
        %v2078 = vmul.f32 %v2066, %v2070
        %v2079 = vmul.f32 %v2065, %v2074
        %v2080 = vmul.f32 %v2063, %v2074
        %v2081 = vmul.f32 %v2067, %v2074
        %v2082 = vadd.f32 %v2043, %v2076
        %v2083 = vadd.f32 %v2044, %v2077
        %v2084 = vadd.f32 %v2045, %v2078
        %v2085 = vadd.f32 %v2046, %v2079
        %v2086 = vadd.f32 %v2047, %v2080
        %v2087 = vadd.f32 %v2048, %v2081
        %2088 = vrot.lane.b32.xlu0 %v457, 87
        %v2089 = vpop.permute.xlu0 %2088
        %2090 = vrot.lane.b32.xlu0 %v460, 87
        %v2091 = vpop.permute.xlu0 %2090
        %2092 = vrot.lane.b32.xlu0 %v480, 87
        %v2093 = vpop.permute.xlu0 %2092
        %2094 = vrot.lane.b32.xlu0 %v483, 87
        %v2095 = vpop.permute.xlu0 %2094
        %2096 = vrot.lane.b32.xlu0 %v503, 87
        %v2097 = vpop.permute.xlu0 %2096
        %2098 = vrot.lane.b32.xlu0 %v506, 87
        %v2099 = vpop.permute.xlu0 %2098
        %vm2100 = vcmp.lt.s32.totalorder %v539, 87
        %v2101 = vsel %vm2100, %v2093, %v2097
        %v2102 = vsel %vm2100, %v2095, %v2099
        %v2103 = vsel %vm2100, %v2089, %v2093
        %v2104 = vsel %vm2100, %v2091, %v2095
        %v2105 = vsel %vm2100, %v2097, %v2089
        %v2106 = vsel %vm2100, %v2099, %v2091
        %2107 = vset.pattern.permute.xlu0 41
        %2108 = vperm.xlu0 %2107, %v508
        %v2109 = vpop.permute.xlu0 %2108
        %2111 = vset.pattern.permute.xlu0 41
        %2112 = vperm.xlu0 %2111, %v509
        %v2113 = vpop.permute.xlu0 %2112
        %v2115 = vmul.f32 %v2103, %v2109
        %v2116 = vmul.f32 %v2101, %v2109
        %v2117 = vmul.f32 %v2105, %v2109
        %v2118 = vmul.f32 %v2104, %v2113
        %v2119 = vmul.f32 %v2102, %v2113
        %v2120 = vmul.f32 %v2106, %v2113
        %v2121 = vadd.f32 %v2082, %v2115
        %v2122 = vadd.f32 %v2083, %v2116
        %v2123 = vadd.f32 %v2084, %v2117
        %v2124 = vadd.f32 %v2085, %v2118
        %v2125 = vadd.f32 %v2086, %v2119
        %v2126 = vadd.f32 %v2087, %v2120
        %2127 = vrot.lane.b32.xlu0 %v457, 86
        %v2128 = vpop.permute.xlu0 %2127
        %2129 = vrot.lane.b32.xlu0 %v460, 86
        %v2130 = vpop.permute.xlu0 %2129
        %2131 = vrot.lane.b32.xlu0 %v480, 86
        %v2132 = vpop.permute.xlu0 %2131
        %2133 = vrot.lane.b32.xlu0 %v483, 86
        %v2134 = vpop.permute.xlu0 %2133
        %2135 = vrot.lane.b32.xlu0 %v503, 86
        %v2136 = vpop.permute.xlu0 %2135
        %2137 = vrot.lane.b32.xlu0 %v506, 86
        %v2138 = vpop.permute.xlu0 %2137
        %vm2139 = vcmp.lt.s32.totalorder %v539, 86
        %v2140 = vsel %vm2139, %v2132, %v2136
        %v2141 = vsel %vm2139, %v2134, %v2138
        %v2142 = vsel %vm2139, %v2128, %v2132
        %v2143 = vsel %vm2139, %v2130, %v2134
        %v2144 = vsel %vm2139, %v2136, %v2128
        %v2145 = vsel %vm2139, %v2138, %v2130
        %2146 = vset.pattern.permute.xlu0 42
        %2147 = vperm.xlu0 %2146, %v508
        %v2148 = vpop.permute.xlu0 %2147
        %2150 = vset.pattern.permute.xlu0 42
        %2151 = vperm.xlu0 %2150, %v509
        %v2152 = vpop.permute.xlu0 %2151
        %v2154 = vmul.f32 %v2142, %v2148
        %v2155 = vmul.f32 %v2140, %v2148
        %v2156 = vmul.f32 %v2144, %v2148
        %v2157 = vmul.f32 %v2143, %v2152
        %v2158 = vmul.f32 %v2141, %v2152
        %v2159 = vmul.f32 %v2145, %v2152
        %v2160 = vadd.f32 %v2121, %v2154
        %v2161 = vadd.f32 %v2122, %v2155
        %v2162 = vadd.f32 %v2123, %v2156
        %v2163 = vadd.f32 %v2124, %v2157
        %v2164 = vadd.f32 %v2125, %v2158
        %v2165 = vadd.f32 %v2126, %v2159
        %2166 = vrot.lane.b32.xlu0 %v457, 85
        %v2167 = vpop.permute.xlu0 %2166
        %2168 = vrot.lane.b32.xlu0 %v460, 85
        %v2169 = vpop.permute.xlu0 %2168
        %2170 = vrot.lane.b32.xlu0 %v480, 85
        %v2171 = vpop.permute.xlu0 %2170
        %2172 = vrot.lane.b32.xlu0 %v483, 85
        %v2173 = vpop.permute.xlu0 %2172
        %2174 = vrot.lane.b32.xlu0 %v503, 85
        %v2175 = vpop.permute.xlu0 %2174
        %2176 = vrot.lane.b32.xlu0 %v506, 85
        %v2177 = vpop.permute.xlu0 %2176
        %vm2178 = vcmp.lt.s32.totalorder %v539, 85
        %v2179 = vsel %vm2178, %v2171, %v2175
        %v2180 = vsel %vm2178, %v2173, %v2177
        %v2181 = vsel %vm2178, %v2167, %v2171
        %v2182 = vsel %vm2178, %v2169, %v2173
        %v2183 = vsel %vm2178, %v2175, %v2167
        %v2184 = vsel %vm2178, %v2177, %v2169
        %2185 = vset.pattern.permute.xlu0 43
        %2186 = vperm.xlu0 %2185, %v508
        %v2187 = vpop.permute.xlu0 %2186
        %2189 = vset.pattern.permute.xlu0 43
        %2190 = vperm.xlu0 %2189, %v509
        %v2191 = vpop.permute.xlu0 %2190
        %v2193 = vmul.f32 %v2181, %v2187
        %v2194 = vmul.f32 %v2179, %v2187
        %v2195 = vmul.f32 %v2183, %v2187
        %v2196 = vmul.f32 %v2182, %v2191
        %v2197 = vmul.f32 %v2180, %v2191
        %v2198 = vmul.f32 %v2184, %v2191
        %v2199 = vadd.f32 %v2160, %v2193
        %v2200 = vadd.f32 %v2161, %v2194
        %v2201 = vadd.f32 %v2162, %v2195
        %v2202 = vadd.f32 %v2163, %v2196
        %v2203 = vadd.f32 %v2164, %v2197
        %v2204 = vadd.f32 %v2165, %v2198
        %2205 = vrot.lane.b32.xlu0 %v457, 84
        %v2206 = vpop.permute.xlu0 %2205
        %2207 = vrot.lane.b32.xlu0 %v460, 84
        %v2208 = vpop.permute.xlu0 %2207
        %2209 = vrot.lane.b32.xlu0 %v480, 84
        %v2210 = vpop.permute.xlu0 %2209
        %2211 = vrot.lane.b32.xlu0 %v483, 84
        %v2212 = vpop.permute.xlu0 %2211
        %2213 = vrot.lane.b32.xlu0 %v503, 84
        %v2214 = vpop.permute.xlu0 %2213
        %2215 = vrot.lane.b32.xlu0 %v506, 84
        %v2216 = vpop.permute.xlu0 %2215
        %vm2217 = vcmp.lt.s32.totalorder %v539, 84
        %v2218 = vsel %vm2217, %v2210, %v2214
        %v2219 = vsel %vm2217, %v2212, %v2216
        %v2220 = vsel %vm2217, %v2206, %v2210
        %v2221 = vsel %vm2217, %v2208, %v2212
        %v2222 = vsel %vm2217, %v2214, %v2206
        %v2223 = vsel %vm2217, %v2216, %v2208
        %2224 = vset.pattern.permute.xlu0 44
        %2225 = vperm.xlu0 %2224, %v508
        %v2226 = vpop.permute.xlu0 %2225
        %2228 = vset.pattern.permute.xlu0 44
        %2229 = vperm.xlu0 %2228, %v509
        %v2230 = vpop.permute.xlu0 %2229
        %v2232 = vmul.f32 %v2220, %v2226
        %v2233 = vmul.f32 %v2218, %v2226
        %v2234 = vmul.f32 %v2222, %v2226
        %v2235 = vmul.f32 %v2221, %v2230
        %v2236 = vmul.f32 %v2219, %v2230
        %v2237 = vmul.f32 %v2223, %v2230
        %v2238 = vadd.f32 %v2199, %v2232
        %v2239 = vadd.f32 %v2200, %v2233
        %v2240 = vadd.f32 %v2201, %v2234
        %v2241 = vadd.f32 %v2202, %v2235
        %v2242 = vadd.f32 %v2203, %v2236
        %v2243 = vadd.f32 %v2204, %v2237
        %2244 = vrot.lane.b32.xlu0 %v457, 83
        %v2245 = vpop.permute.xlu0 %2244
        %2246 = vrot.lane.b32.xlu0 %v460, 83
        %v2247 = vpop.permute.xlu0 %2246
        %2248 = vrot.lane.b32.xlu0 %v480, 83
        %v2249 = vpop.permute.xlu0 %2248
        %2250 = vrot.lane.b32.xlu0 %v483, 83
        %v2251 = vpop.permute.xlu0 %2250
        %2252 = vrot.lane.b32.xlu0 %v503, 83
        %v2253 = vpop.permute.xlu0 %2252
        %2254 = vrot.lane.b32.xlu0 %v506, 83
        %v2255 = vpop.permute.xlu0 %2254
        %vm2256 = vcmp.lt.s32.totalorder %v539, 83
        %v2257 = vsel %vm2256, %v2249, %v2253
        %v2258 = vsel %vm2256, %v2251, %v2255
        %v2259 = vsel %vm2256, %v2245, %v2249
        %v2260 = vsel %vm2256, %v2247, %v2251
        %v2261 = vsel %vm2256, %v2253, %v2245
        %v2262 = vsel %vm2256, %v2255, %v2247
        %2263 = vset.pattern.permute.xlu0 45
        %2264 = vperm.xlu0 %2263, %v508
        %v2265 = vpop.permute.xlu0 %2264
        %2267 = vset.pattern.permute.xlu0 45
        %2268 = vperm.xlu0 %2267, %v509
        %v2269 = vpop.permute.xlu0 %2268
        %v2271 = vmul.f32 %v2259, %v2265
        %v2272 = vmul.f32 %v2257, %v2265
        %v2273 = vmul.f32 %v2261, %v2265
        %v2274 = vmul.f32 %v2260, %v2269
        %v2275 = vmul.f32 %v2258, %v2269
        %v2276 = vmul.f32 %v2262, %v2269
        %v2277 = vadd.f32 %v2238, %v2271
        %v2278 = vadd.f32 %v2239, %v2272
        %v2279 = vadd.f32 %v2240, %v2273
        %v2280 = vadd.f32 %v2241, %v2274
        %v2281 = vadd.f32 %v2242, %v2275
        %v2282 = vadd.f32 %v2243, %v2276
        %2283 = vrot.lane.b32.xlu0 %v457, 82
        %v2284 = vpop.permute.xlu0 %2283
        %2285 = vrot.lane.b32.xlu0 %v460, 82
        %v2286 = vpop.permute.xlu0 %2285
        %2287 = vrot.lane.b32.xlu0 %v480, 82
        %v2288 = vpop.permute.xlu0 %2287
        %2289 = vrot.lane.b32.xlu0 %v483, 82
        %v2290 = vpop.permute.xlu0 %2289
        %2291 = vrot.lane.b32.xlu0 %v503, 82
        %v2292 = vpop.permute.xlu0 %2291
        %2293 = vrot.lane.b32.xlu0 %v506, 82
        %v2294 = vpop.permute.xlu0 %2293
        %vm2295 = vcmp.lt.s32.totalorder %v539, 82
        %v2296 = vsel %vm2295, %v2288, %v2292
        %v2297 = vsel %vm2295, %v2290, %v2294
        %v2298 = vsel %vm2295, %v2284, %v2288
        %v2299 = vsel %vm2295, %v2286, %v2290
        %v2300 = vsel %vm2295, %v2292, %v2284
        %v2301 = vsel %vm2295, %v2294, %v2286
        %2302 = vset.pattern.permute.xlu0 46
        %2303 = vperm.xlu0 %2302, %v508
        %v2304 = vpop.permute.xlu0 %2303
        %2306 = vset.pattern.permute.xlu0 46
        %2307 = vperm.xlu0 %2306, %v509
        %v2308 = vpop.permute.xlu0 %2307
        %v2310 = vmul.f32 %v2298, %v2304
        %v2311 = vmul.f32 %v2296, %v2304
        %v2312 = vmul.f32 %v2300, %v2304
        %v2313 = vmul.f32 %v2299, %v2308
        %v2314 = vmul.f32 %v2297, %v2308
        %v2315 = vmul.f32 %v2301, %v2308
        %v2316 = vadd.f32 %v2277, %v2310
        %v2317 = vadd.f32 %v2278, %v2311
        %v2318 = vadd.f32 %v2279, %v2312
        %v2319 = vadd.f32 %v2280, %v2313
        %v2320 = vadd.f32 %v2281, %v2314
        %v2321 = vadd.f32 %v2282, %v2315
        %2322 = vrot.lane.b32.xlu0 %v457, 81
        %v2323 = vpop.permute.xlu0 %2322
        %2324 = vrot.lane.b32.xlu0 %v460, 81
        %v2325 = vpop.permute.xlu0 %2324
        %2326 = vrot.lane.b32.xlu0 %v480, 81
        %v2327 = vpop.permute.xlu0 %2326
        %2328 = vrot.lane.b32.xlu0 %v483, 81
        %v2329 = vpop.permute.xlu0 %2328
        %2330 = vrot.lane.b32.xlu0 %v503, 81
        %v2331 = vpop.permute.xlu0 %2330
        %2332 = vrot.lane.b32.xlu0 %v506, 81
        %v2333 = vpop.permute.xlu0 %2332
        %vm2334 = vcmp.lt.s32.totalorder %v539, 81
        %v2335 = vsel %vm2334, %v2327, %v2331
        %v2336 = vsel %vm2334, %v2329, %v2333
        %v2337 = vsel %vm2334, %v2323, %v2327
        %v2338 = vsel %vm2334, %v2325, %v2329
        %v2339 = vsel %vm2334, %v2331, %v2323
        %v2340 = vsel %vm2334, %v2333, %v2325
        %2341 = vset.pattern.permute.xlu0 47
        %2342 = vperm.xlu0 %2341, %v508
        %v2343 = vpop.permute.xlu0 %2342
        %2345 = vset.pattern.permute.xlu0 47
        %2346 = vperm.xlu0 %2345, %v509
        %v2347 = vpop.permute.xlu0 %2346
        %v2349 = vmul.f32 %v2337, %v2343
        %v2350 = vmul.f32 %v2335, %v2343
        %v2351 = vmul.f32 %v2339, %v2343
        %v2352 = vmul.f32 %v2338, %v2347
        %v2353 = vmul.f32 %v2336, %v2347
        %v2354 = vmul.f32 %v2340, %v2347
        %v2355 = vadd.f32 %v2316, %v2349
        %v2356 = vadd.f32 %v2317, %v2350
        %v2357 = vadd.f32 %v2318, %v2351
        %v2358 = vadd.f32 %v2319, %v2352
        %v2359 = vadd.f32 %v2320, %v2353
        %v2360 = vadd.f32 %v2321, %v2354
        %2361 = vrot.lane.b32.xlu0 %v457, 80
        %v2362 = vpop.permute.xlu0 %2361
        %2363 = vrot.lane.b32.xlu0 %v460, 80
        %v2364 = vpop.permute.xlu0 %2363
        %2365 = vrot.lane.b32.xlu0 %v480, 80
        %v2366 = vpop.permute.xlu0 %2365
        %2367 = vrot.lane.b32.xlu0 %v483, 80
        %v2368 = vpop.permute.xlu0 %2367
        %2369 = vrot.lane.b32.xlu0 %v503, 80
        %v2370 = vpop.permute.xlu0 %2369
        %2371 = vrot.lane.b32.xlu0 %v506, 80
        %v2372 = vpop.permute.xlu0 %2371
        %vm2373 = vcmp.lt.s32.totalorder %v539, 80
        %v2374 = vsel %vm2373, %v2366, %v2370
        %v2375 = vsel %vm2373, %v2368, %v2372
        %v2376 = vsel %vm2373, %v2362, %v2366
        %v2377 = vsel %vm2373, %v2364, %v2368
        %v2378 = vsel %vm2373, %v2370, %v2362
        %v2379 = vsel %vm2373, %v2372, %v2364
        %2380 = vset.pattern.permute.xlu0 48
        %2381 = vperm.xlu0 %2380, %v508
        %v2382 = vpop.permute.xlu0 %2381
        %2384 = vset.pattern.permute.xlu0 48
        %2385 = vperm.xlu0 %2384, %v509
        %v2386 = vpop.permute.xlu0 %2385
        %v2388 = vmul.f32 %v2376, %v2382
        %v2389 = vmul.f32 %v2374, %v2382
        %v2390 = vmul.f32 %v2378, %v2382
        %v2391 = vmul.f32 %v2377, %v2386
        %v2392 = vmul.f32 %v2375, %v2386
        %v2393 = vmul.f32 %v2379, %v2386
        %v2394 = vadd.f32 %v2355, %v2388
        %v2395 = vadd.f32 %v2356, %v2389
        %v2396 = vadd.f32 %v2357, %v2390
        %v2397 = vadd.f32 %v2358, %v2391
        %v2398 = vadd.f32 %v2359, %v2392
        %v2399 = vadd.f32 %v2360, %v2393
        %2400 = vrot.lane.b32.xlu0 %v457, 79
        %v2401 = vpop.permute.xlu0 %2400
        %2402 = vrot.lane.b32.xlu0 %v460, 79
        %v2403 = vpop.permute.xlu0 %2402
        %2404 = vrot.lane.b32.xlu0 %v480, 79
        %v2405 = vpop.permute.xlu0 %2404
        %2406 = vrot.lane.b32.xlu0 %v483, 79
        %v2407 = vpop.permute.xlu0 %2406
        %2408 = vrot.lane.b32.xlu0 %v503, 79
        %v2409 = vpop.permute.xlu0 %2408
        %2410 = vrot.lane.b32.xlu0 %v506, 79
        %v2411 = vpop.permute.xlu0 %2410
        %vm2412 = vcmp.lt.s32.totalorder %v539, 79
        %v2413 = vsel %vm2412, %v2405, %v2409
        %v2414 = vsel %vm2412, %v2407, %v2411
        %v2415 = vsel %vm2412, %v2401, %v2405
        %v2416 = vsel %vm2412, %v2403, %v2407
        %v2417 = vsel %vm2412, %v2409, %v2401
        %v2418 = vsel %vm2412, %v2411, %v2403
        %2419 = vset.pattern.permute.xlu0 49
        %2420 = vperm.xlu0 %2419, %v508
        %v2421 = vpop.permute.xlu0 %2420
        %2423 = vset.pattern.permute.xlu0 49
        %2424 = vperm.xlu0 %2423, %v509
        %v2425 = vpop.permute.xlu0 %2424
        %v2427 = vmul.f32 %v2415, %v2421
        %v2428 = vmul.f32 %v2413, %v2421
        %v2429 = vmul.f32 %v2417, %v2421
        %v2430 = vmul.f32 %v2416, %v2425
        %v2431 = vmul.f32 %v2414, %v2425
        %v2432 = vmul.f32 %v2418, %v2425
        %v2433 = vadd.f32 %v2394, %v2427
        %v2434 = vadd.f32 %v2395, %v2428
        %v2435 = vadd.f32 %v2396, %v2429
        %v2436 = vadd.f32 %v2397, %v2430
        %v2437 = vadd.f32 %v2398, %v2431
        %v2438 = vadd.f32 %v2399, %v2432
        %2439 = vrot.lane.b32.xlu0 %v457, 78
        %v2440 = vpop.permute.xlu0 %2439
        %2441 = vrot.lane.b32.xlu0 %v460, 78
        %v2442 = vpop.permute.xlu0 %2441
        %2443 = vrot.lane.b32.xlu0 %v480, 78
        %v2444 = vpop.permute.xlu0 %2443
        %2445 = vrot.lane.b32.xlu0 %v483, 78
        %v2446 = vpop.permute.xlu0 %2445
        %2447 = vrot.lane.b32.xlu0 %v503, 78
        %v2448 = vpop.permute.xlu0 %2447
        %2449 = vrot.lane.b32.xlu0 %v506, 78
        %v2450 = vpop.permute.xlu0 %2449
        %vm2451 = vcmp.lt.s32.totalorder %v539, 78
        %v2452 = vsel %vm2451, %v2444, %v2448
        %v2453 = vsel %vm2451, %v2446, %v2450
        %v2454 = vsel %vm2451, %v2440, %v2444
        %v2455 = vsel %vm2451, %v2442, %v2446
        %v2456 = vsel %vm2451, %v2448, %v2440
        %v2457 = vsel %vm2451, %v2450, %v2442
        %2458 = vset.pattern.permute.xlu0 50
        %2459 = vperm.xlu0 %2458, %v508
        %v2460 = vpop.permute.xlu0 %2459
        %2462 = vset.pattern.permute.xlu0 50
        %2463 = vperm.xlu0 %2462, %v509
        %v2464 = vpop.permute.xlu0 %2463
        %v2466 = vmul.f32 %v2454, %v2460
        %v2467 = vmul.f32 %v2452, %v2460
        %v2468 = vmul.f32 %v2456, %v2460
        %v2469 = vmul.f32 %v2455, %v2464
        %v2470 = vmul.f32 %v2453, %v2464
        %v2471 = vmul.f32 %v2457, %v2464
        %v2472 = vadd.f32 %v2433, %v2466
        %v2473 = vadd.f32 %v2434, %v2467
        %v2474 = vadd.f32 %v2435, %v2468
        %v2475 = vadd.f32 %v2436, %v2469
        %v2476 = vadd.f32 %v2437, %v2470
        %v2477 = vadd.f32 %v2438, %v2471
        %2478 = vrot.lane.b32.xlu0 %v457, 77
        %v2479 = vpop.permute.xlu0 %2478
        %2480 = vrot.lane.b32.xlu0 %v460, 77
        %v2481 = vpop.permute.xlu0 %2480
        %2482 = vrot.lane.b32.xlu0 %v480, 77
        %v2483 = vpop.permute.xlu0 %2482
        %2484 = vrot.lane.b32.xlu0 %v483, 77
        %v2485 = vpop.permute.xlu0 %2484
        %2486 = vrot.lane.b32.xlu0 %v503, 77
        %v2487 = vpop.permute.xlu0 %2486
        %2488 = vrot.lane.b32.xlu0 %v506, 77
        %v2489 = vpop.permute.xlu0 %2488
        %vm2490 = vcmp.lt.s32.totalorder %v539, 77
        %v2491 = vsel %vm2490, %v2483, %v2487
        %v2492 = vsel %vm2490, %v2485, %v2489
        %v2493 = vsel %vm2490, %v2479, %v2483
        %v2494 = vsel %vm2490, %v2481, %v2485
        %v2495 = vsel %vm2490, %v2487, %v2479
        %v2496 = vsel %vm2490, %v2489, %v2481
        %2497 = vset.pattern.permute.xlu0 51
        %2498 = vperm.xlu0 %2497, %v508
        %v2499 = vpop.permute.xlu0 %2498
        %2501 = vset.pattern.permute.xlu0 51
        %2502 = vperm.xlu0 %2501, %v509
        %v2503 = vpop.permute.xlu0 %2502
        %v2505 = vmul.f32 %v2493, %v2499
        %v2506 = vmul.f32 %v2491, %v2499
        %v2507 = vmul.f32 %v2495, %v2499
        %v2508 = vmul.f32 %v2494, %v2503
        %v2509 = vmul.f32 %v2492, %v2503
        %v2510 = vmul.f32 %v2496, %v2503
        %v2511 = vadd.f32 %v2472, %v2505
        %v2512 = vadd.f32 %v2473, %v2506
        %v2513 = vadd.f32 %v2474, %v2507
        %v2514 = vadd.f32 %v2475, %v2508
        %v2515 = vadd.f32 %v2476, %v2509
        %v2516 = vadd.f32 %v2477, %v2510
        %2517 = vrot.lane.b32.xlu0 %v457, 76
        %v2518 = vpop.permute.xlu0 %2517
        %2519 = vrot.lane.b32.xlu0 %v460, 76
        %v2520 = vpop.permute.xlu0 %2519
        %2521 = vrot.lane.b32.xlu0 %v480, 76
        %v2522 = vpop.permute.xlu0 %2521
        %2523 = vrot.lane.b32.xlu0 %v483, 76
        %v2524 = vpop.permute.xlu0 %2523
        %2525 = vrot.lane.b32.xlu0 %v503, 76
        %v2526 = vpop.permute.xlu0 %2525
        %2527 = vrot.lane.b32.xlu0 %v506, 76
        %v2528 = vpop.permute.xlu0 %2527
        %vm2529 = vcmp.lt.s32.totalorder %v539, 76
        %v2530 = vsel %vm2529, %v2522, %v2526
        %v2531 = vsel %vm2529, %v2524, %v2528
        %v2532 = vsel %vm2529, %v2518, %v2522
        %v2533 = vsel %vm2529, %v2520, %v2524
        %v2534 = vsel %vm2529, %v2526, %v2518
        %v2535 = vsel %vm2529, %v2528, %v2520
        %2536 = vset.pattern.permute.xlu0 52
        %2537 = vperm.xlu0 %2536, %v508
        %v2538 = vpop.permute.xlu0 %2537
        %2540 = vset.pattern.permute.xlu0 52
        %2541 = vperm.xlu0 %2540, %v509
        %v2542 = vpop.permute.xlu0 %2541
        %v2544 = vmul.f32 %v2532, %v2538
        %v2545 = vmul.f32 %v2530, %v2538
        %v2546 = vmul.f32 %v2534, %v2538
        %v2547 = vmul.f32 %v2533, %v2542
        %v2548 = vmul.f32 %v2531, %v2542
        %v2549 = vmul.f32 %v2535, %v2542
        %v2550 = vadd.f32 %v2511, %v2544
        %v2551 = vadd.f32 %v2512, %v2545
        %v2552 = vadd.f32 %v2513, %v2546
        %v2553 = vadd.f32 %v2514, %v2547
        %v2554 = vadd.f32 %v2515, %v2548
        %v2555 = vadd.f32 %v2516, %v2549
        %2556 = vrot.lane.b32.xlu0 %v457, 75
        %v2557 = vpop.permute.xlu0 %2556
        %2558 = vrot.lane.b32.xlu0 %v460, 75
        %v2559 = vpop.permute.xlu0 %2558
        %2560 = vrot.lane.b32.xlu0 %v480, 75
        %v2561 = vpop.permute.xlu0 %2560
        %2562 = vrot.lane.b32.xlu0 %v483, 75
        %v2563 = vpop.permute.xlu0 %2562
        %2564 = vrot.lane.b32.xlu0 %v503, 75
        %v2565 = vpop.permute.xlu0 %2564
        %2566 = vrot.lane.b32.xlu0 %v506, 75
        %v2567 = vpop.permute.xlu0 %2566
        %vm2568 = vcmp.lt.s32.totalorder %v539, 75
        %v2569 = vsel %vm2568, %v2561, %v2565
        %v2570 = vsel %vm2568, %v2563, %v2567
        %v2571 = vsel %vm2568, %v2557, %v2561
        %v2572 = vsel %vm2568, %v2559, %v2563
        %v2573 = vsel %vm2568, %v2565, %v2557
        %v2574 = vsel %vm2568, %v2567, %v2559
        %2575 = vset.pattern.permute.xlu0 53
        %2576 = vperm.xlu0 %2575, %v508
        %v2577 = vpop.permute.xlu0 %2576
        %2579 = vset.pattern.permute.xlu0 53
        %2580 = vperm.xlu0 %2579, %v509
        %v2581 = vpop.permute.xlu0 %2580
        %v2583 = vmul.f32 %v2571, %v2577
        %v2584 = vmul.f32 %v2569, %v2577
        %v2585 = vmul.f32 %v2573, %v2577
        %v2586 = vmul.f32 %v2572, %v2581
        %v2587 = vmul.f32 %v2570, %v2581
        %v2588 = vmul.f32 %v2574, %v2581
        %v2589 = vadd.f32 %v2550, %v2583
        %v2590 = vadd.f32 %v2551, %v2584
        %v2591 = vadd.f32 %v2552, %v2585
        %v2592 = vadd.f32 %v2553, %v2586
        %v2593 = vadd.f32 %v2554, %v2587
        %v2594 = vadd.f32 %v2555, %v2588
        %2595 = vrot.lane.b32.xlu0 %v457, 74
        %v2596 = vpop.permute.xlu0 %2595
        %2597 = vrot.lane.b32.xlu0 %v460, 74
        %v2598 = vpop.permute.xlu0 %2597
        %2599 = vrot.lane.b32.xlu0 %v480, 74
        %v2600 = vpop.permute.xlu0 %2599
        %2601 = vrot.lane.b32.xlu0 %v483, 74
        %v2602 = vpop.permute.xlu0 %2601
        %2603 = vrot.lane.b32.xlu0 %v503, 74
        %v2604 = vpop.permute.xlu0 %2603
        %2605 = vrot.lane.b32.xlu0 %v506, 74
        %v2606 = vpop.permute.xlu0 %2605
        %vm2607 = vcmp.lt.s32.totalorder %v539, 74
        %v2608 = vsel %vm2607, %v2600, %v2604
        %v2609 = vsel %vm2607, %v2602, %v2606
        %v2610 = vsel %vm2607, %v2596, %v2600
        %v2611 = vsel %vm2607, %v2598, %v2602
        %v2612 = vsel %vm2607, %v2604, %v2596
        %v2613 = vsel %vm2607, %v2606, %v2598
        %2614 = vset.pattern.permute.xlu0 54
        %2615 = vperm.xlu0 %2614, %v508
        %v2616 = vpop.permute.xlu0 %2615
        %2618 = vset.pattern.permute.xlu0 54
        %2619 = vperm.xlu0 %2618, %v509
        %v2620 = vpop.permute.xlu0 %2619
        %v2622 = vmul.f32 %v2610, %v2616
        %v2623 = vmul.f32 %v2608, %v2616
        %v2624 = vmul.f32 %v2612, %v2616
        %v2625 = vmul.f32 %v2611, %v2620
        %v2626 = vmul.f32 %v2609, %v2620
        %v2627 = vmul.f32 %v2613, %v2620
        %v2628 = vadd.f32 %v2589, %v2622
        %v2629 = vadd.f32 %v2590, %v2623
        %v2630 = vadd.f32 %v2591, %v2624
        %v2631 = vadd.f32 %v2592, %v2625
        %v2632 = vadd.f32 %v2593, %v2626
        %v2633 = vadd.f32 %v2594, %v2627
        %2634 = vrot.lane.b32.xlu0 %v457, 73
        %v2635 = vpop.permute.xlu0 %2634
        %2636 = vrot.lane.b32.xlu0 %v460, 73
        %v2637 = vpop.permute.xlu0 %2636
        %2638 = vrot.lane.b32.xlu0 %v480, 73
        %v2639 = vpop.permute.xlu0 %2638
        %2640 = vrot.lane.b32.xlu0 %v483, 73
        %v2641 = vpop.permute.xlu0 %2640
        %2642 = vrot.lane.b32.xlu0 %v503, 73
        %v2643 = vpop.permute.xlu0 %2642
        %2644 = vrot.lane.b32.xlu0 %v506, 73
        %v2645 = vpop.permute.xlu0 %2644
        %vm2646 = vcmp.lt.s32.totalorder %v539, 73
        %v2647 = vsel %vm2646, %v2639, %v2643
        %v2648 = vsel %vm2646, %v2641, %v2645
        %v2649 = vsel %vm2646, %v2635, %v2639
        %v2650 = vsel %vm2646, %v2637, %v2641
        %v2651 = vsel %vm2646, %v2643, %v2635
        %v2652 = vsel %vm2646, %v2645, %v2637
        %2653 = vset.pattern.permute.xlu0 55
        %2654 = vperm.xlu0 %2653, %v508
        %v2655 = vpop.permute.xlu0 %2654
        %2657 = vset.pattern.permute.xlu0 55
        %2658 = vperm.xlu0 %2657, %v509
        %v2659 = vpop.permute.xlu0 %2658
        %v2661 = vmul.f32 %v2649, %v2655
        %v2662 = vmul.f32 %v2647, %v2655
        %v2663 = vmul.f32 %v2651, %v2655
        %v2664 = vmul.f32 %v2650, %v2659
        %v2665 = vmul.f32 %v2648, %v2659
        %v2666 = vmul.f32 %v2652, %v2659
        %v2667 = vadd.f32 %v2628, %v2661
        %v2668 = vadd.f32 %v2629, %v2662
        %v2669 = vadd.f32 %v2630, %v2663
        %v2670 = vadd.f32 %v2631, %v2664
        %v2671 = vadd.f32 %v2632, %v2665
        %v2672 = vadd.f32 %v2633, %v2666
        %2673 = vrot.lane.b32.xlu0 %v457, 72
        %v2674 = vpop.permute.xlu0 %2673
        %2675 = vrot.lane.b32.xlu0 %v460, 72
        %v2676 = vpop.permute.xlu0 %2675
        %2677 = vrot.lane.b32.xlu0 %v480, 72
        %v2678 = vpop.permute.xlu0 %2677
        %2679 = vrot.lane.b32.xlu0 %v483, 72
        %v2680 = vpop.permute.xlu0 %2679
        %2681 = vrot.lane.b32.xlu0 %v503, 72
        %v2682 = vpop.permute.xlu0 %2681
        %2683 = vrot.lane.b32.xlu0 %v506, 72
        %v2684 = vpop.permute.xlu0 %2683
        %vm2685 = vcmp.lt.s32.totalorder %v539, 72
        %v2686 = vsel %vm2685, %v2678, %v2682
        %v2687 = vsel %vm2685, %v2680, %v2684
        %v2688 = vsel %vm2685, %v2674, %v2678
        %v2689 = vsel %vm2685, %v2676, %v2680
        %v2690 = vsel %vm2685, %v2682, %v2674
        %v2691 = vsel %vm2685, %v2684, %v2676
        %2692 = vset.pattern.permute.xlu0 56
        %2693 = vperm.xlu0 %2692, %v508
        %v2694 = vpop.permute.xlu0 %2693
        %2696 = vset.pattern.permute.xlu0 56
        %2697 = vperm.xlu0 %2696, %v509
        %v2698 = vpop.permute.xlu0 %2697
        %v2700 = vmul.f32 %v2688, %v2694
        %v2701 = vmul.f32 %v2686, %v2694
        %v2702 = vmul.f32 %v2690, %v2694
        %v2703 = vmul.f32 %v2689, %v2698
        %v2704 = vmul.f32 %v2687, %v2698
        %v2705 = vmul.f32 %v2691, %v2698
        %v2706 = vadd.f32 %v2667, %v2700
        %v2707 = vadd.f32 %v2668, %v2701
        %v2708 = vadd.f32 %v2669, %v2702
        %v2709 = vadd.f32 %v2670, %v2703
        %v2710 = vadd.f32 %v2671, %v2704
        %v2711 = vadd.f32 %v2672, %v2705
        %2712 = vrot.lane.b32.xlu0 %v457, 71
        %v2713 = vpop.permute.xlu0 %2712
        %2714 = vrot.lane.b32.xlu0 %v460, 71
        %v2715 = vpop.permute.xlu0 %2714
        %2716 = vrot.lane.b32.xlu0 %v480, 71
        %v2717 = vpop.permute.xlu0 %2716
        %2718 = vrot.lane.b32.xlu0 %v483, 71
        %v2719 = vpop.permute.xlu0 %2718
        %2720 = vrot.lane.b32.xlu0 %v503, 71
        %v2721 = vpop.permute.xlu0 %2720
        %2722 = vrot.lane.b32.xlu0 %v506, 71
        %v2723 = vpop.permute.xlu0 %2722
        %vm2724 = vcmp.lt.s32.totalorder %v539, 71
        %v2725 = vsel %vm2724, %v2717, %v2721
        %v2726 = vsel %vm2724, %v2719, %v2723
        %v2727 = vsel %vm2724, %v2713, %v2717
        %v2728 = vsel %vm2724, %v2715, %v2719
        %v2729 = vsel %vm2724, %v2721, %v2713
        %v2730 = vsel %vm2724, %v2723, %v2715
        %2731 = vset.pattern.permute.xlu0 57
        %2732 = vperm.xlu0 %2731, %v508
        %v2733 = vpop.permute.xlu0 %2732
        %2735 = vset.pattern.permute.xlu0 57
        %2736 = vperm.xlu0 %2735, %v509
        %v2737 = vpop.permute.xlu0 %2736
        %v2739 = vmul.f32 %v2727, %v2733
        %v2740 = vmul.f32 %v2725, %v2733
        %v2741 = vmul.f32 %v2729, %v2733
        %v2742 = vmul.f32 %v2728, %v2737
        %v2743 = vmul.f32 %v2726, %v2737
        %v2744 = vmul.f32 %v2730, %v2737
        %v2745 = vadd.f32 %v2706, %v2739
        %v2746 = vadd.f32 %v2707, %v2740
        %v2747 = vadd.f32 %v2708, %v2741
        %v2748 = vadd.f32 %v2709, %v2742
        %v2749 = vadd.f32 %v2710, %v2743
        %v2750 = vadd.f32 %v2711, %v2744
        %2751 = vrot.lane.b32.xlu0 %v457, 70
        %v2752 = vpop.permute.xlu0 %2751
        %2753 = vrot.lane.b32.xlu0 %v460, 70
        %v2754 = vpop.permute.xlu0 %2753
        %2755 = vrot.lane.b32.xlu0 %v480, 70
        %v2756 = vpop.permute.xlu0 %2755
        %2757 = vrot.lane.b32.xlu0 %v483, 70
        %v2758 = vpop.permute.xlu0 %2757
        %2759 = vrot.lane.b32.xlu0 %v503, 70
        %v2760 = vpop.permute.xlu0 %2759
        %2761 = vrot.lane.b32.xlu0 %v506, 70
        %v2762 = vpop.permute.xlu0 %2761
        %vm2763 = vcmp.lt.s32.totalorder %v539, 70
        %v2764 = vsel %vm2763, %v2756, %v2760
        %v2765 = vsel %vm2763, %v2758, %v2762
        %v2766 = vsel %vm2763, %v2752, %v2756
        %v2767 = vsel %vm2763, %v2754, %v2758
        %v2768 = vsel %vm2763, %v2760, %v2752
        %v2769 = vsel %vm2763, %v2762, %v2754
        %2770 = vset.pattern.permute.xlu0 58
        %2771 = vperm.xlu0 %2770, %v508
        %v2772 = vpop.permute.xlu0 %2771
        %2774 = vset.pattern.permute.xlu0 58
        %2775 = vperm.xlu0 %2774, %v509
        %v2776 = vpop.permute.xlu0 %2775
        %v2778 = vmul.f32 %v2766, %v2772
        %v2779 = vmul.f32 %v2764, %v2772
        %v2780 = vmul.f32 %v2768, %v2772
        %v2781 = vmul.f32 %v2767, %v2776
        %v2782 = vmul.f32 %v2765, %v2776
        %v2783 = vmul.f32 %v2769, %v2776
        %v2784 = vadd.f32 %v2745, %v2778
        %v2785 = vadd.f32 %v2746, %v2779
        %v2786 = vadd.f32 %v2747, %v2780
        %v2787 = vadd.f32 %v2748, %v2781
        %v2788 = vadd.f32 %v2749, %v2782
        %v2789 = vadd.f32 %v2750, %v2783
        %2790 = vrot.lane.b32.xlu0 %v457, 69
        %v2791 = vpop.permute.xlu0 %2790
        %2792 = vrot.lane.b32.xlu0 %v460, 69
        %v2793 = vpop.permute.xlu0 %2792
        %2794 = vrot.lane.b32.xlu0 %v480, 69
        %v2795 = vpop.permute.xlu0 %2794
        %2796 = vrot.lane.b32.xlu0 %v483, 69
        %v2797 = vpop.permute.xlu0 %2796
        %2798 = vrot.lane.b32.xlu0 %v503, 69
        %v2799 = vpop.permute.xlu0 %2798
        %2800 = vrot.lane.b32.xlu0 %v506, 69
        %v2801 = vpop.permute.xlu0 %2800
        %vm2802 = vcmp.lt.s32.totalorder %v539, 69
        %v2803 = vsel %vm2802, %v2795, %v2799
        %v2804 = vsel %vm2802, %v2797, %v2801
        %v2805 = vsel %vm2802, %v2791, %v2795
        %v2806 = vsel %vm2802, %v2793, %v2797
        %v2807 = vsel %vm2802, %v2799, %v2791
        %v2808 = vsel %vm2802, %v2801, %v2793
        %2809 = vset.pattern.permute.xlu0 59
        %2810 = vperm.xlu0 %2809, %v508
        %v2811 = vpop.permute.xlu0 %2810
        %2813 = vset.pattern.permute.xlu0 59
        %2814 = vperm.xlu0 %2813, %v509
        %v2815 = vpop.permute.xlu0 %2814
        %v2817 = vmul.f32 %v2805, %v2811
        %v2818 = vmul.f32 %v2803, %v2811
        %v2819 = vmul.f32 %v2807, %v2811
        %v2820 = vmul.f32 %v2806, %v2815
        %v2821 = vmul.f32 %v2804, %v2815
        %v2822 = vmul.f32 %v2808, %v2815
        %v2823 = vadd.f32 %v2784, %v2817
        %v2824 = vadd.f32 %v2785, %v2818
        %v2825 = vadd.f32 %v2786, %v2819
        %v2826 = vadd.f32 %v2787, %v2820
        %v2827 = vadd.f32 %v2788, %v2821
        %v2828 = vadd.f32 %v2789, %v2822
        %2829 = vrot.lane.b32.xlu0 %v457, 68
        %v2830 = vpop.permute.xlu0 %2829
        %2831 = vrot.lane.b32.xlu0 %v460, 68
        %v2832 = vpop.permute.xlu0 %2831
        %2833 = vrot.lane.b32.xlu0 %v480, 68
        %v2834 = vpop.permute.xlu0 %2833
        %2835 = vrot.lane.b32.xlu0 %v483, 68
        %v2836 = vpop.permute.xlu0 %2835
        %2837 = vrot.lane.b32.xlu0 %v503, 68
        %v2838 = vpop.permute.xlu0 %2837
        %2839 = vrot.lane.b32.xlu0 %v506, 68
        %v2840 = vpop.permute.xlu0 %2839
        %vm2841 = vcmp.lt.s32.totalorder %v539, 68
        %v2842 = vsel %vm2841, %v2834, %v2838
        %v2843 = vsel %vm2841, %v2836, %v2840
        %v2844 = vsel %vm2841, %v2830, %v2834
        %v2845 = vsel %vm2841, %v2832, %v2836
        %v2846 = vsel %vm2841, %v2838, %v2830
        %v2847 = vsel %vm2841, %v2840, %v2832
        %2848 = vset.pattern.permute.xlu0 60
        %2849 = vperm.xlu0 %2848, %v508
        %v2850 = vpop.permute.xlu0 %2849
        %2852 = vset.pattern.permute.xlu0 60
        %2853 = vperm.xlu0 %2852, %v509
        %v2854 = vpop.permute.xlu0 %2853
        %v2856 = vmul.f32 %v2844, %v2850
        %v2857 = vmul.f32 %v2842, %v2850
        %v2858 = vmul.f32 %v2846, %v2850
        %v2859 = vmul.f32 %v2845, %v2854
        %v2860 = vmul.f32 %v2843, %v2854
        %v2861 = vmul.f32 %v2847, %v2854
        %v2862 = vadd.f32 %v2823, %v2856
        %v2863 = vadd.f32 %v2824, %v2857
        %v2864 = vadd.f32 %v2825, %v2858
        %v2865 = vadd.f32 %v2826, %v2859
        %v2866 = vadd.f32 %v2827, %v2860
        %v2867 = vadd.f32 %v2828, %v2861
        %2868 = vrot.lane.b32.xlu0 %v457, 67
        %v2869 = vpop.permute.xlu0 %2868
        %2870 = vrot.lane.b32.xlu0 %v460, 67
        %v2871 = vpop.permute.xlu0 %2870
        %2872 = vrot.lane.b32.xlu0 %v480, 67
        %v2873 = vpop.permute.xlu0 %2872
        %2874 = vrot.lane.b32.xlu0 %v483, 67
        %v2875 = vpop.permute.xlu0 %2874
        %2876 = vrot.lane.b32.xlu0 %v503, 67
        %v2877 = vpop.permute.xlu0 %2876
        %2878 = vrot.lane.b32.xlu0 %v506, 67
        %v2879 = vpop.permute.xlu0 %2878
        %vm2880 = vcmp.lt.s32.totalorder %v539, 67
        %v2881 = vsel %vm2880, %v2873, %v2877
        %v2882 = vsel %vm2880, %v2875, %v2879
        %v2883 = vsel %vm2880, %v2869, %v2873
        %v2884 = vsel %vm2880, %v2871, %v2875
        %v2885 = vsel %vm2880, %v2877, %v2869
        %v2886 = vsel %vm2880, %v2879, %v2871
        %2887 = vset.pattern.permute.xlu0 61
        %2888 = vperm.xlu0 %2887, %v508
        %v2889 = vpop.permute.xlu0 %2888
        %2891 = vset.pattern.permute.xlu0 61
        %2892 = vperm.xlu0 %2891, %v509
        %v2893 = vpop.permute.xlu0 %2892
        %v2895 = vmul.f32 %v2883, %v2889
        %v2896 = vmul.f32 %v2881, %v2889
        %v2897 = vmul.f32 %v2885, %v2889
        %v2898 = vmul.f32 %v2884, %v2893
        %v2899 = vmul.f32 %v2882, %v2893
        %v2900 = vmul.f32 %v2886, %v2893
        %v2901 = vadd.f32 %v2862, %v2895
        %v2902 = vadd.f32 %v2863, %v2896
        %v2903 = vadd.f32 %v2864, %v2897
        %v2904 = vadd.f32 %v2865, %v2898
        %v2905 = vadd.f32 %v2866, %v2899
        %v2906 = vadd.f32 %v2867, %v2900
        %2907 = vrot.lane.b32.xlu0 %v457, 66
        %v2908 = vpop.permute.xlu0 %2907
        %2909 = vrot.lane.b32.xlu0 %v460, 66
        %v2910 = vpop.permute.xlu0 %2909
        %2911 = vrot.lane.b32.xlu0 %v480, 66
        %v2912 = vpop.permute.xlu0 %2911
        %2913 = vrot.lane.b32.xlu0 %v483, 66
        %v2914 = vpop.permute.xlu0 %2913
        %2915 = vrot.lane.b32.xlu0 %v503, 66
        %v2916 = vpop.permute.xlu0 %2915
        %2917 = vrot.lane.b32.xlu0 %v506, 66
        %v2918 = vpop.permute.xlu0 %2917
        %vm2919 = vcmp.lt.s32.totalorder %v539, 66
        %v2920 = vsel %vm2919, %v2912, %v2916
        %v2921 = vsel %vm2919, %v2914, %v2918
        %v2922 = vsel %vm2919, %v2908, %v2912
        %v2923 = vsel %vm2919, %v2910, %v2914
        %v2924 = vsel %vm2919, %v2916, %v2908
        %v2925 = vsel %vm2919, %v2918, %v2910
        %2926 = vset.pattern.permute.xlu0 62
        %2927 = vperm.xlu0 %2926, %v508
        %v2928 = vpop.permute.xlu0 %2927
        %2930 = vset.pattern.permute.xlu0 62
        %2931 = vperm.xlu0 %2930, %v509
        %v2932 = vpop.permute.xlu0 %2931
        %v2934 = vmul.f32 %v2922, %v2928
        %v2935 = vmul.f32 %v2920, %v2928
        %v2936 = vmul.f32 %v2924, %v2928
        %v2937 = vmul.f32 %v2923, %v2932
        %v2938 = vmul.f32 %v2921, %v2932
        %v2939 = vmul.f32 %v2925, %v2932
        %v2940 = vadd.f32 %v2901, %v2934
        %v2941 = vadd.f32 %v2902, %v2935
        %v2942 = vadd.f32 %v2903, %v2936
        %v2943 = vadd.f32 %v2904, %v2937
        %v2944 = vadd.f32 %v2905, %v2938
        %v2945 = vadd.f32 %v2906, %v2939
        %2946 = vrot.lane.b32.xlu0 %v457, 65
        %v2947 = vpop.permute.xlu0 %2946
        %2948 = vrot.lane.b32.xlu0 %v460, 65
        %v2949 = vpop.permute.xlu0 %2948
        %2950 = vrot.lane.b32.xlu0 %v480, 65
        %v2951 = vpop.permute.xlu0 %2950
        %2952 = vrot.lane.b32.xlu0 %v483, 65
        %v2953 = vpop.permute.xlu0 %2952
        %2954 = vrot.lane.b32.xlu0 %v503, 65
        %v2955 = vpop.permute.xlu0 %2954
        %2956 = vrot.lane.b32.xlu0 %v506, 65
        %v2957 = vpop.permute.xlu0 %2956
        %vm2958 = vcmp.lt.s32.totalorder %v539, 65
        %v2959 = vsel %vm2958, %v2951, %v2955
        %v2960 = vsel %vm2958, %v2953, %v2957
        %v2961 = vsel %vm2958, %v2947, %v2951
        %v2962 = vsel %vm2958, %v2949, %v2953
        %v2963 = vsel %vm2958, %v2955, %v2947
        %v2964 = vsel %vm2958, %v2957, %v2949
        %2965 = vset.pattern.permute.xlu0 63
        %2966 = vperm.xlu0 %2965, %v508
        %v2967 = vpop.permute.xlu0 %2966
        %2969 = vset.pattern.permute.xlu0 63
        %2970 = vperm.xlu0 %2969, %v509
        %v2971 = vpop.permute.xlu0 %2970
        %v2973 = vmul.f32 %v2961, %v2967
        %v2974 = vmul.f32 %v2959, %v2967
        %v2975 = vmul.f32 %v2963, %v2967
        %v2976 = vmul.f32 %v2962, %v2971
        %v2977 = vmul.f32 %v2960, %v2971
        %v2978 = vmul.f32 %v2964, %v2971
        %v2979 = vadd.f32 %v2940, %v2973
        %v2980 = vadd.f32 %v2941, %v2974
        %v2981 = vadd.f32 %v2942, %v2975
        %v2982 = vadd.f32 %v2943, %v2976
        %v2983 = vadd.f32 %v2944, %v2977
        %v2984 = vadd.f32 %v2945, %v2978
        %v2985 = vld [vmem:[%s3] sm:$0xff]
        %v2986 = vld [vmem:[%s3 + $0x8] sm:$0xff]
        %2988 = vset.pattern.permute.xlu0 0
        %2989 = vperm.xlu0 %2988, %v2985
        %v2990 = vpop.permute.xlu0 %2989
        %2993 = vset.pattern.permute.xlu0 0
        %2994 = vperm.xlu0 %2993, %v2986
        %v2995 = vpop.permute.xlu0 %2994
        %v2997 = vadd.f32 %v2979, %v2990
        %v2998 = vadd.f32 %v2980, %v2990
        %v2999 = vadd.f32 %v2981, %v2990
        %v3000 = vadd.f32 %v2982, %v2995
        %v3001 = vadd.f32 %v2983, %v2995
        %v3002 = vadd.f32 %v2984, %v2995
        %vm3003 = vcmp.gt.f32.partialorder %v2997, 0.0
        %vm3004 = vcmp.gt.f32.partialorder %v2998, 0.0
        %vm3005 = vcmp.gt.f32.partialorder %v2999, 0.0
        %vm3006 = vcmp.gt.f32.partialorder %v3000, 0.0
        %vm3007 = vcmp.gt.f32.partialorder %v3001, 0.0
        %vm3008 = vcmp.gt.f32.partialorder %v3002, 0.0
        %v3009 = vmin.f32 %v2997, 0.0
        %v3010 = vmin.f32 %v2998, 0.0
        %v3011 = vmin.f32 %v2999, 0.0
        %v3012 = vmin.f32 %v3000, 0.0
        %v3013 = vmin.f32 %v3001, 0.0
        %v3014 = vmin.f32 %v3002, 0.0
        %v3015 = vmul.f32 %v3009, 1.442695
        %v3016 = vpow.pop %v3015
        %v3017 = vmul.f32 %v3010, 1.442695
        %v3018 = vpow.pop %v3017
        %v3019 = vmul.f32 %v3011, 1.442695
        %v3020 = vpow.pop %v3019
        %v3021 = vmul.f32 %v3012, 1.442695
        %v3022 = vpow.pop %v3021
        %v3023 = vmul.f32 %v3013, 1.442695
        %v3024 = vpow.pop %v3023
        %v3025 = vmul.f32 %v3014, 1.442695
        %v3026 = vpow.pop %v3025
        %v3027 = vsub.f32 %v3016, 1.0
        %v3028 = vsub.f32 %v3018, 1.0
        %v3029 = vsub.f32 %v3020, 1.0
        %v3030 = vsub.f32 %v3022, 1.0
        %v3031 = vsub.f32 %v3024, 1.0
        %v3032 = vsub.f32 %v3026, 1.0
        %v3033 = vsel %vm3003, %v2997, %v3027
        %v3034 = vsel %vm3004, %v2998, %v3028
        %v3035 = vsel %vm3005, %v2999, %v3029
        %v3036 = vsel %vm3006, %v3000, %v3030
        %v3037 = vsel %vm3007, %v3001, %v3031
        %v3038 = vsel %vm3008, %v3002, %v3032
        %v3039 = vld [vmem:[%s4] sm:$0xff]
        %v3040 = vld [vmem:[%s4 + $0x8] sm:$0xff]
        %v3041 = vld [vmem:[%s4 + $0x10] sm:$0xff]
        %v3042 = vld [vmem:[%s4 + $0x18] sm:$0xff]
        %v3043 = vld [vmem:[%s4 + $0x20] sm:$0xff]
        %v3044 = vld [vmem:[%s4 + $0x28] sm:$0xff]
        %v3045 = vld [vmem:[%s4 + $0x30] sm:$0xff]
        %v3046 = vld [vmem:[%s4 + $0x38] sm:$0xff]
        %v3047 = vld [vmem:[%s4 + $0x40] sm:$0xff]
        %v3048 = vld [vmem:[%s4 + $0x48] sm:$0xff]
        %v3049 = vld [vmem:[%s4 + $0x50] sm:$0xff]
        %v3050 = vld [vmem:[%s4 + $0x58] sm:$0xff]
        %v3051 = vld [vmem:[%s4 + $0x60] sm:$0xff]
        %v3052 = vld [vmem:[%s4 + $0x68] sm:$0xff]
        %v3053 = vld [vmem:[%s4 + $0x70] sm:$0xff]
        %v3054 = vld [vmem:[%s4 + $0x78] sm:$0xff]
        %v3055 = vld [vmem:[%s4 + $0x80] sm:$0xff]
        %v3056 = vld [vmem:[%s4 + $0x88] sm:$0xff]
        %v3057 = vld [vmem:[%s4 + $0x90] sm:$0xff]
        %v3058 = vld [vmem:[%s4 + $0x98] sm:$0xff]
        %v3059 = vld [vmem:[%s4 + $0xa0] sm:$0xff]
        %v3060 = vld [vmem:[%s4 + $0xa8] sm:$0xff]
        %v3061 = vld [vmem:[%s4 + $0xb0] sm:$0xff]
        %v3062 = vld [vmem:[%s4 + $0xb8] sm:$0xff]
        %v3063 = vld [vmem:[%s4 + $0xc0] sm:$0xff]
        %v3064 = vld [vmem:[%s4 + $0xc8] sm:$0xff]
        %v3065 = vld [vmem:[%s4 + $0xd0] sm:$0xff]
        %v3066 = vld [vmem:[%s4 + $0xd8] sm:$0xff]
        %v3067 = vld [vmem:[%s4 + $0xe0] sm:$0xff]
        %v3068 = vld [vmem:[%s4 + $0xe8] sm:$0xff]
        %v3069 = vld [vmem:[%s4 + $0xf0] sm:$0xff]
        %v3070 = vld [vmem:[%s4 + $0xf8] sm:$0xff]
        %v3071 = vld [vmem:[%s4 + $0x100] sm:$0xff]
        %v3072 = vld [vmem:[%s4 + $0x108] sm:$0xff]
        %v3073 = vld [vmem:[%s4 + $0x110] sm:$0xff]
        %v3074 = vld [vmem:[%s4 + $0x118] sm:$0xff]
        %v3075 = vld [vmem:[%s4 + $0x120] sm:$0xff]
        %v3076 = vld [vmem:[%s4 + $0x128] sm:$0xff]
        %v3077 = vld [vmem:[%s4 + $0x130] sm:$0xff]
        %v3078 = vld [vmem:[%s4 + $0x138] sm:$0xff]
        %v3079 = vld [vmem:[%s4 + $0x140] sm:$0xff]
        %v3080 = vld [vmem:[%s4 + $0x148] sm:$0xff]
        %v3081 = vld [vmem:[%s4 + $0x150] sm:$0xff]
        %v3082 = vld [vmem:[%s4 + $0x158] sm:$0xff]
        %v3083 = vld [vmem:[%s4 + $0x160] sm:$0xff]
        %v3084 = vld [vmem:[%s4 + $0x168] sm:$0xff]
        %v3085 = vld [vmem:[%s4 + $0x170] sm:$0xff]
        %v3086 = vld [vmem:[%s4 + $0x178] sm:$0xff]
        %3087 = vmatpush.msra.mxu0 %v3054
        %3088 = vmatpush.msra.mxu0 %v3053
        %3089 = vmatpush.msra.mxu0 %v3052
        %3090 = vmatpush.msra.mxu0 %v3051
        %3091 = vmatpush.msra.mxu0 %v3050
        %3092 = vmatpush.msra.mxu0 %v3049
        %3093 = vmatpush.msra.mxu0 %v3048
        %3094 = vmatpush.msra.mxu0 %v3047
        %3095 = vmatpush.msra.mxu0 %v3046
        %3096 = vmatpush.msra.mxu0 %v3045
        %3097 = vmatpush.msra.mxu0 %v3044
        %3098 = vmatpush.msra.mxu0 %v3043
        %3099 = vmatpush.msra.mxu0 %v3042
        %3100 = vmatpush.msra.mxu0 %v3041
        %3101 = vmatpush.msra.mxu0 %v3040
        %3102 = vmatpush.msra.mxu0 %v3039
        %3103 = vmatmul.f32.gmra.mxu0 %v3033
        %v3104 = vpop.f32.mrf.mxu0
        %v3105 = vadd.f32 0.0, %v3104
        %3106 = vmatmul.f32.gmra.mxu0 %v3036
        %v3107 = vpop.f32.mrf.mxu0
        %v3108 = vadd.f32 0.0, %v3107
        %3109 = vdwg.mxu0
        %3110 = vmatpush.msra.mxu0 %v3070
        %3111 = vmatpush.msra.mxu0 %v3069
        %3112 = vmatpush.msra.mxu0 %v3068
        %3113 = vmatpush.msra.mxu0 %v3067
        %3114 = vmatpush.msra.mxu0 %v3066
        %3115 = vmatpush.msra.mxu0 %v3065
        %3116 = vmatpush.msra.mxu0 %v3064
        %3117 = vmatpush.msra.mxu0 %v3063
        %3118 = vmatpush.msra.mxu0 %v3062
        %3119 = vmatpush.msra.mxu0 %v3061
        %3120 = vmatpush.msra.mxu0 %v3060
        %3121 = vmatpush.msra.mxu0 %v3059
        %3122 = vmatpush.msra.mxu0 %v3058
        %3123 = vmatpush.msra.mxu0 %v3057
        %3124 = vmatpush.msra.mxu0 %v3056
        %3125 = vmatpush.msra.mxu0 %v3055
        %3126 = vmatmul.f32.gmra.mxu0 %v3034
        %v3127 = vpop.f32.mrf.mxu0
        %v3128 = vadd.f32 %v3105, %v3127
        %3129 = vmatmul.f32.gmra.mxu0 %v3037
        %v3130 = vpop.f32.mrf.mxu0
        %v3131 = vadd.f32 %v3108, %v3130
        %3132 = vdwg.mxu0
        %3133 = vmatpush.msra.mxu0 %v3086
        %3134 = vmatpush.msra.mxu0 %v3085
        %3135 = vmatpush.msra.mxu0 %v3084
        %3136 = vmatpush.msra.mxu0 %v3083
        %3137 = vmatpush.msra.mxu0 %v3082
        %3138 = vmatpush.msra.mxu0 %v3081
        %3139 = vmatpush.msra.mxu0 %v3080
        %3140 = vmatpush.msra.mxu0 %v3079
        %3141 = vmatpush.msra.mxu0 %v3078
        %3142 = vmatpush.msra.mxu0 %v3077
        %3143 = vmatpush.msra.mxu0 %v3076
        %3144 = vmatpush.msra.mxu0 %v3075
        %3145 = vmatpush.msra.mxu0 %v3074
        %3146 = vmatpush.msra.mxu0 %v3073
        %3147 = vmatpush.msra.mxu0 %v3072
        %3148 = vmatpush.msra.mxu0 %v3071
        %3149 = vmatmul.f32.gmra.mxu0 %v3035
        %v3150 = vpop.f32.mrf.mxu0
        %v3151 = vadd.f32 %v3128, %v3150
        %3152 = vmatmul.f32.gmra.mxu0 %v3038
        %v3153 = vpop.f32.mrf.mxu0
        %v3154 = vadd.f32 %v3131, %v3153
        %3155 = vdwg.mxu0
        %v3156 = vld [vmem:[%s5] sm:$0xff]
        %v3157 = vld [vmem:[%s5 + $0x8] sm:$0xff]
        %3159 = vset.pattern.permute.xlu0 0
        %3160 = vperm.xlu0 %3159, %v3156
        %v3161 = vpop.permute.xlu0 %3160
        %3164 = vset.pattern.permute.xlu0 0
        %3165 = vperm.xlu0 %3164, %v3157
        %v3166 = vpop.permute.xlu0 %3165
        %v3168 = vmul.f32 %v3151, %v3161
        %v3169 = vmul.f32 %v3154, %v3166
        %3170 = vrot.lane.b32.xlu0 %v3151, 127
        %v3171 = vpop.permute.xlu0 %3170
        %3172 = vrot.lane.b32.xlu0 %v3154, 127
        %v3173 = vpop.permute.xlu0 %3172
        %3174 = vset.pattern.permute.xlu0 1
        %3175 = vperm.xlu0 %3174, %v3156
        %v3176 = vpop.permute.xlu0 %3175
        %3178 = vset.pattern.permute.xlu0 1
        %3179 = vperm.xlu0 %3178, %v3157
        %v3180 = vpop.permute.xlu0 %3179
        %v3182 = vmul.f32 %v3171, %v3176
        %v3183 = vmul.f32 %v3173, %v3180
        %v3184 = vadd.f32 %v3168, %v3182
        %v3185 = vadd.f32 %v3169, %v3183
        %3186 = vrot.lane.b32.xlu0 %v3151, 126
        %v3187 = vpop.permute.xlu0 %3186
        %3188 = vrot.lane.b32.xlu0 %v3154, 126
        %v3189 = vpop.permute.xlu0 %3188
        %3190 = vset.pattern.permute.xlu0 2
        %3191 = vperm.xlu0 %3190, %v3156
        %v3192 = vpop.permute.xlu0 %3191
        %3194 = vset.pattern.permute.xlu0 2
        %3195 = vperm.xlu0 %3194, %v3157
        %v3196 = vpop.permute.xlu0 %3195
        %v3198 = vmul.f32 %v3187, %v3192
        %v3199 = vmul.f32 %v3189, %v3196
        %v3200 = vadd.f32 %v3184, %v3198
        %v3201 = vadd.f32 %v3185, %v3199
        %3202 = vrot.lane.b32.xlu0 %v3151, 125
        %v3203 = vpop.permute.xlu0 %3202
        %3204 = vrot.lane.b32.xlu0 %v3154, 125
        %v3205 = vpop.permute.xlu0 %3204
        %3206 = vset.pattern.permute.xlu0 3
        %3207 = vperm.xlu0 %3206, %v3156
        %v3208 = vpop.permute.xlu0 %3207
        %3210 = vset.pattern.permute.xlu0 3
        %3211 = vperm.xlu0 %3210, %v3157
        %v3212 = vpop.permute.xlu0 %3211
        %v3214 = vmul.f32 %v3203, %v3208
        %v3215 = vmul.f32 %v3205, %v3212
        %v3216 = vadd.f32 %v3200, %v3214
        %v3217 = vadd.f32 %v3201, %v3215
        %3218 = vrot.lane.b32.xlu0 %v3151, 124
        %v3219 = vpop.permute.xlu0 %3218
        %3220 = vrot.lane.b32.xlu0 %v3154, 124
        %v3221 = vpop.permute.xlu0 %3220
        %3222 = vset.pattern.permute.xlu0 4
        %3223 = vperm.xlu0 %3222, %v3156
        %v3224 = vpop.permute.xlu0 %3223
        %3226 = vset.pattern.permute.xlu0 4
        %3227 = vperm.xlu0 %3226, %v3157
        %v3228 = vpop.permute.xlu0 %3227
        %v3230 = vmul.f32 %v3219, %v3224
        %v3231 = vmul.f32 %v3221, %v3228
        %v3232 = vadd.f32 %v3216, %v3230
        %v3233 = vadd.f32 %v3217, %v3231
        %3234 = vrot.lane.b32.xlu0 %v3151, 123
        %v3235 = vpop.permute.xlu0 %3234
        %3236 = vrot.lane.b32.xlu0 %v3154, 123
        %v3237 = vpop.permute.xlu0 %3236
        %3238 = vset.pattern.permute.xlu0 5
        %3239 = vperm.xlu0 %3238, %v3156
        %v3240 = vpop.permute.xlu0 %3239
        %3242 = vset.pattern.permute.xlu0 5
        %3243 = vperm.xlu0 %3242, %v3157
        %v3244 = vpop.permute.xlu0 %3243
        %v3246 = vmul.f32 %v3235, %v3240
        %v3247 = vmul.f32 %v3237, %v3244
        %v3248 = vadd.f32 %v3232, %v3246
        %v3249 = vadd.f32 %v3233, %v3247
        %3250 = vrot.lane.b32.xlu0 %v3151, 122
        %v3251 = vpop.permute.xlu0 %3250
        %3252 = vrot.lane.b32.xlu0 %v3154, 122
        %v3253 = vpop.permute.xlu0 %3252
        %3254 = vset.pattern.permute.xlu0 6
        %3255 = vperm.xlu0 %3254, %v3156
        %v3256 = vpop.permute.xlu0 %3255
        %3258 = vset.pattern.permute.xlu0 6
        %3259 = vperm.xlu0 %3258, %v3157
        %v3260 = vpop.permute.xlu0 %3259
        %v3262 = vmul.f32 %v3251, %v3256
        %v3263 = vmul.f32 %v3253, %v3260
        %v3264 = vadd.f32 %v3248, %v3262
        %v3265 = vadd.f32 %v3249, %v3263
        %3266 = vrot.lane.b32.xlu0 %v3151, 121
        %v3267 = vpop.permute.xlu0 %3266
        %3268 = vrot.lane.b32.xlu0 %v3154, 121
        %v3269 = vpop.permute.xlu0 %3268
        %3270 = vset.pattern.permute.xlu0 7
        %3271 = vperm.xlu0 %3270, %v3156
        %v3272 = vpop.permute.xlu0 %3271
        %3274 = vset.pattern.permute.xlu0 7
        %3275 = vperm.xlu0 %3274, %v3157
        %v3276 = vpop.permute.xlu0 %3275
        %v3278 = vmul.f32 %v3267, %v3272
        %v3279 = vmul.f32 %v3269, %v3276
        %v3280 = vadd.f32 %v3264, %v3278
        %v3281 = vadd.f32 %v3265, %v3279
        %3282 = vrot.lane.b32.xlu0 %v3151, 120
        %v3283 = vpop.permute.xlu0 %3282
        %3284 = vrot.lane.b32.xlu0 %v3154, 120
        %v3285 = vpop.permute.xlu0 %3284
        %3286 = vset.pattern.permute.xlu0 8
        %3287 = vperm.xlu0 %3286, %v3156
        %v3288 = vpop.permute.xlu0 %3287
        %3290 = vset.pattern.permute.xlu0 8
        %3291 = vperm.xlu0 %3290, %v3157
        %v3292 = vpop.permute.xlu0 %3291
        %v3294 = vmul.f32 %v3283, %v3288
        %v3295 = vmul.f32 %v3285, %v3292
        %v3296 = vadd.f32 %v3280, %v3294
        %v3297 = vadd.f32 %v3281, %v3295
        %3298 = vrot.lane.b32.xlu0 %v3151, 119
        %v3299 = vpop.permute.xlu0 %3298
        %3300 = vrot.lane.b32.xlu0 %v3154, 119
        %v3301 = vpop.permute.xlu0 %3300
        %3302 = vset.pattern.permute.xlu0 9
        %3303 = vperm.xlu0 %3302, %v3156
        %v3304 = vpop.permute.xlu0 %3303
        %3306 = vset.pattern.permute.xlu0 9
        %3307 = vperm.xlu0 %3306, %v3157
        %v3308 = vpop.permute.xlu0 %3307
        %v3310 = vmul.f32 %v3299, %v3304
        %v3311 = vmul.f32 %v3301, %v3308
        %v3312 = vadd.f32 %v3296, %v3310
        %v3313 = vadd.f32 %v3297, %v3311
        %3314 = vrot.lane.b32.xlu0 %v3151, 118
        %v3315 = vpop.permute.xlu0 %3314
        %3316 = vrot.lane.b32.xlu0 %v3154, 118
        %v3317 = vpop.permute.xlu0 %3316
        %3318 = vset.pattern.permute.xlu0 10
        %3319 = vperm.xlu0 %3318, %v3156
        %v3320 = vpop.permute.xlu0 %3319
        %3322 = vset.pattern.permute.xlu0 10
        %3323 = vperm.xlu0 %3322, %v3157
        %v3324 = vpop.permute.xlu0 %3323
        %v3326 = vmul.f32 %v3315, %v3320
        %v3327 = vmul.f32 %v3317, %v3324
        %v3328 = vadd.f32 %v3312, %v3326
        %v3329 = vadd.f32 %v3313, %v3327
        %3330 = vrot.lane.b32.xlu0 %v3151, 117
        %v3331 = vpop.permute.xlu0 %3330
        %3332 = vrot.lane.b32.xlu0 %v3154, 117
        %v3333 = vpop.permute.xlu0 %3332
        %3334 = vset.pattern.permute.xlu0 11
        %3335 = vperm.xlu0 %3334, %v3156
        %v3336 = vpop.permute.xlu0 %3335
        %3338 = vset.pattern.permute.xlu0 11
        %3339 = vperm.xlu0 %3338, %v3157
        %v3340 = vpop.permute.xlu0 %3339
        %v3342 = vmul.f32 %v3331, %v3336
        %v3343 = vmul.f32 %v3333, %v3340
        %v3344 = vadd.f32 %v3328, %v3342
        %v3345 = vadd.f32 %v3329, %v3343
        %3346 = vrot.lane.b32.xlu0 %v3151, 116
        %v3347 = vpop.permute.xlu0 %3346
        %3348 = vrot.lane.b32.xlu0 %v3154, 116
        %v3349 = vpop.permute.xlu0 %3348
        %3350 = vset.pattern.permute.xlu0 12
        %3351 = vperm.xlu0 %3350, %v3156
        %v3352 = vpop.permute.xlu0 %3351
        %3354 = vset.pattern.permute.xlu0 12
        %3355 = vperm.xlu0 %3354, %v3157
        %v3356 = vpop.permute.xlu0 %3355
        %v3358 = vmul.f32 %v3347, %v3352
        %v3359 = vmul.f32 %v3349, %v3356
        %v3360 = vadd.f32 %v3344, %v3358
        %v3361 = vadd.f32 %v3345, %v3359
        %3362 = vrot.lane.b32.xlu0 %v3151, 115
        %v3363 = vpop.permute.xlu0 %3362
        %3364 = vrot.lane.b32.xlu0 %v3154, 115
        %v3365 = vpop.permute.xlu0 %3364
        %3366 = vset.pattern.permute.xlu0 13
        %3367 = vperm.xlu0 %3366, %v3156
        %v3368 = vpop.permute.xlu0 %3367
        %3370 = vset.pattern.permute.xlu0 13
        %3371 = vperm.xlu0 %3370, %v3157
        %v3372 = vpop.permute.xlu0 %3371
        %v3374 = vmul.f32 %v3363, %v3368
        %v3375 = vmul.f32 %v3365, %v3372
        %v3376 = vadd.f32 %v3360, %v3374
        %v3377 = vadd.f32 %v3361, %v3375
        %3378 = vrot.lane.b32.xlu0 %v3151, 114
        %v3379 = vpop.permute.xlu0 %3378
        %3380 = vrot.lane.b32.xlu0 %v3154, 114
        %v3381 = vpop.permute.xlu0 %3380
        %3382 = vset.pattern.permute.xlu0 14
        %3383 = vperm.xlu0 %3382, %v3156
        %v3384 = vpop.permute.xlu0 %3383
        %3386 = vset.pattern.permute.xlu0 14
        %3387 = vperm.xlu0 %3386, %v3157
        %v3388 = vpop.permute.xlu0 %3387
        %v3390 = vmul.f32 %v3379, %v3384
        %v3391 = vmul.f32 %v3381, %v3388
        %v3392 = vadd.f32 %v3376, %v3390
        %v3393 = vadd.f32 %v3377, %v3391
        %3394 = vrot.lane.b32.xlu0 %v3151, 113
        %v3395 = vpop.permute.xlu0 %3394
        %3396 = vrot.lane.b32.xlu0 %v3154, 113
        %v3397 = vpop.permute.xlu0 %3396
        %3398 = vset.pattern.permute.xlu0 15
        %3399 = vperm.xlu0 %3398, %v3156
        %v3400 = vpop.permute.xlu0 %3399
        %3402 = vset.pattern.permute.xlu0 15
        %3403 = vperm.xlu0 %3402, %v3157
        %v3404 = vpop.permute.xlu0 %3403
        %v3406 = vmul.f32 %v3395, %v3400
        %v3407 = vmul.f32 %v3397, %v3404
        %v3408 = vadd.f32 %v3392, %v3406
        %v3409 = vadd.f32 %v3393, %v3407
        %v3410 = vld [vmem:[%s6] sm:$0xff]
        %v3411 = vld [vmem:[%s6 + $0x8] sm:$0xff]
        %v3412 = vld [vmem:[%s7] sm:$0xff]
        %v3413 = vld [vmem:[%s7 + $0x8] sm:$0xff]
        %3415 = vset.pattern.permute.xlu0 0
        %3416 = vperm.xlu0 %3415, %v3412
        %v3417 = vpop.permute.xlu0 %3416
        %3420 = vset.pattern.permute.xlu0 0
        %3421 = vperm.xlu0 %3420, %v3413
        %v3422 = vpop.permute.xlu0 %3421
        %vm3424 = vcmask 130048
        %v3426 = vsel %vm3424, %v3410, 0
        %v3429 = vsel %vm3424, %v3411, 0
        %3431 = vmatpush.msra.mxu0 0.0
        %3432 = vmatpush.msra.mxu0 0.0
        %3433 = vmatpush.msra.mxu0 0.0
        %3434 = vmatpush.msra.mxu0 0.0
        %3435 = vmatpush.msra.mxu0 0.0
        %3436 = vmatpush.msra.mxu0 0.0
        %3437 = vmatpush.msra.mxu0 0.0
        %3438 = vmatpush.msra.mxu0 0.0
        %3439 = vmatpush.msra.mxu0 0.0
        %3440 = vmatpush.msra.mxu0 0.0
        %3441 = vmatpush.msra.mxu0 0.0
        %3442 = vmatpush.msra.mxu0 0.0
        %3443 = vmatpush.msra.mxu0 0.0
        %3444 = vmatpush.msra.mxu0 0.0
        %3445 = vmatpush.msra.mxu0 %v3409
        %3446 = vmatpush.msra.mxu0 %v3408
        %3447 = vmatmul.f32.gmra.mxu0 %v3426
        %v3448 = vpop.f32.mrf.mxu0
        %v3449 = vadd.f32 %v3417, %v3448
        %3450 = vmatmul.f32.gmra.mxu0 %v3429
        %v3451 = vpop.f32.mrf.mxu0
        %v3452 = vadd.f32 %v3422, %v3451
        %3453 = vdwg.mxu0
        %vm3454 = vcmp.gt.f32.partialorder %v3449, 0.0
        %vm3455 = vcmp.gt.f32.partialorder %v3452, 0.0
        %v3456 = vmin.f32 %v3449, 0.0
        %v3457 = vmin.f32 %v3452, 0.0
        %v3458 = vmul.f32 %v3456, 1.442695
        %v3459 = vpow.pop %v3458
        %v3460 = vmul.f32 %v3457, 1.442695
        %v3461 = vpow.pop %v3460
        %v3462 = vsub.f32 %v3459, 1.0
        %v3463 = vsub.f32 %v3461, 1.0
        %v3464 = vsel %vm3454, %v3449, %v3462
        %v3465 = vsel %vm3455, %v3452, %v3463
        %v3466 = vld [vmem:[%s8] sm:$0xff]
        %v3467 = vld [vmem:[%s8 + $0x8] sm:$0xff]
        %v3468 = vld [vmem:[%s8 + $0x10] sm:$0xff]
        %v3469 = vld [vmem:[%s8 + $0x18] sm:$0xff]
        %v3470 = vld [vmem:[%s8 + $0x20] sm:$0xff]
        %v3471 = vld [vmem:[%s8 + $0x28] sm:$0xff]
        %v3472 = vld [vmem:[%s8 + $0x30] sm:$0xff]
        %v3473 = vld [vmem:[%s8 + $0x38] sm:$0xff]
        %v3474 = vld [vmem:[%s8 + $0x40] sm:$0xff]
        %v3475 = vld [vmem:[%s8 + $0x48] sm:$0xff]
        %v3476 = vld [vmem:[%s8 + $0x50] sm:$0xff]
        %v3477 = vld [vmem:[%s8 + $0x58] sm:$0xff]
        %v3478 = vld [vmem:[%s8 + $0x60] sm:$0xff]
        %v3479 = vld [vmem:[%s8 + $0x68] sm:$0xff]
        %v3480 = vld [vmem:[%s8 + $0x70] sm:$0xff]
        %v3481 = vld [vmem:[%s8 + $0x78] sm:$0xff]
        %3482 = vmatpush.msra.mxu0 %v3481
        %3483 = vmatpush.msra.mxu0 %v3480
        %3484 = vmatpush.msra.mxu0 %v3479
        %3485 = vmatpush.msra.mxu0 %v3478
        %3486 = vmatpush.msra.mxu0 %v3477
        %3487 = vmatpush.msra.mxu0 %v3476
        %3488 = vmatpush.msra.mxu0 %v3475
        %3489 = vmatpush.msra.mxu0 %v3474
        %3490 = vmatpush.msra.mxu0 %v3473
        %3491 = vmatpush.msra.mxu0 %v3472
        %3492 = vmatpush.msra.mxu0 %v3471
        %3493 = vmatpush.msra.mxu0 %v3470
        %3494 = vmatpush.msra.mxu0 %v3469
        %3495 = vmatpush.msra.mxu0 %v3468
        %3496 = vmatpush.msra.mxu0 %v3467
        %3497 = vmatpush.msra.mxu0 %v3466
        %3498 = vmatmul.f32.gmra.mxu0 %v3464
        %v3499 = vpop.f32.mrf.mxu0
        %v3500 = vadd.f32 0.0, %v3499
        %3501 = vmatmul.f32.gmra.mxu0 %v3465
        %v3502 = vpop.f32.mrf.mxu0
        %v3503 = vadd.f32 0.0, %v3502
        %3504 = vdwg.mxu0
        %v3505 = vld [vmem:[%s9] sm:$0xff]
        %v3506 = vld [vmem:[%s9 + $0x8] sm:$0xff]
        %v3507 = vmul.f32 %v3500, %v3505
        %v3508 = vmul.f32 %v3503, %v3506
        %vm3509 = vcmask 392192
        %v3510 = vsel %vm3509, %v3507, 0.0
        %v3511 = vsel %vm3509, %v3508, 0.0
        %v3512 = vadd.f32 %v3510, %v3511
        %v3513 = vrot.slane %v3512, 4
        %v3514 = vadd.f32 %v3512, %v3513
        %v3515 = vrot.slane %v3514, 2
        %v3516 = vadd.f32 %v3514, %v3515
        %v3517 = vrot.slane %v3516, 1
        %v3518 = vadd.f32 %v3516, %v3517
        %v3519 = vld [vmem:[%s10] sm:$0xff]
        %v3520 = vld [vmem:[%s10 + $0x8] sm:$0xff]
        %v3521 = vld [vmem:[%s10 + $0x10] sm:$0xff]
        %v3522 = vld [vmem:[%s10 + $0x18] sm:$0xff]
        %v3523 = vld [vmem:[%s10 + $0x20] sm:$0xff]
        %v3524 = vld [vmem:[%s10 + $0x28] sm:$0xff]
        %v3525 = vld [vmem:[%s11] sm:$0x1]
        %v3527 = vsel %vm3509, %v3518, 0
        %3529 = vmatpush.msra.mxu0 0.0
        %3530 = vmatpush.msra.mxu0 0.0
        %3531 = vmatpush.msra.mxu0 0.0
        %3532 = vmatpush.msra.mxu0 0.0
        %3533 = vmatpush.msra.mxu0 0.0
        %3534 = vmatpush.msra.mxu0 0.0
        %3535 = vmatpush.msra.mxu0 0.0
        %3536 = vmatpush.msra.mxu0 0.0
        %3537 = vmatpush.msra.mxu0 0.0
        %3538 = vmatpush.msra.mxu0 0.0
        %3539 = vmatpush.msra.mxu0 %v3524
        %3540 = vmatpush.msra.mxu0 %v3523
        %3541 = vmatpush.msra.mxu0 %v3522
        %3542 = vmatpush.msra.mxu0 %v3521
        %3543 = vmatpush.msra.mxu0 %v3520
        %3544 = vmatpush.msra.mxu0 %v3519
        %3545 = vmatmul.f32.gmra.mxu0 %v3527
        %v3546 = vpop.f32.mrf.mxu0
        %v3547 = vadd.f32 %v3525, %v3546
        %3548 = vdwg.mxu0
        %vm3549 = vcmask 16384
        %3550 = vst.msk [vmem:[%s405] sm:$0x1] %vm3549, %v3547
        %s3551 = sand.u32 %s291, 1
        %s3552 = scalar_lea.sflag [#allocation3], %s3551
        %s3553 = sand.u32 %s291, 1
        %s3554 = scalar_lea.vmem [#allocation2], %s3553
        // Predicated region
        $region69: #{eegnet_25s_forward.1} parent=67 // pred_check
          %p3555 = pneg %p301
        $region70: #{eegnet_25s_forward.1} parent=67 // pred_check_branch
          %3557 = sbr.rel (%p3555) target = $region72
        $region71: #{eegnet_25s_forward.1} parent=67 // pred_region
          %3559 = vsyncadd %s3552, 0
          %s3560 = scalar_lea.hbm %s12, %s26
          %s3562 = sshll.u32 %s3554, 4
          %s3563 = int_to_ptr.vmem [resolvable:$true] %s3562
          %s3564 = sshll.u32 %s3560, 4
          %s3565 = int_to_ptr.hbm [resolvable:$true] %s3564
          %3567 = dma.vmem_to_hbm [thread:$0]  %s3563, 16, %s3565, %s3552
        $region72: #{eegnet_25s_forward.1} parent=67 // pred_fallthru
          _
      $region68: #{eegnet_25s_forward.1} parent=5 // pred_fallthru
        _
      %p3568 = scmp.le.s32.totalorder 2, %s21
      // Predicated region
      $region73: #{eegnet_25s_forward.1} parent=5 // pred_check
        %p3569 = pneg %p3568
      $region74: #{eegnet_25s_forward.1} parent=5 // pred_check_branch
        %3571 = sbr.rel (%p3569) target = $region76
      $region75: #{eegnet_25s_forward.1} parent=5 // pred_region
        %s3572 = ssub.s32 %s21, 2
        // Predicated region
        $region77: #{eegnet_25s_forward.1} parent=75 // pred_check
          %p3573 = pneg %p307
        $region78: #{eegnet_25s_forward.1} parent=75 // pred_check_branch
          %3575 = sbr.rel (%p3573) target = $region80
        $region79: #{eegnet_25s_forward.1} parent=75 // pred_region
          %s3576 = sand.u32 %s292, 1
          %s3577 = scalar_lea.sflag [#allocation3], %s3576
          %s3578 = sand.u32 %s292, 1
          %s3579 = scalar_lea.vmem [#allocation2], %s3578
          %3581 = dma.done %s3577, 16
        $region80: #{eegnet_25s_forward.1} parent=75 // pred_fallthru
          _
      $region76: #{eegnet_25s_forward.1} parent=5 // pred_fallthru
        _
    $region6: #{eegnet_25s_forward.1} parent=1 // loop_footer
      %s25 = sadd.s32 1, %s21
    $region7: #{eegnet_25s_forward.1} parent=1 // loop_footer_branch
      %20 = sbr.rel target = $region3
    $region8: #{eegnet_25s_forward.1} parent=1 // loop_exit
      _
    %3582 = vsyncpa [#allocation3], 1
    %s3583 = scalar_lea.sflag [#allocation3], 1
    %3584 = vsyncpa %s3583, 1

</llo_original>
